<compile_context>
chip_gen: v7x
topology: tpu7x:2x2x1
jax: 0.10.0
libtpu: 0.0.40
codegen_flags: <defaults>
</compile_context>

<pallas_src>
import functools
import math

import jax
import jax.numpy as jnp
from jax import lax
from jax.experimental import pallas as pl
from jax.experimental.pallas import tpu as pltpu

# ---------------- small synthetic BERT config ----------------
VOCAB = 100
TYPE_VOCAB = 2
MAX_POS = 16
HIDDEN = 32
N_HEADS = 4
HEAD_DIM = HIDDEN // N_HEADS
INTERMEDIATE = 64
N_LAYERS = 2
NUM_CLASSES = 4
LN_EPS = 1e-12
MASK_BIAS = -10000.0  # HF BERT extended-attention-mask additive bias


# ---------------- in-kernel helpers (traced inside the fused kernel) ----------------
def _layernorm(h, gamma, beta):
    mean = jnp.mean(h, axis=-1, keepdims=True)
    var = jnp.mean(jnp.square(h - mean), axis=-1, keepdims=True)
    return (h - mean) * lax.rsqrt(var + LN_EPS) * gamma + beta


def _gelu(y):
    # TODO(synk): HF BERT default is exact erf-GELU; tanh approximation used here.
    return 0.5 * y * (1.0 + jnp.tanh(0.7978845608028654 * (y + 0.044715 * y * y * y)))


# ---------------- the single fused kernel ----------------
def _bert_fused_kernel(
    ids_ref, mask_ref,
    wemb_ref, pemb_ref, temb_ref,
    emb_ln_g_ref, emb_ln_b_ref,
    qkv_w_ref, qkv_b_ref, o_w_ref, o_b_ref,
    ln1_g_ref, ln1_b_ref,
    i_w_ref, i_b_ref, f_w_ref, f_b_ref,
    ln2_g_ref, ln2_b_ref,
    pool_w_ref, pool_b_ref, cls_w_ref, cls_b_ref,
    out_ref,
    *, batch, seq,
):
    scale = 1.0 / math.sqrt(HEAD_DIM)
    rows = batch * seq

    # --- embeddings, fully in-kernel ---
    # word embedding gather as a one-hot MXU matmul (exact for valid ids)
    ids = ids_ref[...]                                                   # (B*S, 1) int32
    vocab_iota = lax.broadcasted_iota(jnp.int32, (rows, VOCAB), 1)
    onehot = (vocab_iota == ids).astype(jnp.float32)                     # (B*S, V)
    we = jnp.dot(onehot, wemb_ref[...], preferred_element_type=jnp.float32)   # (B*S, H)
    # position ids are always 0..S-1 per sample; token_type_ids are all zero
    pe = pemb_ref[0:seq, :]                                              # (S, H)
    pe = jnp.concatenate([pe] * batch, axis=0)                           # (B*S, H)
    te = temb_ref[0:1, :]                                                # (1, H)
    h = _layernorm(we + pe + te, emb_ln_g_ref[...], emb_ln_b_ref[...])   # (B*S, H)

    # extended attention mask: (1 - mask) * -10000, per (batch, key)
    mask_bias = (1.0 - mask_ref[...]) * MASK_BIAS                        # (B, S)

    for l in range(N_LAYERS):
        # --- fused Q/K/V projection: one (H, 3H) matmul ---
        qkv = jnp.dot(h, qkv_w_ref[l], preferred_element_type=jnp.float32) + qkv_b_ref[l]
        q = qkv[:, 0 * HIDDEN:1 * HIDDEN] * scale     # score scale folded in once
        k = qkv[:, 1 * HIDDEN:2 * HIDDEN]
        v = qkv[:, 2 * HIDDEN:3 * HIDDEN]

        # --- multi-head attention, statically unrolled over (batch, head) ---
        ctx_rows = []
        for b in range(batch):
            bias_b = mask_bias[b:b + 1, :]                               # (1, S)
            head_outs = []
            for hh in range(N_HEADS):
                r0, c0 = b * seq, hh * HEAD_DIM
                q_bh = q[r0:r0 + seq, c0:c0 + HEAD_DIM]                  # (S, d)
                k_bh = k[r0:r0 + seq, c0:c0 + HEAD_DIM]
                v_bh = v[r0:r0 + seq, c0:c0 + HEAD_DIM]
                s = lax.dot_general(q_bh, k_bh, (((1,), (1,)), ((), ())),
                                    preferred_element_type=jnp.float32)  # (S, S)
                s = s + bias_b
                s = s - jnp.max(s, axis=-1, keepdims=True)
                p = jnp.exp(s)
                denom = jnp.sum(p, axis=-1, keepdims=True)
                p = p * pl.reciprocal(denom, approx=True)
                head_outs.append(jnp.dot(p, v_bh, preferred_element_type=jnp.float32))
            ctx_rows.append(jnp.concatenate(head_outs, axis=1))          # (S, H)
        ctx = jnp.concatenate(ctx_rows, axis=0)                          # (B*S, H)

        # --- attention output projection + residual + LN ---
        attn_out = jnp.dot(ctx, o_w_ref[l], preferred_element_type=jnp.float32) + o_b_ref[l]
        h = _layernorm(attn_out + h, ln1_g_ref[l], ln1_b_ref[l])

        # --- FFN (GELU) + residual + LN ---
        inter = jnp.dot(h, i_w_ref[l], preferred_element_type=jnp.float32) + i_b_ref[l]
        inter = _gelu(inter)
        ffn_out = jnp.dot(inter, f_w_ref[l], preferred_element_type=jnp.float32) + f_b_ref[l]
        h = _layernorm(ffn_out + h, ln2_g_ref[l], ln2_b_ref[l])

    # --- pooler (tanh on [CLS] rows) + classifier head, fused into kernel tail ---
    cls_rows = jnp.concatenate([h[b * seq:b * seq + 1, :] for b in range(batch)], axis=0)  # (B, H)
    pooled = jnp.tanh(
        jnp.dot(cls_rows, pool_w_ref[...], preferred_element_type=jnp.float32) + pool_b_ref[...])
    out_ref[...] = (
        jnp.dot(pooled, cls_w_ref[...], preferred_element_type=jnp.float32) + cls_b_ref[...])


# ---------------- deterministic parameter init ----------------
def _dense(key, in_dim, out_dim):
    return {"w": 0.02 * jax.random.normal(key, (in_dim, out_dim), jnp.float32),
            "b": jnp.zeros((out_dim,), jnp.float32)}


def init_params(key):
    keys = iter(jax.random.split(key, 64))
    params = {
        "word_emb": 0.02 * jax.random.normal(next(keys), (VOCAB, HIDDEN), jnp.float32),
        "pos_emb": 0.02 * jax.random.normal(next(keys), (MAX_POS, HIDDEN), jnp.float32),
        "type_emb": 0.02 * jax.random.normal(next(keys), (TYPE_VOCAB, HIDDEN), jnp.float32),
        "emb_ln_g": jnp.ones((1, HIDDEN), jnp.float32),
        "emb_ln_b": jnp.zeros((1, HIDDEN), jnp.float32),
        "pooler": _dense(next(keys), HIDDEN, HIDDEN),
        "classifier": _dense(next(keys), HIDDEN, NUM_CLASSES),
    }
    layers = []
    for _ in range(N_LAYERS):
        q = _dense(next(keys), HIDDEN, HIDDEN)
        k = _dense(next(keys), HIDDEN, HIDDEN)
        v = _dense(next(keys), HIDDEN, HIDDEN)
        o = _dense(next(keys), HIDDEN, HIDDEN)
        i = _dense(next(keys), HIDDEN, INTERMEDIATE)
        f = _dense(next(keys), INTERMEDIATE, HIDDEN)
        layers.append({
            # fused QKV weights: (H, 3H) / bias (1, 3H)
            "qkv_w": jnp.concatenate([q["w"], k["w"], v["w"]], axis=1),
            "qkv_b": jnp.concatenate([q["b"], k["b"], v["b"]])[None, :],
            "o_w": o["w"], "o_b": o["b"][None, :],
            "ln1_g": jnp.ones((1, HIDDEN), jnp.float32),
            "ln1_b": jnp.zeros((1, HIDDEN), jnp.float32),
            "i_w": i["w"], "i_b": i["b"][None, :],
            "f_w": f["w"], "f_b": f["b"][None, :],
            "ln2_g": jnp.ones((1, HIDDEN), jnp.float32),
            "ln2_b": jnp.zeros((1, HIDDEN), jnp.float32),
        })
    # stack per-layer weights with a leading layer axis (static-indexed in-kernel)
    params["stacked"] = {k: jnp.stack([lyr[k] for lyr in layers], axis=0)
                         for k in layers[0]}
    return params


# ---------------- forward pass (single pallas_call, no other device ops) ----------------
def bert_classifier_forward(params, input_ids, attention_mask):
    B, S = input_ids.shape
    H = HIDDEN

    ids2d = input_ids.reshape(B * S, 1).astype(jnp.int32)       # (B*S, 1) for in-kernel one-hot
    mask_f = attention_mask.astype(jnp.float32)                 # (B, S)

    stk = params["stacked"]
    inputs = (
        ids2d, mask_f,
        params["word_emb"], params["pos_emb"], params["type_emb"],
        params["emb_ln_g"], params["emb_ln_b"],
        stk["qkv_w"], stk["qkv_b"], stk["o_w"], stk["o_b"],
        stk["ln1_g"], stk["ln1_b"],
        stk["i_w"], stk["i_b"], stk["f_w"], stk["f_b"],
        stk["ln2_g"], stk["ln2_b"],
        params["pooler"]["w"], params["pooler"]["b"].reshape(1, H),
        params["classifier"]["w"], params["classifier"]["b"].reshape(1, NUM_CLASSES),
    )

    return pl.pallas_call(
        functools.partial(_bert_fused_kernel, batch=B, seq=S),
        out_shape=jax.ShapeDtypeStruct((B, NUM_CLASSES), jnp.float32),
        in_specs=[pl.BlockSpec(memory_space=pltpu.MemorySpace.VMEM) for _ in inputs],
        out_specs=pl.BlockSpec(memory_space=pltpu.MemorySpace.VMEM),
    )(*inputs)


if __name__ == "__main__":
    key = jax.random.PRNGKey(0)
    k_param, k_ids = jax.random.split(key)

    B, S = 2, 8
    params = init_params(k_param)
    input_ids = jax.random.randint(k_ids, (B, S), 0, VOCAB, dtype=jnp.int32)
    attention_mask = jnp.ones((B, S), dtype=jnp.int32).at[1, 6:].set(0)   # pad tail of sample 1

    logits = jax.jit(bert_classifier_forward)(params, input_ids, attention_mask)
    jax.block_until_ready(logits)
    assert logits.shape == (B, NUM_CLASSES)
    print("KERNEL_OK")
</pallas_src>

<mosaic_0001>
module attributes {stable_mosaic.version = 11 : i64} {
  func.func @_bert_fused_kernel(%arg0: memref<16x1xi32, #tpu.memory_space<vmem>>, %arg1: memref<2x8xf32, #tpu.memory_space<vmem>>, %arg2: memref<100x32xf32, #tpu.memory_space<vmem>>, %arg3: memref<16x32xf32, #tpu.memory_space<vmem>>, %arg4: memref<2x32xf32, #tpu.memory_space<vmem>>, %arg5: memref<1x32xf32, #tpu.memory_space<vmem>>, %arg6: memref<1x32xf32, #tpu.memory_space<vmem>>, %arg7: memref<2x32x96xf32, #tpu.memory_space<vmem>>, %arg8: memref<2x1x96xf32, #tpu.memory_space<vmem>>, %arg9: memref<2x32x32xf32, #tpu.memory_space<vmem>>, %arg10: memref<2x1x32xf32, #tpu.memory_space<vmem>>, %arg11: memref<2x1x32xf32, #tpu.memory_space<vmem>>, %arg12: memref<2x1x32xf32, #tpu.memory_space<vmem>>, %arg13: memref<2x32x64xf32, #tpu.memory_space<vmem>>, %arg14: memref<2x1x64xf32, #tpu.memory_space<vmem>>, %arg15: memref<2x64x32xf32, #tpu.memory_space<vmem>>, %arg16: memref<2x1x32xf32, #tpu.memory_space<vmem>>, %arg17: memref<2x1x32xf32, #tpu.memory_space<vmem>>, %arg18: memref<2x1x32xf32, #tpu.memory_space<vmem>>, %arg19: memref<32x32xf32, #tpu.memory_space<vmem>>, %arg20: memref<1x32xf32, #tpu.memory_space<vmem>>, %arg21: memref<32x4xf32, #tpu.memory_space<vmem>>, %arg22: memref<1x4xf32, #tpu.memory_space<vmem>>, %arg23: memref<2x4xf32, #tpu.memory_space<vmem>>) attributes {dimension_semantics = [], scalar_prefetch = 0 : i64, scratch_operands = 0 : i64, tpu.core_type = #tpu.core_type<tc>} {
    %c0 = arith.constant 0 : index
    %c0_0 = arith.constant 0 : index
    %0 = vector.load %arg0[%c0, %c0_0] : memref<16x1xi32, #tpu.memory_space<vmem>>, vector<16x1xi32>
    %1 = tpu.iota {dimensions = array<i32: 1>} : vector<16x100xi32>
    %2 = vector.broadcast %0 : vector<16x1xi32> to vector<16x100xi32>
    %3 = arith.cmpi eq, %1, %2 : vector<16x100xi32>
    %4 = arith.extui %3 : vector<16x100xi1> to vector<16x100xi32>
    %5 = arith.sitofp %4 : vector<16x100xi32> to vector<16x100xf32>
    %c0_1 = arith.constant 0 : index
    %c0_2 = arith.constant 0 : index
    %6 = vector.load %arg2[%c0_1, %c0_2] : memref<100x32xf32, #tpu.memory_space<vmem>>, vector<100x32xf32>
    %cst = arith.constant dense<0.000000e+00> : vector<16x32xf32>
    %7 = tpu.matmul %5, %6, %cst {dimension_numbers = #tpu.dot_dimension_numbers<[1], [0], [0], [1], [0, 0, 1, 1], [], []>} : vector<16x100xf32>, vector<100x32xf32>, vector<16x32xf32> -> vector<16x32xf32>
    %c0_3 = arith.constant 0 : index
    %c0_4 = arith.constant 0 : index
    %8 = vector.load %arg3[%c0_3, %c0_4] : memref<16x32xf32, #tpu.memory_space<vmem>>, vector<8x32xf32>
    %9 = tpu.concatenate %8, %8 in 0 : vector<8x32xf32>, vector<8x32xf32> -> vector<16x32xf32>
    %c0_5 = arith.constant 0 : index
    %c0_6 = arith.constant 0 : index
    %10 = vector.load %arg4[%c0_5, %c0_6] : memref<2x32xf32, #tpu.memory_space<vmem>>, vector<1x32xf32>
    %11 = arith.addf %7, %9 : vector<16x32xf32>
    %12 = vector.broadcast %10 : vector<1x32xf32> to vector<16x32xf32>
    %13 = arith.addf %11, %12 : vector<16x32xf32>
    %c0_7 = arith.constant 0 : index
    %c0_8 = arith.constant 0 : index
    %14 = vector.load %arg5[%c0_7, %c0_8] : memref<1x32xf32, #tpu.memory_space<vmem>>, vector<1x32xf32>
    %c0_9 = arith.constant 0 : index
    %c0_10 = arith.constant 0 : index
    %15 = vector.load %arg6[%c0_9, %c0_10] : memref<1x32xf32, #tpu.memory_space<vmem>>, vector<1x32xf32>
    %cst_11 = arith.constant dense<0.000000e+00> : vector<16xf32>
    %16 = vector.multi_reduction <add>, %13, %cst_11 [1] : vector<16x32xf32> to vector<16xf32>
    %17 = vector.shape_cast %16 : vector<16xf32> to vector<16x1xf32>
    %cst_12 = arith.constant 3.200000e+01 : f32
    %18 = vector.broadcast %cst_12 : f32 to vector<16x1xf32>
    %19 = arith.divf %17, %18 : vector<16x1xf32>
    %20 = vector.broadcast %19 : vector<16x1xf32> to vector<16x32xf32>
    %21 = arith.subf %13, %20 : vector<16x32xf32>
    %22 = arith.mulf %21, %21 : vector<16x32xf32>
    %cst_13 = arith.constant dense<0.000000e+00> : vector<16xf32>
    %23 = vector.multi_reduction <add>, %22, %cst_13 [1] : vector<16x32xf32> to vector<16xf32>
    %24 = vector.shape_cast %23 : vector<16xf32> to vector<16x1xf32>
    %cst_14 = arith.constant 3.200000e+01 : f32
    %25 = vector.broadcast %cst_14 : f32 to vector<16x1xf32>
    %26 = arith.divf %24, %25 : vector<16x1xf32>
    %27 = vector.broadcast %19 : vector<16x1xf32> to vector<16x32xf32>
    %28 = arith.subf %13, %27 : vector<16x32xf32>
    %cst_15 = arith.constant 9.99999996E-13 : f32
    %29 = vector.broadcast %cst_15 : f32 to vector<16x1xf32>
    %30 = arith.addf %26, %29 : vector<16x1xf32>
    %31 = math.rsqrt %30 : vector<16x1xf32>
    %32 = vector.broadcast %31 : vector<16x1xf32> to vector<16x32xf32>
    %33 = arith.mulf %28, %32 : vector<16x32xf32>
    %34 = vector.broadcast %14 : vector<1x32xf32> to vector<16x32xf32>
    %35 = arith.mulf %33, %34 : vector<16x32xf32>
    %36 = vector.broadcast %15 : vector<1x32xf32> to vector<16x32xf32>
    %37 = arith.addf %35, %36 : vector<16x32xf32>
    %c0_16 = arith.constant 0 : index
    %c0_17 = arith.constant 0 : index
    %38 = vector.load %arg1[%c0_16, %c0_17] : memref<2x8xf32, #tpu.memory_space<vmem>>, vector<2x8xf32>
    %cst_18 = arith.constant 1.000000e+00 : f32
    %39 = vector.broadcast %cst_18 : f32 to vector<2x8xf32>
    %40 = arith.subf %39, %38 : vector<2x8xf32>
    %cst_19 = arith.constant -1.000000e+04 : f32
    %41 = vector.broadcast %cst_19 : f32 to vector<2x8xf32>
    %42 = arith.mulf %40, %41 : vector<2x8xf32>
    %c0_20 = arith.constant 0 : index
    %c0_21 = arith.constant 0 : index
    %c0_22 = arith.constant 0 : index
    %43 = vector.load %arg7[%c0_20, %c0_21, %c0_22] : memref<2x32x96xf32, #tpu.memory_space<vmem>>, vector<1x32x96xf32>
    %44 = vector.shape_cast %43 : vector<1x32x96xf32> to vector<32x96xf32>
    %cst_23 = arith.constant dense<0.000000e+00> : vector<16x96xf32>
    %45 = tpu.matmul %37, %44, %cst_23 {dimension_numbers = #tpu.dot_dimension_numbers<[1], [0], [0], [1], [0, 0, 1, 1], [], []>} : vector<16x32xf32>, vector<32x96xf32>, vector<16x96xf32> -> vector<16x96xf32>
    %c0_24 = arith.constant 0 : index
    %c0_25 = arith.constant 0 : index
    %c0_26 = arith.constant 0 : index
    %46 = vector.load %arg8[%c0_24, %c0_25, %c0_26] : memref<2x1x96xf32, #tpu.memory_space<vmem>>, vector<1x1x96xf32>
    %47 = vector.shape_cast %46 : vector<1x1x96xf32> to vector<1x96xf32>
    %48 = vector.broadcast %47 : vector<1x96xf32> to vector<16x96xf32>
    %49 = arith.addf %45, %48 : vector<16x96xf32>
    %50 = vector.extract_strided_slice %49 {offsets = [0, 0], sizes = [16, 32], strides = [1, 1]} : vector<16x96xf32> to vector<16x32xf32>
    %cst_27 = arith.constant 0.353553385 : f32
    %51 = vector.broadcast %cst_27 : f32 to vector<16x32xf32>
    %52 = arith.mulf %50, %51 : vector<16x32xf32>
    %53 = vector.extract_strided_slice %49 {offsets = [0, 32], sizes = [16, 32], strides = [1, 1]} : vector<16x96xf32> to vector<16x32xf32>
    %54 = vector.extract_strided_slice %49 {offsets = [0, 64], sizes = [16, 32], strides = [1, 1]} : vector<16x96xf32> to vector<16x32xf32>
    %55 = vector.extract_strided_slice %42 {offsets = [0, 0], sizes = [1, 8], strides = [1, 1]} : vector<2x8xf32> to vector<1x8xf32>
    %56 = vector.extract_strided_slice %52 {offsets = [0, 0], sizes = [8, 8], strides = [1, 1]} : vector<16x32xf32> to vector<8x8xf32>
    %57 = vector.extract_strided_slice %53 {offsets = [0, 0], sizes = [8, 8], strides = [1, 1]} : vector<16x32xf32> to vector<8x8xf32>
    %58 = vector.extract_strided_slice %54 {offsets = [0, 0], sizes = [8, 8], strides = [1, 1]} : vector<16x32xf32> to vector<8x8xf32>
    %cst_28 = arith.constant dense<0.000000e+00> : vector<8x8xf32>
    %59 = tpu.matmul %56, %57, %cst_28 {dimension_numbers = #tpu.dot_dimension_numbers<[1], [1], [0], [0], [0, 0, 1, 0], [], []>} : vector<8x8xf32>, vector<8x8xf32>, vector<8x8xf32> -> vector<8x8xf32>
    %60 = vector.broadcast %55 : vector<1x8xf32> to vector<8x8xf32>
    %61 = arith.addf %59, %60 : vector<8x8xf32>
    %cst_29 = arith.constant dense<0xFF800000> : vector<8xf32>
    %62 = vector.multi_reduction <maximumf>, %61, %cst_29 [1] : vector<8x8xf32> to vector<8xf32>
    %63 = vector.shape_cast %62 : vector<8xf32> to vector<8x1xf32>
    %64 = vector.broadcast %63 : vector<8x1xf32> to vector<8x8xf32>
    %65 = arith.subf %61, %64 : vector<8x8xf32>
    %66 = math.exp %65 : vector<8x8xf32>
    %cst_30 = arith.constant dense<0.000000e+00> : vector<8xf32>
    %67 = vector.multi_reduction <add>, %66, %cst_30 [1] : vector<8x8xf32> to vector<8xf32>
    %68 = vector.shape_cast %67 : vector<8xf32> to vector<8x1xf32>
    %69 = tpu.reciprocal %68 {approx = true} : vector<8x1xf32> -> vector<8x1xf32>
    %70 = vector.broadcast %69 : vector<8x1xf32> to vector<8x8xf32>
    %71 = arith.mulf %66, %70 : vector<8x8xf32>
    %cst_31 = arith.constant dense<0.000000e+00> : vector<8x8xf32>
    %72 = tpu.matmul %71, %58, %cst_31 {dimension_numbers = #tpu.dot_dimension_numbers<[1], [0], [0], [1], [0, 0, 1, 1], [], []>} : vector<8x8xf32>, vector<8x8xf32>, vector<8x8xf32> -> vector<8x8xf32>
    %73 = vector.extract_strided_slice %52 {offsets = [0, 8], sizes = [8, 8], strides = [1, 1]} : vector<16x32xf32> to vector<8x8xf32>
    %74 = vector.extract_strided_slice %53 {offsets = [0, 8], sizes = [8, 8], strides = [1, 1]} : vector<16x32xf32> to vector<8x8xf32>
    %75 = vector.extract_strided_slice %54 {offsets = [0, 8], sizes = [8, 8], strides = [1, 1]} : vector<16x32xf32> to vector<8x8xf32>
    %cst_32 = arith.constant dense<0.000000e+00> : vector<8x8xf32>
    %76 = tpu.matmul %73, %74, %cst_32 {dimension_numbers = #tpu.dot_dimension_numbers<[1], [1], [0], [0], [0, 0, 1, 0], [], []>} : vector<8x8xf32>, vector<8x8xf32>, vector<8x8xf32> -> vector<8x8xf32>
    %77 = vector.broadcast %55 : vector<1x8xf32> to vector<8x8xf32>
    %78 = arith.addf %76, %77 : vector<8x8xf32>
    %cst_33 = arith.constant dense<0xFF800000> : vector<8xf32>
    %79 = vector.multi_reduction <maximumf>, %78, %cst_33 [1] : vector<8x8xf32> to vector<8xf32>
    %80 = vector.shape_cast %79 : vector<8xf32> to vector<8x1xf32>
    %81 = vector.broadcast %80 : vector<8x1xf32> to vector<8x8xf32>
    %82 = arith.subf %78, %81 : vector<8x8xf32>
    %83 = math.exp %82 : vector<8x8xf32>
    %cst_34 = arith.constant dense<0.000000e+00> : vector<8xf32>
    %84 = vector.multi_reduction <add>, %83, %cst_34 [1] : vector<8x8xf32> to vector<8xf32>
    %85 = vector.shape_cast %84 : vector<8xf32> to vector<8x1xf32>
    %86 = tpu.reciprocal %85 {approx = true} : vector<8x1xf32> -> vector<8x1xf32>
    %87 = vector.broadcast %86 : vector<8x1xf32> to vector<8x8xf32>
    %88 = arith.mulf %83, %87 : vector<8x8xf32>
    %cst_35 = arith.constant dense<0.000000e+00> : vector<8x8xf32>
    %89 = tpu.matmul %88, %75, %cst_35 {dimension_numbers = #tpu.dot_dimension_numbers<[1], [0], [0], [1], [0, 0, 1, 1], [], []>} : vector<8x8xf32>, vector<8x8xf32>, vector<8x8xf32> -> vector<8x8xf32>
    %90 = vector.extract_strided_slice %52 {offsets = [0, 16], sizes = [8, 8], strides = [1, 1]} : vector<16x32xf32> to vector<8x8xf32>
    %91 = vector.extract_strided_slice %53 {offsets = [0, 16], sizes = [8, 8], strides = [1, 1]} : vector<16x32xf32> to vector<8x8xf32>
    %92 = vector.extract_strided_slice %54 {offsets = [0, 16], sizes = [8, 8], strides = [1, 1]} : vector<16x32xf32> to vector<8x8xf32>
    %cst_36 = arith.constant dense<0.000000e+00> : vector<8x8xf32>
    %93 = tpu.matmul %90, %91, %cst_36 {dimension_numbers = #tpu.dot_dimension_numbers<[1], [1], [0], [0], [0, 0, 1, 0], [], []>} : vector<8x8xf32>, vector<8x8xf32>, vector<8x8xf32> -> vector<8x8xf32>
    %94 = vector.broadcast %55 : vector<1x8xf32> to vector<8x8xf32>
    %95 = arith.addf %93, %94 : vector<8x8xf32>
    %cst_37 = arith.constant dense<0xFF800000> : vector<8xf32>
    %96 = vector.multi_reduction <maximumf>, %95, %cst_37 [1] : vector<8x8xf32> to vector<8xf32>
    %97 = vector.shape_cast %96 : vector<8xf32> to vector<8x1xf32>
    %98 = vector.broadcast %97 : vector<8x1xf32> to vector<8x8xf32>
    %99 = arith.subf %95, %98 : vector<8x8xf32>
    %100 = math.exp %99 : vector<8x8xf32>
    %cst_38 = arith.constant dense<0.000000e+00> : vector<8xf32>
    %101 = vector.multi_reduction <add>, %100, %cst_38 [1] : vector<8x8xf32> to vector<8xf32>
    %102 = vector.shape_cast %101 : vector<8xf32> to vector<8x1xf32>
    %103 = tpu.reciprocal %102 {approx = true} : vector<8x1xf32> -> vector<8x1xf32>
    %104 = vector.broadcast %103 : vector<8x1xf32> to vector<8x8xf32>
    %105 = arith.mulf %100, %104 : vector<8x8xf32>
    %cst_39 = arith.constant dense<0.000000e+00> : vector<8x8xf32>
    %106 = tpu.matmul %105, %92, %cst_39 {dimension_numbers = #tpu.dot_dimension_numbers<[1], [0], [0], [1], [0, 0, 1, 1], [], []>} : vector<8x8xf32>, vector<8x8xf32>, vector<8x8xf32> -> vector<8x8xf32>
    %107 = vector.extract_strided_slice %52 {offsets = [0, 24], sizes = [8, 8], strides = [1, 1]} : vector<16x32xf32> to vector<8x8xf32>
    %108 = vector.extract_strided_slice %53 {offsets = [0, 24], sizes = [8, 8], strides = [1, 1]} : vector<16x32xf32> to vector<8x8xf32>
    %109 = vector.extract_strided_slice %54 {offsets = [0, 24], sizes = [8, 8], strides = [1, 1]} : vector<16x32xf32> to vector<8x8xf32>
    %cst_40 = arith.constant dense<0.000000e+00> : vector<8x8xf32>
    %110 = tpu.matmul %107, %108, %cst_40 {dimension_numbers = #tpu.dot_dimension_numbers<[1], [1], [0], [0], [0, 0, 1, 0], [], []>} : vector<8x8xf32>, vector<8x8xf32>, vector<8x8xf32> -> vector<8x8xf32>
    %111 = vector.broadcast %55 : vector<1x8xf32> to vector<8x8xf32>
    %112 = arith.addf %110, %111 : vector<8x8xf32>
    %cst_41 = arith.constant dense<0xFF800000> : vector<8xf32>
    %113 = vector.multi_reduction <maximumf>, %112, %cst_41 [1] : vector<8x8xf32> to vector<8xf32>
    %114 = vector.shape_cast %113 : vector<8xf32> to vector<8x1xf32>
    %115 = vector.broadcast %114 : vector<8x1xf32> to vector<8x8xf32>
    %116 = arith.subf %112, %115 : vector<8x8xf32>
    %117 = math.exp %116 : vector<8x8xf32>
    %cst_42 = arith.constant dense<0.000000e+00> : vector<8xf32>
    %118 = vector.multi_reduction <add>, %117, %cst_42 [1] : vector<8x8xf32> to vector<8xf32>
    %119 = vector.shape_cast %118 : vector<8xf32> to vector<8x1xf32>
    %120 = tpu.reciprocal %119 {approx = true} : vector<8x1xf32> -> vector<8x1xf32>
    %121 = vector.broadcast %120 : vector<8x1xf32> to vector<8x8xf32>
    %122 = arith.mulf %117, %121 : vector<8x8xf32>
    %cst_43 = arith.constant dense<0.000000e+00> : vector<8x8xf32>
    %123 = tpu.matmul %122, %109, %cst_43 {dimension_numbers = #tpu.dot_dimension_numbers<[1], [0], [0], [1], [0, 0, 1, 1], [], []>} : vector<8x8xf32>, vector<8x8xf32>, vector<8x8xf32> -> vector<8x8xf32>
    %124 = tpu.concatenate %72, %89, %106, %123 in 1 : vector<8x8xf32>, vector<8x8xf32>, vector<8x8xf32>, vector<8x8xf32> -> vector<8x32xf32>
    %125 = vector.extract_strided_slice %42 {offsets = [1, 0], sizes = [1, 8], strides = [1, 1]} : vector<2x8xf32> to vector<1x8xf32>
    %126 = vector.extract_strided_slice %52 {offsets = [8, 0], sizes = [8, 8], strides = [1, 1]} : vector<16x32xf32> to vector<8x8xf32>
    %127 = vector.extract_strided_slice %53 {offsets = [8, 0], sizes = [8, 8], strides = [1, 1]} : vector<16x32xf32> to vector<8x8xf32>
    %128 = vector.extract_strided_slice %54 {offsets = [8, 0], sizes = [8, 8], strides = [1, 1]} : vector<16x32xf32> to vector<8x8xf32>
    %cst_44 = arith.constant dense<0.000000e+00> : vector<8x8xf32>
    %129 = tpu.matmul %126, %127, %cst_44 {dimension_numbers = #tpu.dot_dimension_numbers<[1], [1], [0], [0], [0, 0, 1, 0], [], []>} : vector<8x8xf32>, vector<8x8xf32>, vector<8x8xf32> -> vector<8x8xf32>
    %130 = vector.broadcast %125 : vector<1x8xf32> to vector<8x8xf32>
    %131 = arith.addf %129, %130 : vector<8x8xf32>
    %cst_45 = arith.constant dense<0xFF800000> : vector<8xf32>
    %132 = vector.multi_reduction <maximumf>, %131, %cst_45 [1] : vector<8x8xf32> to vector<8xf32>
    %133 = vector.shape_cast %132 : vector<8xf32> to vector<8x1xf32>
    %134 = vector.broadcast %133 : vector<8x1xf32> to vector<8x8xf32>
    %135 = arith.subf %131, %134 : vector<8x8xf32>
    %136 = math.exp %135 : vector<8x8xf32>
    %cst_46 = arith.constant dense<0.000000e+00> : vector<8xf32>
    %137 = vector.multi_reduction <add>, %136, %cst_46 [1] : vector<8x8xf32> to vector<8xf32>
    %138 = vector.shape_cast %137 : vector<8xf32> to vector<8x1xf32>
    %139 = tpu.reciprocal %138 {approx = true} : vector<8x1xf32> -> vector<8x1xf32>
    %140 = vector.broadcast %139 : vector<8x1xf32> to vector<8x8xf32>
    %141 = arith.mulf %136, %140 : vector<8x8xf32>
    %cst_47 = arith.constant dense<0.000000e+00> : vector<8x8xf32>
    %142 = tpu.matmul %141, %128, %cst_47 {dimension_numbers = #tpu.dot_dimension_numbers<[1], [0], [0], [1], [0, 0, 1, 1], [], []>} : vector<8x8xf32>, vector<8x8xf32>, vector<8x8xf32> -> vector<8x8xf32>
    %143 = vector.extract_strided_slice %52 {offsets = [8, 8], sizes = [8, 8], strides = [1, 1]} : vector<16x32xf32> to vector<8x8xf32>
    %144 = vector.extract_strided_slice %53 {offsets = [8, 8], sizes = [8, 8], strides = [1, 1]} : vector<16x32xf32> to vector<8x8xf32>
    %145 = vector.extract_strided_slice %54 {offsets = [8, 8], sizes = [8, 8], strides = [1, 1]} : vector<16x32xf32> to vector<8x8xf32>
    %cst_48 = arith.constant dense<0.000000e+00> : vector<8x8xf32>
    %146 = tpu.matmul %143, %144, %cst_48 {dimension_numbers = #tpu.dot_dimension_numbers<[1], [1], [0], [0], [0, 0, 1, 0], [], []>} : vector<8x8xf32>, vector<8x8xf32>, vector<8x8xf32> -> vector<8x8xf32>
    %147 = vector.broadcast %125 : vector<1x8xf32> to vector<8x8xf32>
    %148 = arith.addf %146, %147 : vector<8x8xf32>
    %cst_49 = arith.constant dense<0xFF800000> : vector<8xf32>
    %149 = vector.multi_reduction <maximumf>, %148, %cst_49 [1] : vector<8x8xf32> to vector<8xf32>
    %150 = vector.shape_cast %149 : vector<8xf32> to vector<8x1xf32>
    %151 = vector.broadcast %150 : vector<8x1xf32> to vector<8x8xf32>
    %152 = arith.subf %148, %151 : vector<8x8xf32>
    %153 = math.exp %152 : vector<8x8xf32>
    %cst_50 = arith.constant dense<0.000000e+00> : vector<8xf32>
    %154 = vector.multi_reduction <add>, %153, %cst_50 [1] : vector<8x8xf32> to vector<8xf32>
    %155 = vector.shape_cast %154 : vector<8xf32> to vector<8x1xf32>
    %156 = tpu.reciprocal %155 {approx = true} : vector<8x1xf32> -> vector<8x1xf32>
    %157 = vector.broadcast %156 : vector<8x1xf32> to vector<8x8xf32>
    %158 = arith.mulf %153, %157 : vector<8x8xf32>
    %cst_51 = arith.constant dense<0.000000e+00> : vector<8x8xf32>
    %159 = tpu.matmul %158, %145, %cst_51 {dimension_numbers = #tpu.dot_dimension_numbers<[1], [0], [0], [1], [0, 0, 1, 1], [], []>} : vector<8x8xf32>, vector<8x8xf32>, vector<8x8xf32> -> vector<8x8xf32>
    %160 = vector.extract_strided_slice %52 {offsets = [8, 16], sizes = [8, 8], strides = [1, 1]} : vector<16x32xf32> to vector<8x8xf32>
    %161 = vector.extract_strided_slice %53 {offsets = [8, 16], sizes = [8, 8], strides = [1, 1]} : vector<16x32xf32> to vector<8x8xf32>
    %162 = vector.extract_strided_slice %54 {offsets = [8, 16], sizes = [8, 8], strides = [1, 1]} : vector<16x32xf32> to vector<8x8xf32>
    %cst_52 = arith.constant dense<0.000000e+00> : vector<8x8xf32>
    %163 = tpu.matmul %160, %161, %cst_52 {dimension_numbers = #tpu.dot_dimension_numbers<[1], [1], [0], [0], [0, 0, 1, 0], [], []>} : vector<8x8xf32>, vector<8x8xf32>, vector<8x8xf32> -> vector<8x8xf32>
    %164 = vector.broadcast %125 : vector<1x8xf32> to vector<8x8xf32>
    %165 = arith.addf %163, %164 : vector<8x8xf32>
    %cst_53 = arith.constant dense<0xFF800000> : vector<8xf32>
    %166 = vector.multi_reduction <maximumf>, %165, %cst_53 [1] : vector<8x8xf32> to vector<8xf32>
    %167 = vector.shape_cast %166 : vector<8xf32> to vector<8x1xf32>
    %168 = vector.broadcast %167 : vector<8x1xf32> to vector<8x8xf32>
    %169 = arith.subf %165, %168 : vector<8x8xf32>
    %170 = math.exp %169 : vector<8x8xf32>
    %cst_54 = arith.constant dense<0.000000e+00> : vector<8xf32>
    %171 = vector.multi_reduction <add>, %170, %cst_54 [1] : vector<8x8xf32> to vector<8xf32>
    %172 = vector.shape_cast %171 : vector<8xf32> to vector<8x1xf32>
    %173 = tpu.reciprocal %172 {approx = true} : vector<8x1xf32> -> vector<8x1xf32>
    %174 = vector.broadcast %173 : vector<8x1xf32> to vector<8x8xf32>
    %175 = arith.mulf %170, %174 : vector<8x8xf32>
    %cst_55 = arith.constant dense<0.000000e+00> : vector<8x8xf32>
    %176 = tpu.matmul %175, %162, %cst_55 {dimension_numbers = #tpu.dot_dimension_numbers<[1], [0], [0], [1], [0, 0, 1, 1], [], []>} : vector<8x8xf32>, vector<8x8xf32>, vector<8x8xf32> -> vector<8x8xf32>
    %177 = vector.extract_strided_slice %52 {offsets = [8, 24], sizes = [8, 8], strides = [1, 1]} : vector<16x32xf32> to vector<8x8xf32>
    %178 = vector.extract_strided_slice %53 {offsets = [8, 24], sizes = [8, 8], strides = [1, 1]} : vector<16x32xf32> to vector<8x8xf32>
    %179 = vector.extract_strided_slice %54 {offsets = [8, 24], sizes = [8, 8], strides = [1, 1]} : vector<16x32xf32> to vector<8x8xf32>
    %cst_56 = arith.constant dense<0.000000e+00> : vector<8x8xf32>
    %180 = tpu.matmul %177, %178, %cst_56 {dimension_numbers = #tpu.dot_dimension_numbers<[1], [1], [0], [0], [0, 0, 1, 0], [], []>} : vector<8x8xf32>, vector<8x8xf32>, vector<8x8xf32> -> vector<8x8xf32>
    %181 = vector.broadcast %125 : vector<1x8xf32> to vector<8x8xf32>
    %182 = arith.addf %180, %181 : vector<8x8xf32>
    %cst_57 = arith.constant dense<0xFF800000> : vector<8xf32>
    %183 = vector.multi_reduction <maximumf>, %182, %cst_57 [1] : vector<8x8xf32> to vector<8xf32>
    %184 = vector.shape_cast %183 : vector<8xf32> to vector<8x1xf32>
    %185 = vector.broadcast %184 : vector<8x1xf32> to vector<8x8xf32>
    %186 = arith.subf %182, %185 : vector<8x8xf32>
    %187 = math.exp %186 : vector<8x8xf32>
    %cst_58 = arith.constant dense<0.000000e+00> : vector<8xf32>
    %188 = vector.multi_reduction <add>, %187, %cst_58 [1] : vector<8x8xf32> to vector<8xf32>
    %189 = vector.shape_cast %188 : vector<8xf32> to vector<8x1xf32>
    %190 = tpu.reciprocal %189 {approx = true} : vector<8x1xf32> -> vector<8x1xf32>
    %191 = vector.broadcast %190 : vector<8x1xf32> to vector<8x8xf32>
    %192 = arith.mulf %187, %191 : vector<8x8xf32>
    %cst_59 = arith.constant dense<0.000000e+00> : vector<8x8xf32>
    %193 = tpu.matmul %192, %179, %cst_59 {dimension_numbers = #tpu.dot_dimension_numbers<[1], [0], [0], [1], [0, 0, 1, 1], [], []>} : vector<8x8xf32>, vector<8x8xf32>, vector<8x8xf32> -> vector<8x8xf32>
    %194 = tpu.concatenate %142, %159, %176, %193 in 1 : vector<8x8xf32>, vector<8x8xf32>, vector<8x8xf32>, vector<8x8xf32> -> vector<8x32xf32>
    %195 = tpu.concatenate %124, %194 in 0 : vector<8x32xf32>, vector<8x32xf32> -> vector<16x32xf32>
    %c0_60 = arith.constant 0 : index
    %c0_61 = arith.constant 0 : index
    %c0_62 = arith.constant 0 : index
    %196 = vector.load %arg9[%c0_60, %c0_61, %c0_62] : memref<2x32x32xf32, #tpu.memory_space<vmem>>, vector<1x32x32xf32>
    %197 = vector.shape_cast %196 : vector<1x32x32xf32> to vector<32x32xf32>
    %cst_63 = arith.constant dense<0.000000e+00> : vector<16x32xf32>
    %198 = tpu.matmul %195, %197, %cst_63 {dimension_numbers = #tpu.dot_dimension_numbers<[1], [0], [0], [1], [0, 0, 1, 1], [], []>} : vector<16x32xf32>, vector<32x32xf32>, vector<16x32xf32> -> vector<16x32xf32>
    %c0_64 = arith.constant 0 : index
    %c0_65 = arith.constant 0 : index
    %c0_66 = arith.constant 0 : index
    %199 = vector.load %arg10[%c0_64, %c0_65, %c0_66] : memref<2x1x32xf32, #tpu.memory_space<vmem>>, vector<1x1x32xf32>
    %200 = vector.shape_cast %199 : vector<1x1x32xf32> to vector<1x32xf32>
    %201 = vector.broadcast %200 : vector<1x32xf32> to vector<16x32xf32>
    %202 = arith.addf %198, %201 : vector<16x32xf32>
    %203 = arith.addf %202, %37 : vector<16x32xf32>
    %c0_67 = arith.constant 0 : index
    %c0_68 = arith.constant 0 : index
    %c0_69 = arith.constant 0 : index
    %204 = vector.load %arg11[%c0_67, %c0_68, %c0_69] : memref<2x1x32xf32, #tpu.memory_space<vmem>>, vector<1x1x32xf32>
    %205 = vector.shape_cast %204 : vector<1x1x32xf32> to vector<1x32xf32>
    %c0_70 = arith.constant 0 : index
    %c0_71 = arith.constant 0 : index
    %c0_72 = arith.constant 0 : index
    %206 = vector.load %arg12[%c0_70, %c0_71, %c0_72] : memref<2x1x32xf32, #tpu.memory_space<vmem>>, vector<1x1x32xf32>
    %207 = vector.shape_cast %206 : vector<1x1x32xf32> to vector<1x32xf32>
    %cst_73 = arith.constant dense<0.000000e+00> : vector<16xf32>
    %208 = vector.multi_reduction <add>, %203, %cst_73 [1] : vector<16x32xf32> to vector<16xf32>
    %209 = vector.shape_cast %208 : vector<16xf32> to vector<16x1xf32>
    %cst_74 = arith.constant 3.200000e+01 : f32
    %210 = vector.broadcast %cst_74 : f32 to vector<16x1xf32>
    %211 = arith.divf %209, %210 : vector<16x1xf32>
    %212 = vector.broadcast %211 : vector<16x1xf32> to vector<16x32xf32>
    %213 = arith.subf %203, %212 : vector<16x32xf32>
    %214 = arith.mulf %213, %213 : vector<16x32xf32>
    %cst_75 = arith.constant dense<0.000000e+00> : vector<16xf32>
    %215 = vector.multi_reduction <add>, %214, %cst_75 [1] : vector<16x32xf32> to vector<16xf32>
    %216 = vector.shape_cast %215 : vector<16xf32> to vector<16x1xf32>
    %cst_76 = arith.constant 3.200000e+01 : f32
    %217 = vector.broadcast %cst_76 : f32 to vector<16x1xf32>
    %218 = arith.divf %216, %217 : vector<16x1xf32>
    %219 = vector.broadcast %211 : vector<16x1xf32> to vector<16x32xf32>
    %220 = arith.subf %203, %219 : vector<16x32xf32>
    %cst_77 = arith.constant 9.99999996E-13 : f32
    %221 = vector.broadcast %cst_77 : f32 to vector<16x1xf32>
    %222 = arith.addf %218, %221 : vector<16x1xf32>
    %223 = math.rsqrt %222 : vector<16x1xf32>
    %224 = vector.broadcast %223 : vector<16x1xf32> to vector<16x32xf32>
    %225 = arith.mulf %220, %224 : vector<16x32xf32>
    %226 = vector.broadcast %205 : vector<1x32xf32> to vector<16x32xf32>
    %227 = arith.mulf %225, %226 : vector<16x32xf32>
    %228 = vector.broadcast %207 : vector<1x32xf32> to vector<16x32xf32>
    %229 = arith.addf %227, %228 : vector<16x32xf32>
    %c0_78 = arith.constant 0 : index
    %c0_79 = arith.constant 0 : index
    %c0_80 = arith.constant 0 : index
    %230 = vector.load %arg13[%c0_78, %c0_79, %c0_80] : memref<2x32x64xf32, #tpu.memory_space<vmem>>, vector<1x32x64xf32>
    %231 = vector.shape_cast %230 : vector<1x32x64xf32> to vector<32x64xf32>
    %cst_81 = arith.constant dense<0.000000e+00> : vector<16x64xf32>
    %232 = tpu.matmul %229, %231, %cst_81 {dimension_numbers = #tpu.dot_dimension_numbers<[1], [0], [0], [1], [0, 0, 1, 1], [], []>} : vector<16x32xf32>, vector<32x64xf32>, vector<16x64xf32> -> vector<16x64xf32>
    %c0_82 = arith.constant 0 : index
    %c0_83 = arith.constant 0 : index
    %c0_84 = arith.constant 0 : index
    %233 = vector.load %arg14[%c0_82, %c0_83, %c0_84] : memref<2x1x64xf32, #tpu.memory_space<vmem>>, vector<1x1x64xf32>
    %234 = vector.shape_cast %233 : vector<1x1x64xf32> to vector<1x64xf32>
    %235 = vector.broadcast %234 : vector<1x64xf32> to vector<16x64xf32>
    %236 = arith.addf %232, %235 : vector<16x64xf32>
    %cst_85 = arith.constant 5.000000e-01 : f32
    %237 = vector.broadcast %cst_85 : f32 to vector<16x64xf32>
    %238 = arith.mulf %237, %236 : vector<16x64xf32>
    %cst_86 = arith.constant 4.471500e-02 : f32
    %239 = vector.broadcast %cst_86 : f32 to vector<16x64xf32>
    %240 = arith.mulf %239, %236 : vector<16x64xf32>
    %241 = arith.mulf %240, %236 : vector<16x64xf32>
    %242 = arith.mulf %241, %236 : vector<16x64xf32>
    %243 = arith.addf %236, %242 : vector<16x64xf32>
    %cst_87 = arith.constant 0.797884583 : f32
    %244 = vector.broadcast %cst_87 : f32 to vector<16x64xf32>
    %245 = arith.mulf %244, %243 : vector<16x64xf32>
    %246 = math.tanh %245 : vector<16x64xf32>
    %cst_88 = arith.constant 1.000000e+00 : f32
    %247 = vector.broadcast %cst_88 : f32 to vector<16x64xf32>
    %248 = arith.addf %247, %246 : vector<16x64xf32>
    %249 = arith.mulf %238, %248 : vector<16x64xf32>
    %c0_89 = arith.constant 0 : index
    %c0_90 = arith.constant 0 : index
    %c0_91 = arith.constant 0 : index
    %250 = vector.load %arg15[%c0_89, %c0_90, %c0_91] : memref<2x64x32xf32, #tpu.memory_space<vmem>>, vector<1x64x32xf32>
    %251 = vector.shape_cast %250 : vector<1x64x32xf32> to vector<64x32xf32>
    %cst_92 = arith.constant dense<0.000000e+00> : vector<16x32xf32>
    %252 = tpu.matmul %249, %251, %cst_92 {dimension_numbers = #tpu.dot_dimension_numbers<[1], [0], [0], [1], [0, 0, 1, 1], [], []>} : vector<16x64xf32>, vector<64x32xf32>, vector<16x32xf32> -> vector<16x32xf32>
    %c0_93 = arith.constant 0 : index
    %c0_94 = arith.constant 0 : index
    %c0_95 = arith.constant 0 : index
    %253 = vector.load %arg16[%c0_93, %c0_94, %c0_95] : memref<2x1x32xf32, #tpu.memory_space<vmem>>, vector<1x1x32xf32>
    %254 = vector.shape_cast %253 : vector<1x1x32xf32> to vector<1x32xf32>
    %255 = vector.broadcast %254 : vector<1x32xf32> to vector<16x32xf32>
    %256 = arith.addf %252, %255 : vector<16x32xf32>
    %257 = arith.addf %256, %229 : vector<16x32xf32>
    %c0_96 = arith.constant 0 : index
    %c0_97 = arith.constant 0 : index
    %c0_98 = arith.constant 0 : index
    %258 = vector.load %arg17[%c0_96, %c0_97, %c0_98] : memref<2x1x32xf32, #tpu.memory_space<vmem>>, vector<1x1x32xf32>
    %259 = vector.shape_cast %258 : vector<1x1x32xf32> to vector<1x32xf32>
    %c0_99 = arith.constant 0 : index
    %c0_100 = arith.constant 0 : index
    %c0_101 = arith.constant 0 : index
    %260 = vector.load %arg18[%c0_99, %c0_100, %c0_101] : memref<2x1x32xf32, #tpu.memory_space<vmem>>, vector<1x1x32xf32>
    %261 = vector.shape_cast %260 : vector<1x1x32xf32> to vector<1x32xf32>
    %cst_102 = arith.constant dense<0.000000e+00> : vector<16xf32>
    %262 = vector.multi_reduction <add>, %257, %cst_102 [1] : vector<16x32xf32> to vector<16xf32>
    %263 = vector.shape_cast %262 : vector<16xf32> to vector<16x1xf32>
    %cst_103 = arith.constant 3.200000e+01 : f32
    %264 = vector.broadcast %cst_103 : f32 to vector<16x1xf32>
    %265 = arith.divf %263, %264 : vector<16x1xf32>
    %266 = vector.broadcast %265 : vector<16x1xf32> to vector<16x32xf32>
    %267 = arith.subf %257, %266 : vector<16x32xf32>
    %268 = arith.mulf %267, %267 : vector<16x32xf32>
    %cst_104 = arith.constant dense<0.000000e+00> : vector<16xf32>
    %269 = vector.multi_reduction <add>, %268, %cst_104 [1] : vector<16x32xf32> to vector<16xf32>
    %270 = vector.shape_cast %269 : vector<16xf32> to vector<16x1xf32>
    %cst_105 = arith.constant 3.200000e+01 : f32
    %271 = vector.broadcast %cst_105 : f32 to vector<16x1xf32>
    %272 = arith.divf %270, %271 : vector<16x1xf32>
    %273 = vector.broadcast %265 : vector<16x1xf32> to vector<16x32xf32>
    %274 = arith.subf %257, %273 : vector<16x32xf32>
    %cst_106 = arith.constant 9.99999996E-13 : f32
    %275 = vector.broadcast %cst_106 : f32 to vector<16x1xf32>
    %276 = arith.addf %272, %275 : vector<16x1xf32>
    %277 = math.rsqrt %276 : vector<16x1xf32>
    %278 = vector.broadcast %277 : vector<16x1xf32> to vector<16x32xf32>
    %279 = arith.mulf %274, %278 : vector<16x32xf32>
    %280 = vector.broadcast %259 : vector<1x32xf32> to vector<16x32xf32>
    %281 = arith.mulf %279, %280 : vector<16x32xf32>
    %282 = vector.broadcast %261 : vector<1x32xf32> to vector<16x32xf32>
    %283 = arith.addf %281, %282 : vector<16x32xf32>
    %c1 = arith.constant 1 : index
    %c0_107 = arith.constant 0 : index
    %c0_108 = arith.constant 0 : index
    %284 = vector.load %arg7[%c1, %c0_107, %c0_108] : memref<2x32x96xf32, #tpu.memory_space<vmem>>, vector<1x32x96xf32>
    %285 = vector.shape_cast %284 : vector<1x32x96xf32> to vector<32x96xf32>
    %cst_109 = arith.constant dense<0.000000e+00> : vector<16x96xf32>
    %286 = tpu.matmul %283, %285, %cst_109 {dimension_numbers = #tpu.dot_dimension_numbers<[1], [0], [0], [1], [0, 0, 1, 1], [], []>} : vector<16x32xf32>, vector<32x96xf32>, vector<16x96xf32> -> vector<16x96xf32>
    %c1_110 = arith.constant 1 : index
    %c0_111 = arith.constant 0 : index
    %c0_112 = arith.constant 0 : index
    %287 = vector.load %arg8[%c1_110, %c0_111, %c0_112] : memref<2x1x96xf32, #tpu.memory_space<vmem>>, vector<1x1x96xf32>
    %288 = vector.shape_cast %287 : vector<1x1x96xf32> to vector<1x96xf32>
    %289 = vector.broadcast %288 : vector<1x96xf32> to vector<16x96xf32>
    %290 = arith.addf %286, %289 : vector<16x96xf32>
    %291 = vector.extract_strided_slice %290 {offsets = [0, 0], sizes = [16, 32], strides = [1, 1]} : vector<16x96xf32> to vector<16x32xf32>
    %cst_113 = arith.constant 0.353553385 : f32
    %292 = vector.broadcast %cst_113 : f32 to vector<16x32xf32>
    %293 = arith.mulf %291, %292 : vector<16x32xf32>
    %294 = vector.extract_strided_slice %290 {offsets = [0, 32], sizes = [16, 32], strides = [1, 1]} : vector<16x96xf32> to vector<16x32xf32>
    %295 = vector.extract_strided_slice %290 {offsets = [0, 64], sizes = [16, 32], strides = [1, 1]} : vector<16x96xf32> to vector<16x32xf32>
    %296 = vector.extract_strided_slice %42 {offsets = [0, 0], sizes = [1, 8], strides = [1, 1]} : vector<2x8xf32> to vector<1x8xf32>
    %297 = vector.extract_strided_slice %293 {offsets = [0, 0], sizes = [8, 8], strides = [1, 1]} : vector<16x32xf32> to vector<8x8xf32>
    %298 = vector.extract_strided_slice %294 {offsets = [0, 0], sizes = [8, 8], strides = [1, 1]} : vector<16x32xf32> to vector<8x8xf32>
    %299 = vector.extract_strided_slice %295 {offsets = [0, 0], sizes = [8, 8], strides = [1, 1]} : vector<16x32xf32> to vector<8x8xf32>
    %cst_114 = arith.constant dense<0.000000e+00> : vector<8x8xf32>
    %300 = tpu.matmul %297, %298, %cst_114 {dimension_numbers = #tpu.dot_dimension_numbers<[1], [1], [0], [0], [0, 0, 1, 0], [], []>} : vector<8x8xf32>, vector<8x8xf32>, vector<8x8xf32> -> vector<8x8xf32>
    %301 = vector.broadcast %296 : vector<1x8xf32> to vector<8x8xf32>
    %302 = arith.addf %300, %301 : vector<8x8xf32>
    %cst_115 = arith.constant dense<0xFF800000> : vector<8xf32>
    %303 = vector.multi_reduction <maximumf>, %302, %cst_115 [1] : vector<8x8xf32> to vector<8xf32>
    %304 = vector.shape_cast %303 : vector<8xf32> to vector<8x1xf32>
    %305 = vector.broadcast %304 : vector<8x1xf32> to vector<8x8xf32>
    %306 = arith.subf %302, %305 : vector<8x8xf32>
    %307 = math.exp %306 : vector<8x8xf32>
    %cst_116 = arith.constant dense<0.000000e+00> : vector<8xf32>
    %308 = vector.multi_reduction <add>, %307, %cst_116 [1] : vector<8x8xf32> to vector<8xf32>
    %309 = vector.shape_cast %308 : vector<8xf32> to vector<8x1xf32>
    %310 = tpu.reciprocal %309 {approx = true} : vector<8x1xf32> -> vector<8x1xf32>
    %311 = vector.broadcast %310 : vector<8x1xf32> to vector<8x8xf32>
    %312 = arith.mulf %307, %311 : vector<8x8xf32>
    %cst_117 = arith.constant dense<0.000000e+00> : vector<8x8xf32>
    %313 = tpu.matmul %312, %299, %cst_117 {dimension_numbers = #tpu.dot_dimension_numbers<[1], [0], [0], [1], [0, 0, 1, 1], [], []>} : vector<8x8xf32>, vector<8x8xf32>, vector<8x8xf32> -> vector<8x8xf32>
    %314 = vector.extract_strided_slice %293 {offsets = [0, 8], sizes = [8, 8], strides = [1, 1]} : vector<16x32xf32> to vector<8x8xf32>
    %315 = vector.extract_strided_slice %294 {offsets = [0, 8], sizes = [8, 8], strides = [1, 1]} : vector<16x32xf32> to vector<8x8xf32>
    %316 = vector.extract_strided_slice %295 {offsets = [0, 8], sizes = [8, 8], strides = [1, 1]} : vector<16x32xf32> to vector<8x8xf32>
    %cst_118 = arith.constant dense<0.000000e+00> : vector<8x8xf32>
    %317 = tpu.matmul %314, %315, %cst_118 {dimension_numbers = #tpu.dot_dimension_numbers<[1], [1], [0], [0], [0, 0, 1, 0], [], []>} : vector<8x8xf32>, vector<8x8xf32>, vector<8x8xf32> -> vector<8x8xf32>
    %318 = vector.broadcast %296 : vector<1x8xf32> to vector<8x8xf32>
    %319 = arith.addf %317, %318 : vector<8x8xf32>
    %cst_119 = arith.constant dense<0xFF800000> : vector<8xf32>
    %320 = vector.multi_reduction <maximumf>, %319, %cst_119 [1] : vector<8x8xf32> to vector<8xf32>
    %321 = vector.shape_cast %320 : vector<8xf32> to vector<8x1xf32>
    %322 = vector.broadcast %321 : vector<8x1xf32> to vector<8x8xf32>
    %323 = arith.subf %319, %322 : vector<8x8xf32>
    %324 = math.exp %323 : vector<8x8xf32>
    %cst_120 = arith.constant dense<0.000000e+00> : vector<8xf32>
    %325 = vector.multi_reduction <add>, %324, %cst_120 [1] : vector<8x8xf32> to vector<8xf32>
    %326 = vector.shape_cast %325 : vector<8xf32> to vector<8x1xf32>
    %327 = tpu.reciprocal %326 {approx = true} : vector<8x1xf32> -> vector<8x1xf32>
    %328 = vector.broadcast %327 : vector<8x1xf32> to vector<8x8xf32>
    %329 = arith.mulf %324, %328 : vector<8x8xf32>
    %cst_121 = arith.constant dense<0.000000e+00> : vector<8x8xf32>
    %330 = tpu.matmul %329, %316, %cst_121 {dimension_numbers = #tpu.dot_dimension_numbers<[1], [0], [0], [1], [0, 0, 1, 1], [], []>} : vector<8x8xf32>, vector<8x8xf32>, vector<8x8xf32> -> vector<8x8xf32>
    %331 = vector.extract_strided_slice %293 {offsets = [0, 16], sizes = [8, 8], strides = [1, 1]} : vector<16x32xf32> to vector<8x8xf32>
    %332 = vector.extract_strided_slice %294 {offsets = [0, 16], sizes = [8, 8], strides = [1, 1]} : vector<16x32xf32> to vector<8x8xf32>
    %333 = vector.extract_strided_slice %295 {offsets = [0, 16], sizes = [8, 8], strides = [1, 1]} : vector<16x32xf32> to vector<8x8xf32>
    %cst_122 = arith.constant dense<0.000000e+00> : vector<8x8xf32>
    %334 = tpu.matmul %331, %332, %cst_122 {dimension_numbers = #tpu.dot_dimension_numbers<[1], [1], [0], [0], [0, 0, 1, 0], [], []>} : vector<8x8xf32>, vector<8x8xf32>, vector<8x8xf32> -> vector<8x8xf32>
    %335 = vector.broadcast %296 : vector<1x8xf32> to vector<8x8xf32>
    %336 = arith.addf %334, %335 : vector<8x8xf32>
    %cst_123 = arith.constant dense<0xFF800000> : vector<8xf32>
    %337 = vector.multi_reduction <maximumf>, %336, %cst_123 [1] : vector<8x8xf32> to vector<8xf32>
    %338 = vector.shape_cast %337 : vector<8xf32> to vector<8x1xf32>
    %339 = vector.broadcast %338 : vector<8x1xf32> to vector<8x8xf32>
    %340 = arith.subf %336, %339 : vector<8x8xf32>
    %341 = math.exp %340 : vector<8x8xf32>
    %cst_124 = arith.constant dense<0.000000e+00> : vector<8xf32>
    %342 = vector.multi_reduction <add>, %341, %cst_124 [1] : vector<8x8xf32> to vector<8xf32>
    %343 = vector.shape_cast %342 : vector<8xf32> to vector<8x1xf32>
    %344 = tpu.reciprocal %343 {approx = true} : vector<8x1xf32> -> vector<8x1xf32>
    %345 = vector.broadcast %344 : vector<8x1xf32> to vector<8x8xf32>
    %346 = arith.mulf %341, %345 : vector<8x8xf32>
    %cst_125 = arith.constant dense<0.000000e+00> : vector<8x8xf32>
    %347 = tpu.matmul %346, %333, %cst_125 {dimension_numbers = #tpu.dot_dimension_numbers<[1], [0], [0], [1], [0, 0, 1, 1], [], []>} : vector<8x8xf32>, vector<8x8xf32>, vector<8x8xf32> -> vector<8x8xf32>
    %348 = vector.extract_strided_slice %293 {offsets = [0, 24], sizes = [8, 8], strides = [1, 1]} : vector<16x32xf32> to vector<8x8xf32>
    %349 = vector.extract_strided_slice %294 {offsets = [0, 24], sizes = [8, 8], strides = [1, 1]} : vector<16x32xf32> to vector<8x8xf32>
    %350 = vector.extract_strided_slice %295 {offsets = [0, 24], sizes = [8, 8], strides = [1, 1]} : vector<16x32xf32> to vector<8x8xf32>
    %cst_126 = arith.constant dense<0.000000e+00> : vector<8x8xf32>
    %351 = tpu.matmul %348, %349, %cst_126 {dimension_numbers = #tpu.dot_dimension_numbers<[1], [1], [0], [0], [0, 0, 1, 0], [], []>} : vector<8x8xf32>, vector<8x8xf32>, vector<8x8xf32> -> vector<8x8xf32>
    %352 = vector.broadcast %296 : vector<1x8xf32> to vector<8x8xf32>
    %353 = arith.addf %351, %352 : vector<8x8xf32>
    %cst_127 = arith.constant dense<0xFF800000> : vector<8xf32>
    %354 = vector.multi_reduction <maximumf>, %353, %cst_127 [1] : vector<8x8xf32> to vector<8xf32>
    %355 = vector.shape_cast %354 : vector<8xf32> to vector<8x1xf32>
    %356 = vector.broadcast %355 : vector<8x1xf32> to vector<8x8xf32>
    %357 = arith.subf %353, %356 : vector<8x8xf32>
    %358 = math.exp %357 : vector<8x8xf32>
    %cst_128 = arith.constant dense<0.000000e+00> : vector<8xf32>
    %359 = vector.multi_reduction <add>, %358, %cst_128 [1] : vector<8x8xf32> to vector<8xf32>
    %360 = vector.shape_cast %359 : vector<8xf32> to vector<8x1xf32>
    %361 = tpu.reciprocal %360 {approx = true} : vector<8x1xf32> -> vector<8x1xf32>
    %362 = vector.broadcast %361 : vector<8x1xf32> to vector<8x8xf32>
    %363 = arith.mulf %358, %362 : vector<8x8xf32>
    %cst_129 = arith.constant dense<0.000000e+00> : vector<8x8xf32>
    %364 = tpu.matmul %363, %350, %cst_129 {dimension_numbers = #tpu.dot_dimension_numbers<[1], [0], [0], [1], [0, 0, 1, 1], [], []>} : vector<8x8xf32>, vector<8x8xf32>, vector<8x8xf32> -> vector<8x8xf32>
    %365 = tpu.concatenate %313, %330, %347, %364 in 1 : vector<8x8xf32>, vector<8x8xf32>, vector<8x8xf32>, vector<8x8xf32> -> vector<8x32xf32>
    %366 = vector.extract_strided_slice %42 {offsets = [1, 0], sizes = [1, 8], strides = [1, 1]} : vector<2x8xf32> to vector<1x8xf32>
    %367 = vector.extract_strided_slice %293 {offsets = [8, 0], sizes = [8, 8], strides = [1, 1]} : vector<16x32xf32> to vector<8x8xf32>
    %368 = vector.extract_strided_slice %294 {offsets = [8, 0], sizes = [8, 8], strides = [1, 1]} : vector<16x32xf32> to vector<8x8xf32>
    %369 = vector.extract_strided_slice %295 {offsets = [8, 0], sizes = [8, 8], strides = [1, 1]} : vector<16x32xf32> to vector<8x8xf32>
    %cst_130 = arith.constant dense<0.000000e+00> : vector<8x8xf32>
    %370 = tpu.matmul %367, %368, %cst_130 {dimension_numbers = #tpu.dot_dimension_numbers<[1], [1], [0], [0], [0, 0, 1, 0], [], []>} : vector<8x8xf32>, vector<8x8xf32>, vector<8x8xf32> -> vector<8x8xf32>
    %371 = vector.broadcast %366 : vector<1x8xf32> to vector<8x8xf32>
    %372 = arith.addf %370, %371 : vector<8x8xf32>
    %cst_131 = arith.constant dense<0xFF800000> : vector<8xf32>
    %373 = vector.multi_reduction <maximumf>, %372, %cst_131 [1] : vector<8x8xf32> to vector<8xf32>
    %374 = vector.shape_cast %373 : vector<8xf32> to vector<8x1xf32>
    %375 = vector.broadcast %374 : vector<8x1xf32> to vector<8x8xf32>
    %376 = arith.subf %372, %375 : vector<8x8xf32>
    %377 = math.exp %376 : vector<8x8xf32>
    %cst_132 = arith.constant dense<0.000000e+00> : vector<8xf32>
    %378 = vector.multi_reduction <add>, %377, %cst_132 [1] : vector<8x8xf32> to vector<8xf32>
    %379 = vector.shape_cast %378 : vector<8xf32> to vector<8x1xf32>
    %380 = tpu.reciprocal %379 {approx = true} : vector<8x1xf32> -> vector<8x1xf32>
    %381 = vector.broadcast %380 : vector<8x1xf32> to vector<8x8xf32>
    %382 = arith.mulf %377, %381 : vector<8x8xf32>
    %cst_133 = arith.constant dense<0.000000e+00> : vector<8x8xf32>
    %383 = tpu.matmul %382, %369, %cst_133 {dimension_numbers = #tpu.dot_dimension_numbers<[1], [0], [0], [1], [0, 0, 1, 1], [], []>} : vector<8x8xf32>, vector<8x8xf32>, vector<8x8xf32> -> vector<8x8xf32>
    %384 = vector.extract_strided_slice %293 {offsets = [8, 8], sizes = [8, 8], strides = [1, 1]} : vector<16x32xf32> to vector<8x8xf32>
    %385 = vector.extract_strided_slice %294 {offsets = [8, 8], sizes = [8, 8], strides = [1, 1]} : vector<16x32xf32> to vector<8x8xf32>
    %386 = vector.extract_strided_slice %295 {offsets = [8, 8], sizes = [8, 8], strides = [1, 1]} : vector<16x32xf32> to vector<8x8xf32>
    %cst_134 = arith.constant dense<0.000000e+00> : vector<8x8xf32>
    %387 = tpu.matmul %384, %385, %cst_134 {dimension_numbers = #tpu.dot_dimension_numbers<[1], [1], [0], [0], [0, 0, 1, 0], [], []>} : vector<8x8xf32>, vector<8x8xf32>, vector<8x8xf32> -> vector<8x8xf32>
    %388 = vector.broadcast %366 : vector<1x8xf32> to vector<8x8xf32>
    %389 = arith.addf %387, %388 : vector<8x8xf32>
    %cst_135 = arith.constant dense<0xFF800000> : vector<8xf32>
    %390 = vector.multi_reduction <maximumf>, %389, %cst_135 [1] : vector<8x8xf32> to vector<8xf32>
    %391 = vector.shape_cast %390 : vector<8xf32> to vector<8x1xf32>
    %392 = vector.broadcast %391 : vector<8x1xf32> to vector<8x8xf32>
    %393 = arith.subf %389, %392 : vector<8x8xf32>
    %394 = math.exp %393 : vector<8x8xf32>
    %cst_136 = arith.constant dense<0.000000e+00> : vector<8xf32>
    %395 = vector.multi_reduction <add>, %394, %cst_136 [1] : vector<8x8xf32> to vector<8xf32>
    %396 = vector.shape_cast %395 : vector<8xf32> to vector<8x1xf32>
    %397 = tpu.reciprocal %396 {approx = true} : vector<8x1xf32> -> vector<8x1xf32>
    %398 = vector.broadcast %397 : vector<8x1xf32> to vector<8x8xf32>
    %399 = arith.mulf %394, %398 : vector<8x8xf32>
    %cst_137 = arith.constant dense<0.000000e+00> : vector<8x8xf32>
    %400 = tpu.matmul %399, %386, %cst_137 {dimension_numbers = #tpu.dot_dimension_numbers<[1], [0], [0], [1], [0, 0, 1, 1], [], []>} : vector<8x8xf32>, vector<8x8xf32>, vector<8x8xf32> -> vector<8x8xf32>
    %401 = vector.extract_strided_slice %293 {offsets = [8, 16], sizes = [8, 8], strides = [1, 1]} : vector<16x32xf32> to vector<8x8xf32>
    %402 = vector.extract_strided_slice %294 {offsets = [8, 16], sizes = [8, 8], strides = [1, 1]} : vector<16x32xf32> to vector<8x8xf32>
    %403 = vector.extract_strided_slice %295 {offsets = [8, 16], sizes = [8, 8], strides = [1, 1]} : vector<16x32xf32> to vector<8x8xf32>
    %cst_138 = arith.constant dense<0.000000e+00> : vector<8x8xf32>
    %404 = tpu.matmul %401, %402, %cst_138 {dimension_numbers = #tpu.dot_dimension_numbers<[1], [1], [0], [0], [0, 0, 1, 0], [], []>} : vector<8x8xf32>, vector<8x8xf32>, vector<8x8xf32> -> vector<8x8xf32>
    %405 = vector.broadcast %366 : vector<1x8xf32> to vector<8x8xf32>
    %406 = arith.addf %404, %405 : vector<8x8xf32>
    %cst_139 = arith.constant dense<0xFF800000> : vector<8xf32>
    %407 = vector.multi_reduction <maximumf>, %406, %cst_139 [1] : vector<8x8xf32> to vector<8xf32>
    %408 = vector.shape_cast %407 : vector<8xf32> to vector<8x1xf32>
    %409 = vector.broadcast %408 : vector<8x1xf32> to vector<8x8xf32>
    %410 = arith.subf %406, %409 : vector<8x8xf32>
    %411 = math.exp %410 : vector<8x8xf32>
    %cst_140 = arith.constant dense<0.000000e+00> : vector<8xf32>
    %412 = vector.multi_reduction <add>, %411, %cst_140 [1] : vector<8x8xf32> to vector<8xf32>
    %413 = vector.shape_cast %412 : vector<8xf32> to vector<8x1xf32>
    %414 = tpu.reciprocal %413 {approx = true} : vector<8x1xf32> -> vector<8x1xf32>
    %415 = vector.broadcast %414 : vector<8x1xf32> to vector<8x8xf32>
    %416 = arith.mulf %411, %415 : vector<8x8xf32>
    %cst_141 = arith.constant dense<0.000000e+00> : vector<8x8xf32>
    %417 = tpu.matmul %416, %403, %cst_141 {dimension_numbers = #tpu.dot_dimension_numbers<[1], [0], [0], [1], [0, 0, 1, 1], [], []>} : vector<8x8xf32>, vector<8x8xf32>, vector<8x8xf32> -> vector<8x8xf32>
    %418 = vector.extract_strided_slice %293 {offsets = [8, 24], sizes = [8, 8], strides = [1, 1]} : vector<16x32xf32> to vector<8x8xf32>
    %419 = vector.extract_strided_slice %294 {offsets = [8, 24], sizes = [8, 8], strides = [1, 1]} : vector<16x32xf32> to vector<8x8xf32>
    %420 = vector.extract_strided_slice %295 {offsets = [8, 24], sizes = [8, 8], strides = [1, 1]} : vector<16x32xf32> to vector<8x8xf32>
    %cst_142 = arith.constant dense<0.000000e+00> : vector<8x8xf32>
    %421 = tpu.matmul %418, %419, %cst_142 {dimension_numbers = #tpu.dot_dimension_numbers<[1], [1], [0], [0], [0, 0, 1, 0], [], []>} : vector<8x8xf32>, vector<8x8xf32>, vector<8x8xf32> -> vector<8x8xf32>
    %422 = vector.broadcast %366 : vector<1x8xf32> to vector<8x8xf32>
    %423 = arith.addf %421, %422 : vector<8x8xf32>
    %cst_143 = arith.constant dense<0xFF800000> : vector<8xf32>
    %424 = vector.multi_reduction <maximumf>, %423, %cst_143 [1] : vector<8x8xf32> to vector<8xf32>
    %425 = vector.shape_cast %424 : vector<8xf32> to vector<8x1xf32>
    %426 = vector.broadcast %425 : vector<8x1xf32> to vector<8x8xf32>
    %427 = arith.subf %423, %426 : vector<8x8xf32>
    %428 = math.exp %427 : vector<8x8xf32>
    %cst_144 = arith.constant dense<0.000000e+00> : vector<8xf32>
    %429 = vector.multi_reduction <add>, %428, %cst_144 [1] : vector<8x8xf32> to vector<8xf32>
    %430 = vector.shape_cast %429 : vector<8xf32> to vector<8x1xf32>
    %431 = tpu.reciprocal %430 {approx = true} : vector<8x1xf32> -> vector<8x1xf32>
    %432 = vector.broadcast %431 : vector<8x1xf32> to vector<8x8xf32>
    %433 = arith.mulf %428, %432 : vector<8x8xf32>
    %cst_145 = arith.constant dense<0.000000e+00> : vector<8x8xf32>
    %434 = tpu.matmul %433, %420, %cst_145 {dimension_numbers = #tpu.dot_dimension_numbers<[1], [0], [0], [1], [0, 0, 1, 1], [], []>} : vector<8x8xf32>, vector<8x8xf32>, vector<8x8xf32> -> vector<8x8xf32>
    %435 = tpu.concatenate %383, %400, %417, %434 in 1 : vector<8x8xf32>, vector<8x8xf32>, vector<8x8xf32>, vector<8x8xf32> -> vector<8x32xf32>
    %436 = tpu.concatenate %365, %435 in 0 : vector<8x32xf32>, vector<8x32xf32> -> vector<16x32xf32>
    %c1_146 = arith.constant 1 : index
    %c0_147 = arith.constant 0 : index
    %c0_148 = arith.constant 0 : index
    %437 = vector.load %arg9[%c1_146, %c0_147, %c0_148] : memref<2x32x32xf32, #tpu.memory_space<vmem>>, vector<1x32x32xf32>
    %438 = vector.shape_cast %437 : vector<1x32x32xf32> to vector<32x32xf32>
    %cst_149 = arith.constant dense<0.000000e+00> : vector<16x32xf32>
    %439 = tpu.matmul %436, %438, %cst_149 {dimension_numbers = #tpu.dot_dimension_numbers<[1], [0], [0], [1], [0, 0, 1, 1], [], []>} : vector<16x32xf32>, vector<32x32xf32>, vector<16x32xf32> -> vector<16x32xf32>
    %c1_150 = arith.constant 1 : index
    %c0_151 = arith.constant 0 : index
    %c0_152 = arith.constant 0 : index
    %440 = vector.load %arg10[%c1_150, %c0_151, %c0_152] : memref<2x1x32xf32, #tpu.memory_space<vmem>>, vector<1x1x32xf32>
    %441 = vector.shape_cast %440 : vector<1x1x32xf32> to vector<1x32xf32>
    %442 = vector.broadcast %441 : vector<1x32xf32> to vector<16x32xf32>
    %443 = arith.addf %439, %442 : vector<16x32xf32>
    %444 = arith.addf %443, %283 : vector<16x32xf32>
    %c1_153 = arith.constant 1 : index
    %c0_154 = arith.constant 0 : index
    %c0_155 = arith.constant 0 : index
    %445 = vector.load %arg11[%c1_153, %c0_154, %c0_155] : memref<2x1x32xf32, #tpu.memory_space<vmem>>, vector<1x1x32xf32>
    %446 = vector.shape_cast %445 : vector<1x1x32xf32> to vector<1x32xf32>
    %c1_156 = arith.constant 1 : index
    %c0_157 = arith.constant 0 : index
    %c0_158 = arith.constant 0 : index
    %447 = vector.load %arg12[%c1_156, %c0_157, %c0_158] : memref<2x1x32xf32, #tpu.memory_space<vmem>>, vector<1x1x32xf32>
    %448 = vector.shape_cast %447 : vector<1x1x32xf32> to vector<1x32xf32>
    %cst_159 = arith.constant dense<0.000000e+00> : vector<16xf32>
    %449 = vector.multi_reduction <add>, %444, %cst_159 [1] : vector<16x32xf32> to vector<16xf32>
    %450 = vector.shape_cast %449 : vector<16xf32> to vector<16x1xf32>
    %cst_160 = arith.constant 3.200000e+01 : f32
    %451 = vector.broadcast %cst_160 : f32 to vector<16x1xf32>
    %452 = arith.divf %450, %451 : vector<16x1xf32>
    %453 = vector.broadcast %452 : vector<16x1xf32> to vector<16x32xf32>
    %454 = arith.subf %444, %453 : vector<16x32xf32>
    %455 = arith.mulf %454, %454 : vector<16x32xf32>
    %cst_161 = arith.constant dense<0.000000e+00> : vector<16xf32>
    %456 = vector.multi_reduction <add>, %455, %cst_161 [1] : vector<16x32xf32> to vector<16xf32>
    %457 = vector.shape_cast %456 : vector<16xf32> to vector<16x1xf32>
    %cst_162 = arith.constant 3.200000e+01 : f32
    %458 = vector.broadcast %cst_162 : f32 to vector<16x1xf32>
    %459 = arith.divf %457, %458 : vector<16x1xf32>
    %460 = vector.broadcast %452 : vector<16x1xf32> to vector<16x32xf32>
    %461 = arith.subf %444, %460 : vector<16x32xf32>
    %cst_163 = arith.constant 9.99999996E-13 : f32
    %462 = vector.broadcast %cst_163 : f32 to vector<16x1xf32>
    %463 = arith.addf %459, %462 : vector<16x1xf32>
    %464 = math.rsqrt %463 : vector<16x1xf32>
    %465 = vector.broadcast %464 : vector<16x1xf32> to vector<16x32xf32>
    %466 = arith.mulf %461, %465 : vector<16x32xf32>
    %467 = vector.broadcast %446 : vector<1x32xf32> to vector<16x32xf32>
    %468 = arith.mulf %466, %467 : vector<16x32xf32>
    %469 = vector.broadcast %448 : vector<1x32xf32> to vector<16x32xf32>
    %470 = arith.addf %468, %469 : vector<16x32xf32>
    %c1_164 = arith.constant 1 : index
    %c0_165 = arith.constant 0 : index
    %c0_166 = arith.constant 0 : index
    %471 = vector.load %arg13[%c1_164, %c0_165, %c0_166] : memref<2x32x64xf32, #tpu.memory_space<vmem>>, vector<1x32x64xf32>
    %472 = vector.shape_cast %471 : vector<1x32x64xf32> to vector<32x64xf32>
    %cst_167 = arith.constant dense<0.000000e+00> : vector<16x64xf32>
    %473 = tpu.matmul %470, %472, %cst_167 {dimension_numbers = #tpu.dot_dimension_numbers<[1], [0], [0], [1], [0, 0, 1, 1], [], []>} : vector<16x32xf32>, vector<32x64xf32>, vector<16x64xf32> -> vector<16x64xf32>
    %c1_168 = arith.constant 1 : index
    %c0_169 = arith.constant 0 : index
    %c0_170 = arith.constant 0 : index
    %474 = vector.load %arg14[%c1_168, %c0_169, %c0_170] : memref<2x1x64xf32, #tpu.memory_space<vmem>>, vector<1x1x64xf32>
    %475 = vector.shape_cast %474 : vector<1x1x64xf32> to vector<1x64xf32>
    %476 = vector.broadcast %475 : vector<1x64xf32> to vector<16x64xf32>
    %477 = arith.addf %473, %476 : vector<16x64xf32>
    %cst_171 = arith.constant 5.000000e-01 : f32
    %478 = vector.broadcast %cst_171 : f32 to vector<16x64xf32>
    %479 = arith.mulf %478, %477 : vector<16x64xf32>
    %cst_172 = arith.constant 4.471500e-02 : f32
    %480 = vector.broadcast %cst_172 : f32 to vector<16x64xf32>
    %481 = arith.mulf %480, %477 : vector<16x64xf32>
    %482 = arith.mulf %481, %477 : vector<16x64xf32>
    %483 = arith.mulf %482, %477 : vector<16x64xf32>
    %484 = arith.addf %477, %483 : vector<16x64xf32>
    %cst_173 = arith.constant 0.797884583 : f32
    %485 = vector.broadcast %cst_173 : f32 to vector<16x64xf32>
    %486 = arith.mulf %485, %484 : vector<16x64xf32>
    %487 = math.tanh %486 : vector<16x64xf32>
    %cst_174 = arith.constant 1.000000e+00 : f32
    %488 = vector.broadcast %cst_174 : f32 to vector<16x64xf32>
    %489 = arith.addf %488, %487 : vector<16x64xf32>
    %490 = arith.mulf %479, %489 : vector<16x64xf32>
    %c1_175 = arith.constant 1 : index
    %c0_176 = arith.constant 0 : index
    %c0_177 = arith.constant 0 : index
    %491 = vector.load %arg15[%c1_175, %c0_176, %c0_177] : memref<2x64x32xf32, #tpu.memory_space<vmem>>, vector<1x64x32xf32>
    %492 = vector.shape_cast %491 : vector<1x64x32xf32> to vector<64x32xf32>
    %cst_178 = arith.constant dense<0.000000e+00> : vector<16x32xf32>
    %493 = tpu.matmul %490, %492, %cst_178 {dimension_numbers = #tpu.dot_dimension_numbers<[1], [0], [0], [1], [0, 0, 1, 1], [], []>} : vector<16x64xf32>, vector<64x32xf32>, vector<16x32xf32> -> vector<16x32xf32>
    %c1_179 = arith.constant 1 : index
    %c0_180 = arith.constant 0 : index
    %c0_181 = arith.constant 0 : index
    %494 = vector.load %arg16[%c1_179, %c0_180, %c0_181] : memref<2x1x32xf32, #tpu.memory_space<vmem>>, vector<1x1x32xf32>
    %495 = vector.shape_cast %494 : vector<1x1x32xf32> to vector<1x32xf32>
    %496 = vector.broadcast %495 : vector<1x32xf32> to vector<16x32xf32>
    %497 = arith.addf %493, %496 : vector<16x32xf32>
    %498 = arith.addf %497, %470 : vector<16x32xf32>
    %c1_182 = arith.constant 1 : index
    %c0_183 = arith.constant 0 : index
    %c0_184 = arith.constant 0 : index
    %499 = vector.load %arg17[%c1_182, %c0_183, %c0_184] : memref<2x1x32xf32, #tpu.memory_space<vmem>>, vector<1x1x32xf32>
    %500 = vector.shape_cast %499 : vector<1x1x32xf32> to vector<1x32xf32>
    %c1_185 = arith.constant 1 : index
    %c0_186 = arith.constant 0 : index
    %c0_187 = arith.constant 0 : index
    %501 = vector.load %arg18[%c1_185, %c0_186, %c0_187] : memref<2x1x32xf32, #tpu.memory_space<vmem>>, vector<1x1x32xf32>
    %502 = vector.shape_cast %501 : vector<1x1x32xf32> to vector<1x32xf32>
    %cst_188 = arith.constant dense<0.000000e+00> : vector<16xf32>
    %503 = vector.multi_reduction <add>, %498, %cst_188 [1] : vector<16x32xf32> to vector<16xf32>
    %504 = vector.shape_cast %503 : vector<16xf32> to vector<16x1xf32>
    %cst_189 = arith.constant 3.200000e+01 : f32
    %505 = vector.broadcast %cst_189 : f32 to vector<16x1xf32>
    %506 = arith.divf %504, %505 : vector<16x1xf32>
    %507 = vector.broadcast %506 : vector<16x1xf32> to vector<16x32xf32>
    %508 = arith.subf %498, %507 : vector<16x32xf32>
    %509 = arith.mulf %508, %508 : vector<16x32xf32>
    %cst_190 = arith.constant dense<0.000000e+00> : vector<16xf32>
    %510 = vector.multi_reduction <add>, %509, %cst_190 [1] : vector<16x32xf32> to vector<16xf32>
    %511 = vector.shape_cast %510 : vector<16xf32> to vector<16x1xf32>
    %cst_191 = arith.constant 3.200000e+01 : f32
    %512 = vector.broadcast %cst_191 : f32 to vector<16x1xf32>
    %513 = arith.divf %511, %512 : vector<16x1xf32>
    %514 = vector.broadcast %506 : vector<16x1xf32> to vector<16x32xf32>
    %515 = arith.subf %498, %514 : vector<16x32xf32>
    %cst_192 = arith.constant 9.99999996E-13 : f32
    %516 = vector.broadcast %cst_192 : f32 to vector<16x1xf32>
    %517 = arith.addf %513, %516 : vector<16x1xf32>
    %518 = math.rsqrt %517 : vector<16x1xf32>
    %519 = vector.broadcast %518 : vector<16x1xf32> to vector<16x32xf32>
    %520 = arith.mulf %515, %519 : vector<16x32xf32>
    %521 = vector.broadcast %500 : vector<1x32xf32> to vector<16x32xf32>
    %522 = arith.mulf %520, %521 : vector<16x32xf32>
    %523 = vector.broadcast %502 : vector<1x32xf32> to vector<16x32xf32>
    %524 = arith.addf %522, %523 : vector<16x32xf32>
    %525 = vector.extract_strided_slice %524 {offsets = [0, 0], sizes = [1, 32], strides = [1, 1]} : vector<16x32xf32> to vector<1x32xf32>
    %526 = vector.extract_strided_slice %524 {offsets = [8, 0], sizes = [1, 32], strides = [1, 1]} : vector<16x32xf32> to vector<1x32xf32>
    %527 = tpu.concatenate %525, %526 in 0 : vector<1x32xf32>, vector<1x32xf32> -> vector<2x32xf32>
    %c0_193 = arith.constant 0 : index
    %c0_194 = arith.constant 0 : index
    %528 = vector.load %arg19[%c0_193, %c0_194] : memref<32x32xf32, #tpu.memory_space<vmem>>, vector<32x32xf32>
    %cst_195 = arith.constant dense<0.000000e+00> : vector<2x32xf32>
    %529 = tpu.matmul %527, %528, %cst_195 {dimension_numbers = #tpu.dot_dimension_numbers<[1], [0], [0], [1], [0, 0, 1, 1], [], []>} : vector<2x32xf32>, vector<32x32xf32>, vector<2x32xf32> -> vector<2x32xf32>
    %c0_196 = arith.constant 0 : index
    %c0_197 = arith.constant 0 : index
    %530 = vector.load %arg20[%c0_196, %c0_197] : memref<1x32xf32, #tpu.memory_space<vmem>>, vector<1x32xf32>
    %531 = vector.broadcast %530 : vector<1x32xf32> to vector<2x32xf32>
    %532 = arith.addf %529, %531 : vector<2x32xf32>
    %533 = math.tanh %532 : vector<2x32xf32>
    %c0_198 = arith.constant 0 : index
    %c0_199 = arith.constant 0 : index
    %534 = vector.load %arg21[%c0_198, %c0_199] : memref<32x4xf32, #tpu.memory_space<vmem>>, vector<32x4xf32>
    %cst_200 = arith.constant dense<0.000000e+00> : vector<2x4xf32>
    %535 = tpu.matmul %533, %534, %cst_200 {dimension_numbers = #tpu.dot_dimension_numbers<[1], [0], [0], [1], [0, 0, 1, 1], [], []>} : vector<2x32xf32>, vector<32x4xf32>, vector<2x4xf32> -> vector<2x4xf32>
    %c0_201 = arith.constant 0 : index
    %c0_202 = arith.constant 0 : index
    %536 = vector.load %arg22[%c0_201, %c0_202] : memref<1x4xf32, #tpu.memory_space<vmem>>, vector<1x4xf32>
    %537 = vector.broadcast %536 : vector<1x4xf32> to vector<2x4xf32>
    %538 = arith.addf %535, %537 : vector<2x4xf32>
    %c0_203 = arith.constant 0 : index
    %c0_204 = arith.constant 0 : index
    %539 = vector.load %arg23[%c0_203, %c0_204] : memref<2x4xf32, #tpu.memory_space<vmem>>, vector<2x4xf32>
    tpu.vector_store %arg23[%c0_203, %c0_204], %538 {strides = array<i32>} : memref<2x4xf32, #tpu.memory_space<vmem>>, vector<2x4xf32>,
    return
  }
}

</mosaic_0001>

<llo_original>
// kernel: bert_classifier_forward.1
$region0: #{bert_classifier_forward.1}
  #allocation0 [shape = 'u32[]', space=smem, size = 0x4, offset = 0x4, fixed_abs, tag = 'smem constant byte address 0x4 - core index']
  #allocation1 [shape = 'u32[144,128]{1,0:T(1,128)}', space=vmem, size = 0x12000, scoped, tag = 'internal scratch']
  %s0 = inlined_call_operand.vmem [shape: s32[16,1], index: 0, kind: input, shape index: {}]
  %s1 = inlined_call_operand.vmem [shape: f32[2,8], index: 1, kind: input, shape index: {}]
  %s2 = inlined_call_operand.vmem [shape: f32[100,32], index: 2, kind: input, shape index: {}]
  %s3 = inlined_call_operand.vmem [shape: f32[16,32], index: 3, kind: input, shape index: {}]
  %s4 = inlined_call_operand.vmem [shape: f32[2,32], index: 4, kind: input, shape index: {}]
  %s5 = inlined_call_operand.vmem [shape: f32[1,32], index: 5, kind: input, shape index: {}]
  %s6 = inlined_call_operand.vmem [shape: f32[1,32], index: 6, kind: input, shape index: {}]
  %s7 = inlined_call_operand.vmem [shape: f32[2,32,96], index: 7, kind: input, shape index: {}]
  %s8 = inlined_call_operand.vmem [shape: f32[2,1,96], index: 8, kind: input, shape index: {}]
  %s9 = inlined_call_operand.vmem [shape: f32[2,32,32], index: 9, kind: input, shape index: {}]
  %s10 = inlined_call_operand.vmem [shape: f32[2,1,32], index: 10, kind: input, shape index: {}]
  %s11 = inlined_call_operand.vmem [shape: f32[2,1,32], index: 11, kind: input, shape index: {}]
  %s12 = inlined_call_operand.vmem [shape: f32[2,1,32], index: 12, kind: input, shape index: {}]
  %s13 = inlined_call_operand.vmem [shape: f32[2,32,64], index: 13, kind: input, shape index: {}]
  %s14 = inlined_call_operand.vmem [shape: f32[2,1,64], index: 14, kind: input, shape index: {}]
  %s15 = inlined_call_operand.vmem [shape: f32[2,64,32], index: 15, kind: input, shape index: {}]
  %s16 = inlined_call_operand.vmem [shape: f32[2,1,32], index: 16, kind: input, shape index: {}]
  %s17 = inlined_call_operand.vmem [shape: f32[2,1,32], index: 17, kind: input, shape index: {}]
  %s18 = inlined_call_operand.vmem [shape: f32[2,1,32], index: 18, kind: input, shape index: {}]
  %s19 = inlined_call_operand.vmem [shape: f32[32,32], index: 19, kind: input, shape index: {}]
  %s20 = inlined_call_operand.vmem [shape: f32[1,32], index: 20, kind: input, shape index: {}]
  %s21 = inlined_call_operand.vmem [shape: f32[32,4], index: 21, kind: input, shape index: {}]
  %s22 = inlined_call_operand.vmem [shape: f32[1,4], index: 22, kind: input, shape index: {}]
  %s23 = inlined_call_operand.hbm [shape: f32[2,4], index: 23, kind: output, shape index: {}]
  %s24 = sld [smem:[#allocation0]]
  $region102: #{bert_classifier_forward.1} parent=0
    _
  %s26 = ssub.s32 1, %s24
  %s27 = scalar_select 0, %s26, %s24
  $region1: #{bert_classifier_forward.1} parent=0
    #allocation2 [shape = 'u8[1024]{0}', space=vmem, size = 0x400, scoped, tag = 'output window, operand 0, single buffered']
    #allocation3 [shape = 's32[1]{0}', space=sflag, size = 0x4, scoped, tag = 'scoped memory for bert_classifier_forward.1']
    %28 = vsyncpa [#allocation3], 0
    // Predicated region
    $region2: #{bert_classifier_forward.1} parent=1 // pred_check
      _
    $region3: #{bert_classifier_forward.1} parent=1 // pred_check_branch
      %30 = sbr.rel (0) target = $region5
    $region4: #{bert_classifier_forward.1} parent=1 // pred_region
      _
    $region5: #{bert_classifier_forward.1} parent=1 // pred_fallthru
      _
    // Predicated region
    $region6: #{bert_classifier_forward.1} parent=1 // pred_check
      _
    $region7: #{bert_classifier_forward.1} parent=1 // pred_check_branch
      %32 = sbr.rel (0) target = $region9
    $region8: #{bert_classifier_forward.1} parent=1 // pred_region
      _
    $region9: #{bert_classifier_forward.1} parent=1 // pred_fallthru
      _
    // Predicated region
    $region10: #{bert_classifier_forward.1} parent=1 // pred_check
      _
    $region11: #{bert_classifier_forward.1} parent=1 // pred_check_branch
      %34 = sbr.rel (0) target = $region13
    $region12: #{bert_classifier_forward.1} parent=1 // pred_region
      _
    $region13: #{bert_classifier_forward.1} parent=1 // pred_fallthru
      _
    // Predicated region
    $region14: #{bert_classifier_forward.1} parent=1 // pred_check
      _
    $region15: #{bert_classifier_forward.1} parent=1 // pred_check_branch
      %36 = sbr.rel (0) target = $region17
    $region16: #{bert_classifier_forward.1} parent=1 // pred_region
      _
    $region17: #{bert_classifier_forward.1} parent=1 // pred_fallthru
      _
    // Predicated region
    $region18: #{bert_classifier_forward.1} parent=1 // pred_check
      _
    $region19: #{bert_classifier_forward.1} parent=1 // pred_check_branch
      %38 = sbr.rel (0) target = $region21
    $region20: #{bert_classifier_forward.1} parent=1 // pred_region
      _
    $region21: #{bert_classifier_forward.1} parent=1 // pred_fallthru
      _
    // Predicated region
    $region22: #{bert_classifier_forward.1} parent=1 // pred_check
      _
    $region23: #{bert_classifier_forward.1} parent=1 // pred_check_branch
      %40 = sbr.rel (0) target = $region25
    $region24: #{bert_classifier_forward.1} parent=1 // pred_region
      _
    $region25: #{bert_classifier_forward.1} parent=1 // pred_fallthru
      _
    // Predicated region
    $region26: #{bert_classifier_forward.1} parent=1 // pred_check
      _
    $region27: #{bert_classifier_forward.1} parent=1 // pred_check_branch
      %42 = sbr.rel (0) target = $region29
    $region28: #{bert_classifier_forward.1} parent=1 // pred_region
      _
    $region29: #{bert_classifier_forward.1} parent=1 // pred_fallthru
      _
    // Predicated region
    $region30: #{bert_classifier_forward.1} parent=1 // pred_check
      _
    $region31: #{bert_classifier_forward.1} parent=1 // pred_check_branch
      %44 = sbr.rel (0) target = $region33
    $region32: #{bert_classifier_forward.1} parent=1 // pred_region
      _
    $region33: #{bert_classifier_forward.1} parent=1 // pred_fallthru
      _
    // Predicated region
    $region34: #{bert_classifier_forward.1} parent=1 // pred_check
      _
    $region35: #{bert_classifier_forward.1} parent=1 // pred_check_branch
      %46 = sbr.rel (0) target = $region37
    $region36: #{bert_classifier_forward.1} parent=1 // pred_region
      _
    $region37: #{bert_classifier_forward.1} parent=1 // pred_fallthru
      _
    // Predicated region
    $region38: #{bert_classifier_forward.1} parent=1 // pred_check
      _
    $region39: #{bert_classifier_forward.1} parent=1 // pred_check_branch
      %48 = sbr.rel (0) target = $region41
    $region40: #{bert_classifier_forward.1} parent=1 // pred_region
      _
    $region41: #{bert_classifier_forward.1} parent=1 // pred_fallthru
      _
    // Predicated region
    $region42: #{bert_classifier_forward.1} parent=1 // pred_check
      _
    $region43: #{bert_classifier_forward.1} parent=1 // pred_check_branch
      %50 = sbr.rel (0) target = $region45
    $region44: #{bert_classifier_forward.1} parent=1 // pred_region
      _
    $region45: #{bert_classifier_forward.1} parent=1 // pred_fallthru
      _
    // Predicated region
    $region46: #{bert_classifier_forward.1} parent=1 // pred_check
      _
    $region47: #{bert_classifier_forward.1} parent=1 // pred_check_branch
      %52 = sbr.rel (0) target = $region49
    $region48: #{bert_classifier_forward.1} parent=1 // pred_region
      _
    $region49: #{bert_classifier_forward.1} parent=1 // pred_fallthru
      _
    // Predicated region
    $region50: #{bert_classifier_forward.1} parent=1 // pred_check
      _
    $region51: #{bert_classifier_forward.1} parent=1 // pred_check_branch
      %54 = sbr.rel (0) target = $region53
    $region52: #{bert_classifier_forward.1} parent=1 // pred_region
      _
    $region53: #{bert_classifier_forward.1} parent=1 // pred_fallthru
      _
    // Predicated region
    $region54: #{bert_classifier_forward.1} parent=1 // pred_check
      _
    $region55: #{bert_classifier_forward.1} parent=1 // pred_check_branch
      %56 = sbr.rel (0) target = $region57
    $region56: #{bert_classifier_forward.1} parent=1 // pred_region
      _
    $region57: #{bert_classifier_forward.1} parent=1 // pred_fallthru
      _
    // Predicated region
    $region58: #{bert_classifier_forward.1} parent=1 // pred_check
      _
    $region59: #{bert_classifier_forward.1} parent=1 // pred_check_branch
      %58 = sbr.rel (0) target = $region61
    $region60: #{bert_classifier_forward.1} parent=1 // pred_region
      _
    $region61: #{bert_classifier_forward.1} parent=1 // pred_fallthru
      _
    // Predicated region
    $region62: #{bert_classifier_forward.1} parent=1 // pred_check
      _
    $region63: #{bert_classifier_forward.1} parent=1 // pred_check_branch
      %60 = sbr.rel (0) target = $region65
    $region64: #{bert_classifier_forward.1} parent=1 // pred_region
      _
    $region65: #{bert_classifier_forward.1} parent=1 // pred_fallthru
      _
    // Predicated region
    $region66: #{bert_classifier_forward.1} parent=1 // pred_check
      _
    $region67: #{bert_classifier_forward.1} parent=1 // pred_check_branch
      %62 = sbr.rel (0) target = $region69
    $region68: #{bert_classifier_forward.1} parent=1 // pred_region
      _
    $region69: #{bert_classifier_forward.1} parent=1 // pred_fallthru
      _
    // Predicated region
    $region70: #{bert_classifier_forward.1} parent=1 // pred_check
      _
    $region71: #{bert_classifier_forward.1} parent=1 // pred_check_branch
      %64 = sbr.rel (0) target = $region73
    $region72: #{bert_classifier_forward.1} parent=1 // pred_region
      _
    $region73: #{bert_classifier_forward.1} parent=1 // pred_fallthru
      _
    // Predicated region
    $region74: #{bert_classifier_forward.1} parent=1 // pred_check
      _
    $region75: #{bert_classifier_forward.1} parent=1 // pred_check_branch
      %66 = sbr.rel (0) target = $region77
    $region76: #{bert_classifier_forward.1} parent=1 // pred_region
      _
    $region77: #{bert_classifier_forward.1} parent=1 // pred_fallthru
      _
    // Predicated region
    $region78: #{bert_classifier_forward.1} parent=1 // pred_check
      _
    $region79: #{bert_classifier_forward.1} parent=1 // pred_check_branch
      %68 = sbr.rel (0) target = $region81
    $region80: #{bert_classifier_forward.1} parent=1 // pred_region
      _
    $region81: #{bert_classifier_forward.1} parent=1 // pred_fallthru
      _
    // Predicated region
    $region82: #{bert_classifier_forward.1} parent=1 // pred_check
      _
    $region83: #{bert_classifier_forward.1} parent=1 // pred_check_branch
      %70 = sbr.rel (0) target = $region85
    $region84: #{bert_classifier_forward.1} parent=1 // pred_region
      _
    $region85: #{bert_classifier_forward.1} parent=1 // pred_fallthru
      _
    // Predicated region
    $region86: #{bert_classifier_forward.1} parent=1 // pred_check
      _
    $region87: #{bert_classifier_forward.1} parent=1 // pred_check_branch
      %72 = sbr.rel (0) target = $region89
    $region88: #{bert_classifier_forward.1} parent=1 // pred_region
      _
    $region89: #{bert_classifier_forward.1} parent=1 // pred_fallthru
      _
    // Predicated region
    $region90: #{bert_classifier_forward.1} parent=1 // pred_check
      _
    $region91: #{bert_classifier_forward.1} parent=1 // pred_check_branch
      %74 = sbr.rel (0) target = $region93
    $region92: #{bert_classifier_forward.1} parent=1 // pred_region
      _
    $region93: #{bert_classifier_forward.1} parent=1 // pred_fallthru
      _
    %v75 = vld [vmem:[%s0] sm:$0xff]
    %v76 = vld [vmem:[%s0 + $0x8] sm:$0xff]
    %v77 = vlaneseq
    %v78 = vand.u32 %v77, 127
    %79 = vset.pattern.permute.xlu0 0
    %80 = vperm.xlu0 %79, %v75
    %v81 = vpop.permute.xlu0 %80
    %82 = vset.pattern.permute.xlu0 0
    %83 = vperm.xlu0 %82, %v76
    %v84 = vpop.permute.xlu0 %83
    %vm85 = vcmp.eq.s32.totalorder %v78, %v81
    %vm86 = vcmp.eq.s32.totalorder %v78, %v84
    %v87 = vsel %vm85, 1, 0
    %v88 = vsel %vm86, 1, 0
    %v89 = vcvt.s32.f32 %v87
    %v90 = vcvt.s32.f32 %v88
    %v91 = vld [vmem:[%s2] sm:$0xff]
    %v92 = vld [vmem:[%s2 + $0x8] sm:$0xff]
    %v93 = vld [vmem:[%s2 + $0x10] sm:$0xff]
    %v94 = vld [vmem:[%s2 + $0x18] sm:$0xff]
    %v95 = vld [vmem:[%s2 + $0x20] sm:$0xff]
    %v96 = vld [vmem:[%s2 + $0x28] sm:$0xff]
    %v97 = vld [vmem:[%s2 + $0x30] sm:$0xff]
    %v98 = vld [vmem:[%s2 + $0x38] sm:$0xff]
    %v99 = vld [vmem:[%s2 + $0x40] sm:$0xff]
    %v100 = vld [vmem:[%s2 + $0x48] sm:$0xff]
    %v101 = vld [vmem:[%s2 + $0x50] sm:$0xff]
    %v102 = vld [vmem:[%s2 + $0x58] sm:$0xff]
    %v103 = vld [vmem:[%s2 + $0x60] sm:$0xf]
    %v104 = vld [vmem:[%s3] sm:$0xff]
    %v105 = vld [vmem:[%s4] sm:$0x1]
    %vm106 = vcmask 818176
    %v108 = vsel %vm106, %v89, 0
    %v111 = vsel %vm106, %v90, 0
    %vm113 = vcmask 1043456
    %v115 = vsel %vm113, %v103, 0
    %117 = vmatprep.subr.mxu0 0.0
    %118 = vmatpush1.msra.mxu0 %v91
    %119 = vmatprep.subr.mxu0 0.0
    %120 = vmatpush1.msra.mxu0 %v92
    %121 = vmatprep.subr.mxu0 0.0
    %122 = vmatpush1.msra.mxu0 %v93
    %123 = vmatprep.subr.mxu0 0.0
    %124 = vmatpush1.msra.mxu0 %v94
    %125 = vmatprep.subr.mxu0 0.0
    %126 = vmatpush1.msra.mxu0 %v95
    %127 = vmatprep.subr.mxu0 0.0
    %128 = vmatpush1.msra.mxu0 %v96
    %129 = vmatprep.subr.mxu0 0.0
    %130 = vmatpush1.msra.mxu0 %v97
    %131 = vmatprep.subr.mxu0 0.0
    %132 = vmatpush1.msra.mxu0 %v98
    %133 = vmatprep.subr.mxu0 0.0
    %134 = vmatpush1.msra.mxu0 %v99
    %135 = vmatprep.subr.mxu0 0.0
    %136 = vmatpush1.msra.mxu0 %v100
    %137 = vmatprep.subr.mxu0 0.0
    %138 = vmatpush1.msra.mxu0 %v101
    %139 = vmatprep.subr.mxu0 0.0
    %140 = vmatpush1.msra.mxu0 %v102
    %141 = vmatprep.subr.mxu0 0.0
    %142 = vmatpush1.msra.mxu0 %v115
    %143 = vmatprep.subr.mxu0 0.0
    %144 = vmatpush1.msra.mxu0 0.0
    %145 = vmatprep.subr.mxu0 0.0
    %146 = vmatpush1.msra.mxu0 0.0
    %147 = vmatprep.subr.mxu0 0.0
    %148 = vmatpush1.msra.mxu0 0.0
    %149 = vmatprep.subr.mxu0 0.0
    %150 = vmatpush1.msra.mxu0 0.0
    %151 = vmatprep.subr.mxu0 0.0
    %152 = vmatpush1.msra.mxu0 0.0
    %153 = vmatprep.subr.mxu0 0.0
    %154 = vmatpush1.msra.mxu0 0.0
    %155 = vmatprep.subr.mxu0 0.0
    %156 = vmatpush1.msra.mxu0 0.0
    %157 = vmatprep.subr.mxu0 0.0
    %158 = vmatpush1.msra.mxu0 0.0
    %159 = vmatprep.subr.mxu0 0.0
    %160 = vmatpush1.msra.mxu0 0.0
    %161 = vmatprep.subr.mxu0 0.0
    %162 = vmatpush1.msra.mxu0 0.0
    %163 = vmatprep.subr.mxu0 0.0
    %164 = vmatpush1.msra.mxu0 0.0
    %165 = vmatprep.subr.mxu0 0.0
    %166 = vmatpush1.msra.mxu0 0.0
    %167 = vmatprep.subr.mxu0 0.0
    %168 = vmatpush1.msra.mxu0 0.0
    %169 = vmatprep.subr.mxu0 0.0
    %170 = vmatpush1.msra.mxu0 0.0
    %171 = vmatprep.subr.mxu0 0.0
    %172 = vmatpush1.msra.mxu0 0.0
    %173 = vmatprep.subr.mxu0 0.0
    %174 = vmatpush1.msra.mxu0 0.0
    %175 = vmatprep.subr.mxu0 0.0
    %176 = vmatpush1.msra.mxu0 0.0
    %177 = vmatprep.subr.mxu0 0.0
    %178 = vmatpush1.msra.mxu0 0.0
    %179 = vmatprep.subr.mxu0 0.0
    %180 = vmatpush1.msra.mxu0 0.0
    %181 = vmatprep.mubr.f32.mxu0 0.0
    %182 = vmatmul.mubr.f32.gmra.mrb[0].mxu0 %v108
    %v183 = vpop.f32.mrb[0].mxu0
    %v184 = vadd.f32 %v104, %v183
    %v185 = vpop.f32.mrb[0].mxu0
    %186 = vmatprep.mubr.f32.mxu0 0.0
    %187 = vmatmul.mubr.f32.gmra.mrb[0].mxu0 %v111
    %v188 = vpop.f32.mrb[0].mxu0
    %v189 = vadd.f32 %v104, %v188
    %v190 = vpop.f32.mrb[0].mxu0
    %191 = vdwg.mxu0
    %v192 = vlaneseq
    %v193 = vshrl.u32 %v192, 7
    %v194 = vsub.s32 0, %v193
    %v195 = vrot.slane %v105, %v194
    %v196 = vadd.f32 %v184, %v195
    %v197 = vadd.f32 %v189, %v195
    %v198 = vld [vmem:[%s5] sm:$0x1]
    %v199 = vld [vmem:[%s6] sm:$0x1]
    %vm200 = vcmask 261120
    %v201 = vsel %vm200, %v196, 0.0
    %202 = vadd.xlane.f32.xlu0 %v201
    %v203 = vpop.xlane.xlu0 %202
    %v204 = vsel %vm200, %v197, 0.0
    %205 = vadd.xlane.f32.xlu0 %v204
    %v206 = vpop.xlane.xlu0 %205
    %v207 = vrcp.pop 32.0
    %v208 = vmul.f32 %v203, %v207
    %v209 = vmul.f32 %v206, %v207
    %v210 = vsub.f32 %v196, %v208
    %v211 = vsub.f32 %v197, %v209
    %v212 = vmul.f32 %v210, %v210
    %v213 = vmul.f32 %v211, %v211
    %v214 = vsel %vm200, %v212, 0.0
    %215 = vadd.xlane.f32.xlu0 %v214
    %v216 = vpop.xlane.xlu0 %215
    %v217 = vsel %vm200, %v213, 0.0
    %218 = vadd.xlane.f32.xlu0 %v217
    %v219 = vpop.xlane.xlu0 %218
    %v220 = vmul.f32 %v216, %v207
    %v221 = vmul.f32 %v219, %v207
    %v222 = vadd.f32 %v220, 1e-12
    %v223 = vadd.f32 %v221, 1e-12
    %v224 = vrsqrt.pop %v222
    %v225 = vrsqrt.pop %v223
    %v226 = vmul.f32 %v210, %v224
    %v227 = vmul.f32 %v211, %v225
    %v229 = vlaneseq
    %v230 = vshrl.u32 %v229, 7
    %v231 = vsub.s32 0, %v230
    %v232 = vrot.slane %v198, %v231
    %v234 = vmul.f32 %v226, %v232
    %v235 = vmul.f32 %v227, %v232
    %v237 = vlaneseq
    %v238 = vshrl.u32 %v237, 7
    %v239 = vsub.s32 0, %v238
    %v240 = vrot.slane %v199, %v239
    %v242 = vadd.f32 %v234, %v240
    %v243 = vadd.f32 %v235, %v240
    %v244 = vld [vmem:[%s1] sm:$0x3]
    %v245 = vsub.f32 1.0, %v244
    %v246 = vmul.f32 %v245, -10000.0
    %v247 = vld [vmem:[%s7] sm:$0xff]
    %v248 = vld [vmem:[%s7 + $0x8] sm:$0xff]
    %v249 = vld [vmem:[%s7 + $0x10] sm:$0xff]
    %v250 = vld [vmem:[%s7 + $0x18] sm:$0xff]
    %v251 = vld [vmem:[%s8] sm:$0x1]
    %v253 = vlaneseq
    %v254 = vshrl.u32 %v253, 7
    %v255 = vsub.s32 0, %v254
    %v256 = vrot.slane %v251, %v255
    %v259 = vsel %vm200, %v242, 0
    %v262 = vsel %vm200, %v243, 0
    %264 = vmatprep.subr.mxu0 0.0
    %265 = vmatpush1.msra.mxu0 %v247
    %266 = vmatprep.subr.mxu0 0.0
    %267 = vmatpush1.msra.mxu0 %v248
    %268 = vmatprep.subr.mxu0 0.0
    %269 = vmatpush1.msra.mxu0 %v249
    %270 = vmatprep.subr.mxu0 0.0
    %271 = vmatpush1.msra.mxu0 %v250
    %272 = vmatprep.subr.mxu0 0.0
    %273 = vmatpush1.msra.mxu0 0.0
    %274 = vmatprep.subr.mxu0 0.0
    %275 = vmatpush1.msra.mxu0 0.0
    %276 = vmatprep.subr.mxu0 0.0
    %277 = vmatpush1.msra.mxu0 0.0
    %278 = vmatprep.subr.mxu0 0.0
    %279 = vmatpush1.msra.mxu0 0.0
    %280 = vmatprep.subr.mxu0 0.0
    %281 = vmatpush1.msra.mxu0 0.0
    %282 = vmatprep.subr.mxu0 0.0
    %283 = vmatpush1.msra.mxu0 0.0
    %284 = vmatprep.subr.mxu0 0.0
    %285 = vmatpush1.msra.mxu0 0.0
    %286 = vmatprep.subr.mxu0 0.0
    %287 = vmatpush1.msra.mxu0 0.0
    %288 = vmatprep.subr.mxu0 0.0
    %289 = vmatpush1.msra.mxu0 0.0
    %290 = vmatprep.subr.mxu0 0.0
    %291 = vmatpush1.msra.mxu0 0.0
    %292 = vmatprep.subr.mxu0 0.0
    %293 = vmatpush1.msra.mxu0 0.0
    %294 = vmatprep.subr.mxu0 0.0
    %295 = vmatpush1.msra.mxu0 0.0
    %296 = vmatprep.subr.mxu0 0.0
    %297 = vmatpush1.msra.mxu0 0.0
    %298 = vmatprep.subr.mxu0 0.0
    %299 = vmatpush1.msra.mxu0 0.0
    %300 = vmatprep.subr.mxu0 0.0
    %301 = vmatpush1.msra.mxu0 0.0
    %302 = vmatprep.subr.mxu0 0.0
    %303 = vmatpush1.msra.mxu0 0.0
    %304 = vmatprep.subr.mxu0 0.0
    %305 = vmatpush1.msra.mxu0 0.0
    %306 = vmatprep.subr.mxu0 0.0
    %307 = vmatpush1.msra.mxu0 0.0
    %308 = vmatprep.subr.mxu0 0.0
    %309 = vmatpush1.msra.mxu0 0.0
    %310 = vmatprep.subr.mxu0 0.0
    %311 = vmatpush1.msra.mxu0 0.0
    %312 = vmatprep.subr.mxu0 0.0
    %313 = vmatpush1.msra.mxu0 0.0
    %314 = vmatprep.subr.mxu0 0.0
    %315 = vmatpush1.msra.mxu0 0.0
    %316 = vmatprep.subr.mxu0 0.0
    %317 = vmatpush1.msra.mxu0 0.0
    %318 = vmatprep.subr.mxu0 0.0
    %319 = vmatpush1.msra.mxu0 0.0
    %320 = vmatprep.subr.mxu0 0.0
    %321 = vmatpush1.msra.mxu0 0.0
    %322 = vmatprep.subr.mxu0 0.0
    %323 = vmatpush1.msra.mxu0 0.0
    %324 = vmatprep.subr.mxu0 0.0
    %325 = vmatpush1.msra.mxu0 0.0
    %326 = vmatprep.subr.mxu0 0.0
    %327 = vmatpush1.msra.mxu0 0.0
    %328 = vmatprep.mubr.f32.mxu0 0.0
    %329 = vmatmul.mubr.f32.gmra.mrb[0].mxu0 %v259
    %v330 = vpop.f32.mrb[0].mxu0
    %v331 = vadd.f32 %v256, %v330
    %v332 = vpop.f32.mrb[0].mxu0
    %333 = vmatprep.mubr.f32.mxu0 0.0
    %334 = vmatmul.mubr.f32.gmra.mrb[0].mxu0 %v262
    %v335 = vpop.f32.mrb[0].mxu0
    %v336 = vadd.f32 %v256, %v335
    %v337 = vpop.f32.mrb[0].mxu0
    %338 = vdwg.mxu0
    %v339 = vmul.f32 %v331, 0.35355338
    %v340 = vmul.f32 %v336, 0.35355338
    %v341 = vlaneseq
    %v342 = vshrl.u32 %v341, 7
    %v343 = vsub.s32 0, %v342
    %v344 = vrot.slane %v246, %v343
    %346 = vrot.lane.b32.xlu0 %v331, 96
    %v347 = vpop.permute.xlu0 %346
    %vm348 = vcmask 64512
    %v350 = vsel %vm348, %v339, 0
    %v352 = vsel %vm348, %v347, 0
    %354 = vmatprep.subr.mxu0 0.0
    %355 = vmatpush1.xpose.msra.mxu0 %v352
    %356 = vmatprep.subr.mxu0 0.0
    %357 = vmatpush1.xpose.msra.mxu0 0.0
    %358 = vmatprep.subr.mxu0 0.0
    %359 = vmatpush1.xpose.msra.mxu0 0.0
    %360 = vmatprep.subr.mxu0 0.0
    %361 = vmatpush1.xpose.msra.mxu0 0.0
    %362 = vmatprep.subr.mxu0 0.0
    %363 = vmatpush1.xpose.msra.mxu0 0.0
    %364 = vmatprep.subr.mxu0 0.0
    %365 = vmatpush1.xpose.msra.mxu0 0.0
    %366 = vmatprep.subr.mxu0 0.0
    %367 = vmatpush1.xpose.msra.mxu0 0.0
    %368 = vmatprep.subr.mxu0 0.0
    %369 = vmatpush1.xpose.msra.mxu0 0.0
    %370 = vmatprep.subr.mxu0 0.0
    %371 = vmatpush1.xpose.msra.mxu0 0.0
    %372 = vmatprep.subr.mxu0 0.0
    %373 = vmatpush1.xpose.msra.mxu0 0.0
    %374 = vmatprep.subr.mxu0 0.0
    %375 = vmatpush1.xpose.msra.mxu0 0.0
    %376 = vmatprep.subr.mxu0 0.0
    %377 = vmatpush1.xpose.msra.mxu0 0.0
    %378 = vmatprep.subr.mxu0 0.0
    %379 = vmatpush1.xpose.msra.mxu0 0.0
    %380 = vmatprep.subr.mxu0 0.0
    %381 = vmatpush1.xpose.msra.mxu0 0.0
    %382 = vmatprep.subr.mxu0 0.0
    %383 = vmatpush1.xpose.msra.mxu0 0.0
    %384 = vmatprep.subr.mxu0 0.0
    %385 = vmatpush1.xpose.msra.mxu0 0.0
    %386 = vmatprep.subr.mxu0 0.0
    %387 = vmatpush1.xpose.msra.mxu0 0.0
    %388 = vmatprep.subr.mxu0 0.0
    %389 = vmatpush1.xpose.msra.mxu0 0.0
    %390 = vmatprep.subr.mxu0 0.0
    %391 = vmatpush1.xpose.msra.mxu0 0.0
    %392 = vmatprep.subr.mxu0 0.0
    %393 = vmatpush1.xpose.msra.mxu0 0.0
    %394 = vmatprep.subr.mxu0 0.0
    %395 = vmatpush1.xpose.msra.mxu0 0.0
    %396 = vmatprep.subr.mxu0 0.0
    %397 = vmatpush1.xpose.msra.mxu0 0.0
    %398 = vmatprep.subr.mxu0 0.0
    %399 = vmatpush1.xpose.msra.mxu0 0.0
    %400 = vmatprep.subr.mxu0 0.0
    %401 = vmatpush1.xpose.msra.mxu0 0.0
    %402 = vmatprep.subr.mxu0 0.0
    %403 = vmatpush1.xpose.msra.mxu0 0.0
    %404 = vmatprep.subr.mxu0 0.0
    %405 = vmatpush1.xpose.msra.mxu0 0.0
    %406 = vmatprep.subr.mxu0 0.0
    %407 = vmatpush1.xpose.msra.mxu0 0.0
    %408 = vmatprep.subr.mxu0 0.0
    %409 = vmatpush1.xpose.msra.mxu0 0.0
    %410 = vmatprep.subr.mxu0 0.0
    %411 = vmatpush1.xpose.msra.mxu0 0.0
    %412 = vmatprep.subr.mxu0 0.0
    %413 = vmatpush1.xpose.msra.mxu0 0.0
    %414 = vmatprep.subr.mxu0 0.0
    %415 = vmatpush1.xpose.msra.mxu0 0.0
    %416 = vmatprep.subr.mxu0 0.0
    %417 = vmatpush1.xpose.msra.mxu0 0.0
    %418 = vmatprep.mubr.f32.mxu0 0.0
    %419 = vmatmul.mubr.f32.gmra.mrb[0].mxu0 %v350
    %v420 = vpop.f32.mrb[0].mxu0
    %v421 = vadd.f32 %v344, %v420
    %v422 = vpop.f32.mrb[0].mxu0
    %423 = vdwg.mxu0
    %v424 = vsel %vm348, %v421, -inf
    %425 = vmax.xlane.f32.xlu0 %v424
    %v426 = vpop.xlane.xlu0 %425
    %v427 = vsub.f32 %v421, %v426
    %v428 = vmul.f32 %v427, 1.442695
    %v429 = vpow.pop %v428
    %v430 = vsel %vm348, %v429, 0.0
    %431 = vadd.xlane.f32.xlu0 %v430
    %v432 = vpop.xlane.xlu0 %431
    %v433 = vrcp.pop %v432
    %v434 = vmul.f32 %v429, %v433
    %435 = vrot.lane.b32.xlu0 %v331, 64
    %v436 = vpop.permute.xlu0 %435
    %v439 = vsel %vm348, %v434, 0
    %441 = vmatprep.subr.mxu0 0.0
    %442 = vmatpush1.msra.mxu0 %v436
    %443 = vmatprep.subr.mxu0 0.0
    %444 = vmatpush1.msra.mxu0 0.0
    %445 = vmatprep.subr.mxu0 0.0
    %446 = vmatpush1.msra.mxu0 0.0
    %447 = vmatprep.subr.mxu0 0.0
    %448 = vmatpush1.msra.mxu0 0.0
    %449 = vmatprep.subr.mxu0 0.0
    %450 = vmatpush1.msra.mxu0 0.0
    %451 = vmatprep.subr.mxu0 0.0
    %452 = vmatpush1.msra.mxu0 0.0
    %453 = vmatprep.subr.mxu0 0.0
    %454 = vmatpush1.msra.mxu0 0.0
    %455 = vmatprep.subr.mxu0 0.0
    %456 = vmatpush1.msra.mxu0 0.0
    %457 = vmatprep.subr.mxu0 0.0
    %458 = vmatpush1.msra.mxu0 0.0
    %459 = vmatprep.subr.mxu0 0.0
    %460 = vmatpush1.msra.mxu0 0.0
    %461 = vmatprep.subr.mxu0 0.0
    %462 = vmatpush1.msra.mxu0 0.0
    %463 = vmatprep.subr.mxu0 0.0
    %464 = vmatpush1.msra.mxu0 0.0
    %465 = vmatprep.subr.mxu0 0.0
    %466 = vmatpush1.msra.mxu0 0.0
    %467 = vmatprep.subr.mxu0 0.0
    %468 = vmatpush1.msra.mxu0 0.0
    %469 = vmatprep.subr.mxu0 0.0
    %470 = vmatpush1.msra.mxu0 0.0
    %471 = vmatprep.subr.mxu0 0.0
    %472 = vmatpush1.msra.mxu0 0.0
    %473 = vmatprep.subr.mxu0 0.0
    %474 = vmatpush1.msra.mxu0 0.0
    %475 = vmatprep.subr.mxu0 0.0
    %476 = vmatpush1.msra.mxu0 0.0
    %477 = vmatprep.subr.mxu0 0.0
    %478 = vmatpush1.msra.mxu0 0.0
    %479 = vmatprep.subr.mxu0 0.0
    %480 = vmatpush1.msra.mxu0 0.0
    %481 = vmatprep.subr.mxu0 0.0
    %482 = vmatpush1.msra.mxu0 0.0
    %483 = vmatprep.subr.mxu0 0.0
    %484 = vmatpush1.msra.mxu0 0.0
    %485 = vmatprep.subr.mxu0 0.0
    %486 = vmatpush1.msra.mxu0 0.0
    %487 = vmatprep.subr.mxu0 0.0
    %488 = vmatpush1.msra.mxu0 0.0
    %489 = vmatprep.subr.mxu0 0.0
    %490 = vmatpush1.msra.mxu0 0.0
    %491 = vmatprep.subr.mxu0 0.0
    %492 = vmatpush1.msra.mxu0 0.0
    %493 = vmatprep.subr.mxu0 0.0
    %494 = vmatpush1.msra.mxu0 0.0
    %495 = vmatprep.subr.mxu0 0.0
    %496 = vmatpush1.msra.mxu0 0.0
    %497 = vmatprep.subr.mxu0 0.0
    %498 = vmatpush1.msra.mxu0 0.0
    %499 = vmatprep.subr.mxu0 0.0
    %500 = vmatpush1.msra.mxu0 0.0
    %501 = vmatprep.subr.mxu0 0.0
    %502 = vmatpush1.msra.mxu0 0.0
    %503 = vmatprep.subr.mxu0 0.0
    %504 = vmatpush1.msra.mxu0 0.0
    %505 = vmatprep.mubr.f32.mxu0 0.0
    %506 = vmatmul.mubr.f32.gmra.mrb[0].mxu0 %v439
    %v507 = vpop.f32.mrb[0].mxu0
    %v508 = vadd.f32 0.0, %v507
    %v509 = vpop.f32.mrb[0].mxu0
    %510 = vdwg.mxu0
    %511 = vrot.lane.b32.xlu0 %v339, 120
    %v512 = vpop.permute.xlu0 %511
    %513 = vrot.lane.b32.xlu0 %v331, 88
    %v514 = vpop.permute.xlu0 %513
    %v515 = vsel %vm348, %v512, 0
    %v517 = vsel %vm348, %v514, 0
    %519 = vmatprep.subr.mxu0 0.0
    %520 = vmatpush1.xpose.msra.mxu0 %v517
    %521 = vmatprep.subr.mxu0 0.0
    %522 = vmatpush1.xpose.msra.mxu0 0.0
    %523 = vmatprep.subr.mxu0 0.0
    %524 = vmatpush1.xpose.msra.mxu0 0.0
    %525 = vmatprep.subr.mxu0 0.0
    %526 = vmatpush1.xpose.msra.mxu0 0.0
    %527 = vmatprep.subr.mxu0 0.0
    %528 = vmatpush1.xpose.msra.mxu0 0.0
    %529 = vmatprep.subr.mxu0 0.0
    %530 = vmatpush1.xpose.msra.mxu0 0.0
    %531 = vmatprep.subr.mxu0 0.0
    %532 = vmatpush1.xpose.msra.mxu0 0.0
    %533 = vmatprep.subr.mxu0 0.0
    %534 = vmatpush1.xpose.msra.mxu0 0.0
    %535 = vmatprep.subr.mxu0 0.0
    %536 = vmatpush1.xpose.msra.mxu0 0.0
    %537 = vmatprep.subr.mxu0 0.0
    %538 = vmatpush1.xpose.msra.mxu0 0.0
    %539 = vmatprep.subr.mxu0 0.0
    %540 = vmatpush1.xpose.msra.mxu0 0.0
    %541 = vmatprep.subr.mxu0 0.0
    %542 = vmatpush1.xpose.msra.mxu0 0.0
    %543 = vmatprep.subr.mxu0 0.0
    %544 = vmatpush1.xpose.msra.mxu0 0.0
    %545 = vmatprep.subr.mxu0 0.0
    %546 = vmatpush1.xpose.msra.mxu0 0.0
    %547 = vmatprep.subr.mxu0 0.0
    %548 = vmatpush1.xpose.msra.mxu0 0.0
    %549 = vmatprep.subr.mxu0 0.0
    %550 = vmatpush1.xpose.msra.mxu0 0.0
    %551 = vmatprep.subr.mxu0 0.0
    %552 = vmatpush1.xpose.msra.mxu0 0.0
    %553 = vmatprep.subr.mxu0 0.0
    %554 = vmatpush1.xpose.msra.mxu0 0.0
    %555 = vmatprep.subr.mxu0 0.0
    %556 = vmatpush1.xpose.msra.mxu0 0.0
    %557 = vmatprep.subr.mxu0 0.0
    %558 = vmatpush1.xpose.msra.mxu0 0.0
    %559 = vmatprep.subr.mxu0 0.0
    %560 = vmatpush1.xpose.msra.mxu0 0.0
    %561 = vmatprep.subr.mxu0 0.0
    %562 = vmatpush1.xpose.msra.mxu0 0.0
    %563 = vmatprep.subr.mxu0 0.0
    %564 = vmatpush1.xpose.msra.mxu0 0.0
    %565 = vmatprep.subr.mxu0 0.0
    %566 = vmatpush1.xpose.msra.mxu0 0.0
    %567 = vmatprep.subr.mxu0 0.0
    %568 = vmatpush1.xpose.msra.mxu0 0.0
    %569 = vmatprep.subr.mxu0 0.0
    %570 = vmatpush1.xpose.msra.mxu0 0.0
    %571 = vmatprep.subr.mxu0 0.0
    %572 = vmatpush1.xpose.msra.mxu0 0.0
    %573 = vmatprep.subr.mxu0 0.0
    %574 = vmatpush1.xpose.msra.mxu0 0.0
    %575 = vmatprep.subr.mxu0 0.0
    %576 = vmatpush1.xpose.msra.mxu0 0.0
    %577 = vmatprep.subr.mxu0 0.0
    %578 = vmatpush1.xpose.msra.mxu0 0.0
    %579 = vmatprep.subr.mxu0 0.0
    %580 = vmatpush1.xpose.msra.mxu0 0.0
    %581 = vmatprep.subr.mxu0 0.0
    %582 = vmatpush1.xpose.msra.mxu0 0.0
    %583 = vmatprep.mubr.f32.mxu0 0.0
    %584 = vmatmul.mubr.f32.gmra.mrb[0].mxu0 %v515
    %v585 = vpop.f32.mrb[0].mxu0
    %v586 = vadd.f32 %v344, %v585
    %v587 = vpop.f32.mrb[0].mxu0
    %588 = vdwg.mxu0
    %v589 = vsel %vm348, %v586, -inf
    %590 = vmax.xlane.f32.xlu0 %v589
    %v591 = vpop.xlane.xlu0 %590
    %v592 = vsub.f32 %v586, %v591
    %v593 = vmul.f32 %v592, 1.442695
    %v594 = vpow.pop %v593
    %v595 = vsel %vm348, %v594, 0.0
    %596 = vadd.xlane.f32.xlu0 %v595
    %v597 = vpop.xlane.xlu0 %596
    %v598 = vrcp.pop %v597
    %v599 = vmul.f32 %v594, %v598
    %600 = vrot.lane.b32.xlu0 %v331, 56
    %v601 = vpop.permute.xlu0 %600
    %v604 = vsel %vm348, %v599, 0
    %606 = vmatprep.subr.mxu0 0.0
    %607 = vmatpush1.msra.mxu0 %v601
    %608 = vmatprep.subr.mxu0 0.0
    %609 = vmatpush1.msra.mxu0 0.0
    %610 = vmatprep.subr.mxu0 0.0
    %611 = vmatpush1.msra.mxu0 0.0
    %612 = vmatprep.subr.mxu0 0.0
    %613 = vmatpush1.msra.mxu0 0.0
    %614 = vmatprep.subr.mxu0 0.0
    %615 = vmatpush1.msra.mxu0 0.0
    %616 = vmatprep.subr.mxu0 0.0
    %617 = vmatpush1.msra.mxu0 0.0
    %618 = vmatprep.subr.mxu0 0.0
    %619 = vmatpush1.msra.mxu0 0.0
    %620 = vmatprep.subr.mxu0 0.0
    %621 = vmatpush1.msra.mxu0 0.0
    %622 = vmatprep.subr.mxu0 0.0
    %623 = vmatpush1.msra.mxu0 0.0
    %624 = vmatprep.subr.mxu0 0.0
    %625 = vmatpush1.msra.mxu0 0.0
    %626 = vmatprep.subr.mxu0 0.0
    %627 = vmatpush1.msra.mxu0 0.0
    %628 = vmatprep.subr.mxu0 0.0
    %629 = vmatpush1.msra.mxu0 0.0
    %630 = vmatprep.subr.mxu0 0.0
    %631 = vmatpush1.msra.mxu0 0.0
    %632 = vmatprep.subr.mxu0 0.0
    %633 = vmatpush1.msra.mxu0 0.0
    %634 = vmatprep.subr.mxu0 0.0
    %635 = vmatpush1.msra.mxu0 0.0
    %636 = vmatprep.subr.mxu0 0.0
    %637 = vmatpush1.msra.mxu0 0.0
    %638 = vmatprep.subr.mxu0 0.0
    %639 = vmatpush1.msra.mxu0 0.0
    %640 = vmatprep.subr.mxu0 0.0
    %641 = vmatpush1.msra.mxu0 0.0
    %642 = vmatprep.subr.mxu0 0.0
    %643 = vmatpush1.msra.mxu0 0.0
    %644 = vmatprep.subr.mxu0 0.0
    %645 = vmatpush1.msra.mxu0 0.0
    %646 = vmatprep.subr.mxu0 0.0
    %647 = vmatpush1.msra.mxu0 0.0
    %648 = vmatprep.subr.mxu0 0.0
    %649 = vmatpush1.msra.mxu0 0.0
    %650 = vmatprep.subr.mxu0 0.0
    %651 = vmatpush1.msra.mxu0 0.0
    %652 = vmatprep.subr.mxu0 0.0
    %653 = vmatpush1.msra.mxu0 0.0
    %654 = vmatprep.subr.mxu0 0.0
    %655 = vmatpush1.msra.mxu0 0.0
    %656 = vmatprep.subr.mxu0 0.0
    %657 = vmatpush1.msra.mxu0 0.0
    %658 = vmatprep.subr.mxu0 0.0
    %659 = vmatpush1.msra.mxu0 0.0
    %660 = vmatprep.subr.mxu0 0.0
    %661 = vmatpush1.msra.mxu0 0.0
    %662 = vmatprep.subr.mxu0 0.0
    %663 = vmatpush1.msra.mxu0 0.0
    %664 = vmatprep.subr.mxu0 0.0
    %665 = vmatpush1.msra.mxu0 0.0
    %666 = vmatprep.subr.mxu0 0.0
    %667 = vmatpush1.msra.mxu0 0.0
    %668 = vmatprep.subr.mxu0 0.0
    %669 = vmatpush1.msra.mxu0 0.0
    %670 = vmatprep.mubr.f32.mxu0 0.0
    %671 = vmatmul.mubr.f32.gmra.mrb[0].mxu0 %v604
    %v672 = vpop.f32.mrb[0].mxu0
    %v673 = vadd.f32 0.0, %v672
    %v674 = vpop.f32.mrb[0].mxu0
    %675 = vdwg.mxu0
    %676 = vrot.lane.b32.xlu0 %v339, 112
    %v677 = vpop.permute.xlu0 %676
    %678 = vrot.lane.b32.xlu0 %v331, 80
    %v679 = vpop.permute.xlu0 %678
    %v680 = vsel %vm348, %v677, 0
    %v682 = vsel %vm348, %v679, 0
    %684 = vmatprep.subr.mxu0 0.0
    %685 = vmatpush1.xpose.msra.mxu0 %v682
    %686 = vmatprep.subr.mxu0 0.0
    %687 = vmatpush1.xpose.msra.mxu0 0.0
    %688 = vmatprep.subr.mxu0 0.0
    %689 = vmatpush1.xpose.msra.mxu0 0.0
    %690 = vmatprep.subr.mxu0 0.0
    %691 = vmatpush1.xpose.msra.mxu0 0.0
    %692 = vmatprep.subr.mxu0 0.0
    %693 = vmatpush1.xpose.msra.mxu0 0.0
    %694 = vmatprep.subr.mxu0 0.0
    %695 = vmatpush1.xpose.msra.mxu0 0.0
    %696 = vmatprep.subr.mxu0 0.0
    %697 = vmatpush1.xpose.msra.mxu0 0.0
    %698 = vmatprep.subr.mxu0 0.0
    %699 = vmatpush1.xpose.msra.mxu0 0.0
    %700 = vmatprep.subr.mxu0 0.0
    %701 = vmatpush1.xpose.msra.mxu0 0.0
    %702 = vmatprep.subr.mxu0 0.0
    %703 = vmatpush1.xpose.msra.mxu0 0.0
    %704 = vmatprep.subr.mxu0 0.0
    %705 = vmatpush1.xpose.msra.mxu0 0.0
    %706 = vmatprep.subr.mxu0 0.0
    %707 = vmatpush1.xpose.msra.mxu0 0.0
    %708 = vmatprep.subr.mxu0 0.0
    %709 = vmatpush1.xpose.msra.mxu0 0.0
    %710 = vmatprep.subr.mxu0 0.0
    %711 = vmatpush1.xpose.msra.mxu0 0.0
    %712 = vmatprep.subr.mxu0 0.0
    %713 = vmatpush1.xpose.msra.mxu0 0.0
    %714 = vmatprep.subr.mxu0 0.0
    %715 = vmatpush1.xpose.msra.mxu0 0.0
    %716 = vmatprep.subr.mxu0 0.0
    %717 = vmatpush1.xpose.msra.mxu0 0.0
    %718 = vmatprep.subr.mxu0 0.0
    %719 = vmatpush1.xpose.msra.mxu0 0.0
    %720 = vmatprep.subr.mxu0 0.0
    %721 = vmatpush1.xpose.msra.mxu0 0.0
    %722 = vmatprep.subr.mxu0 0.0
    %723 = vmatpush1.xpose.msra.mxu0 0.0
    %724 = vmatprep.subr.mxu0 0.0
    %725 = vmatpush1.xpose.msra.mxu0 0.0
    %726 = vmatprep.subr.mxu0 0.0
    %727 = vmatpush1.xpose.msra.mxu0 0.0
    %728 = vmatprep.subr.mxu0 0.0
    %729 = vmatpush1.xpose.msra.mxu0 0.0
    %730 = vmatprep.subr.mxu0 0.0
    %731 = vmatpush1.xpose.msra.mxu0 0.0
    %732 = vmatprep.subr.mxu0 0.0
    %733 = vmatpush1.xpose.msra.mxu0 0.0
    %734 = vmatprep.subr.mxu0 0.0
    %735 = vmatpush1.xpose.msra.mxu0 0.0
    %736 = vmatprep.subr.mxu0 0.0
    %737 = vmatpush1.xpose.msra.mxu0 0.0
    %738 = vmatprep.subr.mxu0 0.0
    %739 = vmatpush1.xpose.msra.mxu0 0.0
    %740 = vmatprep.subr.mxu0 0.0
    %741 = vmatpush1.xpose.msra.mxu0 0.0
    %742 = vmatprep.subr.mxu0 0.0
    %743 = vmatpush1.xpose.msra.mxu0 0.0
    %744 = vmatprep.subr.mxu0 0.0
    %745 = vmatpush1.xpose.msra.mxu0 0.0
    %746 = vmatprep.subr.mxu0 0.0
    %747 = vmatpush1.xpose.msra.mxu0 0.0
    %748 = vmatprep.mubr.f32.mxu0 0.0
    %749 = vmatmul.mubr.f32.gmra.mrb[0].mxu0 %v680
    %v750 = vpop.f32.mrb[0].mxu0
    %v751 = vadd.f32 %v344, %v750
    %v752 = vpop.f32.mrb[0].mxu0
    %753 = vdwg.mxu0
    %v754 = vsel %vm348, %v751, -inf
    %755 = vmax.xlane.f32.xlu0 %v754
    %v756 = vpop.xlane.xlu0 %755
    %v757 = vsub.f32 %v751, %v756
    %v758 = vmul.f32 %v757, 1.442695
    %v759 = vpow.pop %v758
    %v760 = vsel %vm348, %v759, 0.0
    %761 = vadd.xlane.f32.xlu0 %v760
    %v762 = vpop.xlane.xlu0 %761
    %v763 = vrcp.pop %v762
    %v764 = vmul.f32 %v759, %v763
    %765 = vrot.lane.b32.xlu0 %v331, 48
    %v766 = vpop.permute.xlu0 %765
    %v769 = vsel %vm348, %v764, 0
    %771 = vmatprep.subr.mxu0 0.0
    %772 = vmatpush1.msra.mxu0 %v766
    %773 = vmatprep.subr.mxu0 0.0
    %774 = vmatpush1.msra.mxu0 0.0
    %775 = vmatprep.subr.mxu0 0.0
    %776 = vmatpush1.msra.mxu0 0.0
    %777 = vmatprep.subr.mxu0 0.0
    %778 = vmatpush1.msra.mxu0 0.0
    %779 = vmatprep.subr.mxu0 0.0
    %780 = vmatpush1.msra.mxu0 0.0
    %781 = vmatprep.subr.mxu0 0.0
    %782 = vmatpush1.msra.mxu0 0.0
    %783 = vmatprep.subr.mxu0 0.0
    %784 = vmatpush1.msra.mxu0 0.0
    %785 = vmatprep.subr.mxu0 0.0
    %786 = vmatpush1.msra.mxu0 0.0
    %787 = vmatprep.subr.mxu0 0.0
    %788 = vmatpush1.msra.mxu0 0.0
    %789 = vmatprep.subr.mxu0 0.0
    %790 = vmatpush1.msra.mxu0 0.0
    %791 = vmatprep.subr.mxu0 0.0
    %792 = vmatpush1.msra.mxu0 0.0
    %793 = vmatprep.subr.mxu0 0.0
    %794 = vmatpush1.msra.mxu0 0.0
    %795 = vmatprep.subr.mxu0 0.0
    %796 = vmatpush1.msra.mxu0 0.0
    %797 = vmatprep.subr.mxu0 0.0
    %798 = vmatpush1.msra.mxu0 0.0
    %799 = vmatprep.subr.mxu0 0.0
    %800 = vmatpush1.msra.mxu0 0.0
    %801 = vmatprep.subr.mxu0 0.0
    %802 = vmatpush1.msra.mxu0 0.0
    %803 = vmatprep.subr.mxu0 0.0
    %804 = vmatpush1.msra.mxu0 0.0
    %805 = vmatprep.subr.mxu0 0.0
    %806 = vmatpush1.msra.mxu0 0.0
    %807 = vmatprep.subr.mxu0 0.0
    %808 = vmatpush1.msra.mxu0 0.0
    %809 = vmatprep.subr.mxu0 0.0
    %810 = vmatpush1.msra.mxu0 0.0
    %811 = vmatprep.subr.mxu0 0.0
    %812 = vmatpush1.msra.mxu0 0.0
    %813 = vmatprep.subr.mxu0 0.0
    %814 = vmatpush1.msra.mxu0 0.0
    %815 = vmatprep.subr.mxu0 0.0
    %816 = vmatpush1.msra.mxu0 0.0
    %817 = vmatprep.subr.mxu0 0.0
    %818 = vmatpush1.msra.mxu0 0.0
    %819 = vmatprep.subr.mxu0 0.0
    %820 = vmatpush1.msra.mxu0 0.0
    %821 = vmatprep.subr.mxu0 0.0
    %822 = vmatpush1.msra.mxu0 0.0
    %823 = vmatprep.subr.mxu0 0.0
    %824 = vmatpush1.msra.mxu0 0.0
    %825 = vmatprep.subr.mxu0 0.0
    %826 = vmatpush1.msra.mxu0 0.0
    %827 = vmatprep.subr.mxu0 0.0
    %828 = vmatpush1.msra.mxu0 0.0
    %829 = vmatprep.subr.mxu0 0.0
    %830 = vmatpush1.msra.mxu0 0.0
    %831 = vmatprep.subr.mxu0 0.0
    %832 = vmatpush1.msra.mxu0 0.0
    %833 = vmatprep.subr.mxu0 0.0
    %834 = vmatpush1.msra.mxu0 0.0
    %835 = vmatprep.mubr.f32.mxu0 0.0
    %836 = vmatmul.mubr.f32.gmra.mrb[0].mxu0 %v769
    %v837 = vpop.f32.mrb[0].mxu0
    %v838 = vadd.f32 0.0, %v837
    %v839 = vpop.f32.mrb[0].mxu0
    %840 = vdwg.mxu0
    %841 = vrot.lane.b32.xlu0 %v339, 104
    %v842 = vpop.permute.xlu0 %841
    %843 = vrot.lane.b32.xlu0 %v331, 72
    %v844 = vpop.permute.xlu0 %843
    %v845 = vsel %vm348, %v842, 0
    %v847 = vsel %vm348, %v844, 0
    %849 = vmatprep.subr.mxu0 0.0
    %850 = vmatpush1.xpose.msra.mxu0 %v847
    %851 = vmatprep.subr.mxu0 0.0
    %852 = vmatpush1.xpose.msra.mxu0 0.0
    %853 = vmatprep.subr.mxu0 0.0
    %854 = vmatpush1.xpose.msra.mxu0 0.0
    %855 = vmatprep.subr.mxu0 0.0
    %856 = vmatpush1.xpose.msra.mxu0 0.0
    %857 = vmatprep.subr.mxu0 0.0
    %858 = vmatpush1.xpose.msra.mxu0 0.0
    %859 = vmatprep.subr.mxu0 0.0
    %860 = vmatpush1.xpose.msra.mxu0 0.0
    %861 = vmatprep.subr.mxu0 0.0
    %862 = vmatpush1.xpose.msra.mxu0 0.0
    %863 = vmatprep.subr.mxu0 0.0
    %864 = vmatpush1.xpose.msra.mxu0 0.0
    %865 = vmatprep.subr.mxu0 0.0
    %866 = vmatpush1.xpose.msra.mxu0 0.0
    %867 = vmatprep.subr.mxu0 0.0
    %868 = vmatpush1.xpose.msra.mxu0 0.0
    %869 = vmatprep.subr.mxu0 0.0
    %870 = vmatpush1.xpose.msra.mxu0 0.0
    %871 = vmatprep.subr.mxu0 0.0
    %872 = vmatpush1.xpose.msra.mxu0 0.0
    %873 = vmatprep.subr.mxu0 0.0
    %874 = vmatpush1.xpose.msra.mxu0 0.0
    %875 = vmatprep.subr.mxu0 0.0
    %876 = vmatpush1.xpose.msra.mxu0 0.0
    %877 = vmatprep.subr.mxu0 0.0
    %878 = vmatpush1.xpose.msra.mxu0 0.0
    %879 = vmatprep.subr.mxu0 0.0
    %880 = vmatpush1.xpose.msra.mxu0 0.0
    %881 = vmatprep.subr.mxu0 0.0
    %882 = vmatpush1.xpose.msra.mxu0 0.0
    %883 = vmatprep.subr.mxu0 0.0
    %884 = vmatpush1.xpose.msra.mxu0 0.0
    %885 = vmatprep.subr.mxu0 0.0
    %886 = vmatpush1.xpose.msra.mxu0 0.0
    %887 = vmatprep.subr.mxu0 0.0
    %888 = vmatpush1.xpose.msra.mxu0 0.0
    %889 = vmatprep.subr.mxu0 0.0
    %890 = vmatpush1.xpose.msra.mxu0 0.0
    %891 = vmatprep.subr.mxu0 0.0
    %892 = vmatpush1.xpose.msra.mxu0 0.0
    %893 = vmatprep.subr.mxu0 0.0
    %894 = vmatpush1.xpose.msra.mxu0 0.0
    %895 = vmatprep.subr.mxu0 0.0
    %896 = vmatpush1.xpose.msra.mxu0 0.0
    %897 = vmatprep.subr.mxu0 0.0
    %898 = vmatpush1.xpose.msra.mxu0 0.0
    %899 = vmatprep.subr.mxu0 0.0
    %900 = vmatpush1.xpose.msra.mxu0 0.0
    %901 = vmatprep.subr.mxu0 0.0
    %902 = vmatpush1.xpose.msra.mxu0 0.0
    %903 = vmatprep.subr.mxu0 0.0
    %904 = vmatpush1.xpose.msra.mxu0 0.0
    %905 = vmatprep.subr.mxu0 0.0
    %906 = vmatpush1.xpose.msra.mxu0 0.0
    %907 = vmatprep.subr.mxu0 0.0
    %908 = vmatpush1.xpose.msra.mxu0 0.0
    %909 = vmatprep.subr.mxu0 0.0
    %910 = vmatpush1.xpose.msra.mxu0 0.0
    %911 = vmatprep.subr.mxu0 0.0
    %912 = vmatpush1.xpose.msra.mxu0 0.0
    %913 = vmatprep.mubr.f32.mxu0 0.0
    %914 = vmatmul.mubr.f32.gmra.mrb[0].mxu0 %v845
    %v915 = vpop.f32.mrb[0].mxu0
    %v916 = vadd.f32 %v344, %v915
    %v917 = vpop.f32.mrb[0].mxu0
    %918 = vdwg.mxu0
    %v919 = vsel %vm348, %v916, -inf
    %920 = vmax.xlane.f32.xlu0 %v919
    %v921 = vpop.xlane.xlu0 %920
    %v922 = vsub.f32 %v916, %v921
    %v923 = vmul.f32 %v922, 1.442695
    %v924 = vpow.pop %v923
    %v925 = vsel %vm348, %v924, 0.0
    %926 = vadd.xlane.f32.xlu0 %v925
    %v927 = vpop.xlane.xlu0 %926
    %v928 = vrcp.pop %v927
    %v929 = vmul.f32 %v924, %v928
    %930 = vrot.lane.b32.xlu0 %v331, 40
    %v931 = vpop.permute.xlu0 %930
    %v934 = vsel %vm348, %v929, 0
    %936 = vmatprep.subr.mxu0 0.0
    %937 = vmatpush1.msra.mxu0 %v931
    %938 = vmatprep.subr.mxu0 0.0
    %939 = vmatpush1.msra.mxu0 0.0
    %940 = vmatprep.subr.mxu0 0.0
    %941 = vmatpush1.msra.mxu0 0.0
    %942 = vmatprep.subr.mxu0 0.0
    %943 = vmatpush1.msra.mxu0 0.0
    %944 = vmatprep.subr.mxu0 0.0
    %945 = vmatpush1.msra.mxu0 0.0
    %946 = vmatprep.subr.mxu0 0.0
    %947 = vmatpush1.msra.mxu0 0.0
    %948 = vmatprep.subr.mxu0 0.0
    %949 = vmatpush1.msra.mxu0 0.0
    %950 = vmatprep.subr.mxu0 0.0
    %951 = vmatpush1.msra.mxu0 0.0
    %952 = vmatprep.subr.mxu0 0.0
    %953 = vmatpush1.msra.mxu0 0.0
    %954 = vmatprep.subr.mxu0 0.0
    %955 = vmatpush1.msra.mxu0 0.0
    %956 = vmatprep.subr.mxu0 0.0
    %957 = vmatpush1.msra.mxu0 0.0
    %958 = vmatprep.subr.mxu0 0.0
    %959 = vmatpush1.msra.mxu0 0.0
    %960 = vmatprep.subr.mxu0 0.0
    %961 = vmatpush1.msra.mxu0 0.0
    %962 = vmatprep.subr.mxu0 0.0
    %963 = vmatpush1.msra.mxu0 0.0
    %964 = vmatprep.subr.mxu0 0.0
    %965 = vmatpush1.msra.mxu0 0.0
    %966 = vmatprep.subr.mxu0 0.0
    %967 = vmatpush1.msra.mxu0 0.0
    %968 = vmatprep.subr.mxu0 0.0
    %969 = vmatpush1.msra.mxu0 0.0
    %970 = vmatprep.subr.mxu0 0.0
    %971 = vmatpush1.msra.mxu0 0.0
    %972 = vmatprep.subr.mxu0 0.0
    %973 = vmatpush1.msra.mxu0 0.0
    %974 = vmatprep.subr.mxu0 0.0
    %975 = vmatpush1.msra.mxu0 0.0
    %976 = vmatprep.subr.mxu0 0.0
    %977 = vmatpush1.msra.mxu0 0.0
    %978 = vmatprep.subr.mxu0 0.0
    %979 = vmatpush1.msra.mxu0 0.0
    %980 = vmatprep.subr.mxu0 0.0
    %981 = vmatpush1.msra.mxu0 0.0
    %982 = vmatprep.subr.mxu0 0.0
    %983 = vmatpush1.msra.mxu0 0.0
    %984 = vmatprep.subr.mxu0 0.0
    %985 = vmatpush1.msra.mxu0 0.0
    %986 = vmatprep.subr.mxu0 0.0
    %987 = vmatpush1.msra.mxu0 0.0
    %988 = vmatprep.subr.mxu0 0.0
    %989 = vmatpush1.msra.mxu0 0.0
    %990 = vmatprep.subr.mxu0 0.0
    %991 = vmatpush1.msra.mxu0 0.0
    %992 = vmatprep.subr.mxu0 0.0
    %993 = vmatpush1.msra.mxu0 0.0
    %994 = vmatprep.subr.mxu0 0.0
    %995 = vmatpush1.msra.mxu0 0.0
    %996 = vmatprep.subr.mxu0 0.0
    %997 = vmatpush1.msra.mxu0 0.0
    %998 = vmatprep.subr.mxu0 0.0
    %999 = vmatpush1.msra.mxu0 0.0
    %1000 = vmatprep.mubr.f32.mxu0 0.0
    %1001 = vmatmul.mubr.f32.gmra.mrb[0].mxu0 %v934
    %v1002 = vpop.f32.mrb[0].mxu0
    %v1003 = vadd.f32 0.0, %v1002
    %v1004 = vpop.f32.mrb[0].mxu0
    %1005 = vdwg.mxu0
    %1007 = vrot.lane.b32.xlu0 %v673, 8
    %v1008 = vpop.permute.xlu0 %1007
    %1011 = vrot.lane.b32.xlu0 %v838, 16
    %v1012 = vpop.permute.xlu0 %1011
    %1015 = vrot.lane.b32.xlu0 %v1003, 24
    %v1016 = vpop.permute.xlu0 %1015
    %v1018 = vsel %vm348, %v508, %v1008
    %vm1019 = vcmask 130048
    %v1020 = vsel %vm1019, %v1018, %v1012
    %vm1021 = vcmask 195584
    %v1022 = vsel %vm1021, %v1020, %v1016
    %v1023 = vlaneseq
    %v1024 = vshrl.u32 %v1023, 7
    %v1025 = vsub.s32 1, %v1024
    %v1026 = vrot.slane %v246, %v1025
    %1028 = vrot.lane.b32.xlu0 %v336, 96
    %v1029 = vpop.permute.xlu0 %1028
    %v1031 = vsel %vm348, %v340, 0
    %v1033 = vsel %vm348, %v1029, 0
    %1035 = vmatprep.subr.mxu0 0.0
    %1036 = vmatpush1.xpose.msra.mxu0 %v1033
    %1037 = vmatprep.subr.mxu0 0.0
    %1038 = vmatpush1.xpose.msra.mxu0 0.0
    %1039 = vmatprep.subr.mxu0 0.0
    %1040 = vmatpush1.xpose.msra.mxu0 0.0
    %1041 = vmatprep.subr.mxu0 0.0
    %1042 = vmatpush1.xpose.msra.mxu0 0.0
    %1043 = vmatprep.subr.mxu0 0.0
    %1044 = vmatpush1.xpose.msra.mxu0 0.0
    %1045 = vmatprep.subr.mxu0 0.0
    %1046 = vmatpush1.xpose.msra.mxu0 0.0
    %1047 = vmatprep.subr.mxu0 0.0
    %1048 = vmatpush1.xpose.msra.mxu0 0.0
    %1049 = vmatprep.subr.mxu0 0.0
    %1050 = vmatpush1.xpose.msra.mxu0 0.0
    %1051 = vmatprep.subr.mxu0 0.0
    %1052 = vmatpush1.xpose.msra.mxu0 0.0
    %1053 = vmatprep.subr.mxu0 0.0
    %1054 = vmatpush1.xpose.msra.mxu0 0.0
    %1055 = vmatprep.subr.mxu0 0.0
    %1056 = vmatpush1.xpose.msra.mxu0 0.0
    %1057 = vmatprep.subr.mxu0 0.0
    %1058 = vmatpush1.xpose.msra.mxu0 0.0
    %1059 = vmatprep.subr.mxu0 0.0
    %1060 = vmatpush1.xpose.msra.mxu0 0.0
    %1061 = vmatprep.subr.mxu0 0.0
    %1062 = vmatpush1.xpose.msra.mxu0 0.0
    %1063 = vmatprep.subr.mxu0 0.0
    %1064 = vmatpush1.xpose.msra.mxu0 0.0
    %1065 = vmatprep.subr.mxu0 0.0
    %1066 = vmatpush1.xpose.msra.mxu0 0.0
    %1067 = vmatprep.subr.mxu0 0.0
    %1068 = vmatpush1.xpose.msra.mxu0 0.0
    %1069 = vmatprep.subr.mxu0 0.0
    %1070 = vmatpush1.xpose.msra.mxu0 0.0
    %1071 = vmatprep.subr.mxu0 0.0
    %1072 = vmatpush1.xpose.msra.mxu0 0.0
    %1073 = vmatprep.subr.mxu0 0.0
    %1074 = vmatpush1.xpose.msra.mxu0 0.0
    %1075 = vmatprep.subr.mxu0 0.0
    %1076 = vmatpush1.xpose.msra.mxu0 0.0
    %1077 = vmatprep.subr.mxu0 0.0
    %1078 = vmatpush1.xpose.msra.mxu0 0.0
    %1079 = vmatprep.subr.mxu0 0.0
    %1080 = vmatpush1.xpose.msra.mxu0 0.0
    %1081 = vmatprep.subr.mxu0 0.0
    %1082 = vmatpush1.xpose.msra.mxu0 0.0
    %1083 = vmatprep.subr.mxu0 0.0
    %1084 = vmatpush1.xpose.msra.mxu0 0.0
    %1085 = vmatprep.subr.mxu0 0.0
    %1086 = vmatpush1.xpose.msra.mxu0 0.0
    %1087 = vmatprep.subr.mxu0 0.0
    %1088 = vmatpush1.xpose.msra.mxu0 0.0
    %1089 = vmatprep.subr.mxu0 0.0
    %1090 = vmatpush1.xpose.msra.mxu0 0.0
    %1091 = vmatprep.subr.mxu0 0.0
    %1092 = vmatpush1.xpose.msra.mxu0 0.0
    %1093 = vmatprep.subr.mxu0 0.0
    %1094 = vmatpush1.xpose.msra.mxu0 0.0
    %1095 = vmatprep.subr.mxu0 0.0
    %1096 = vmatpush1.xpose.msra.mxu0 0.0
    %1097 = vmatprep.subr.mxu0 0.0
    %1098 = vmatpush1.xpose.msra.mxu0 0.0
    %1099 = vmatprep.mubr.f32.mxu0 0.0
    %1100 = vmatmul.mubr.f32.gmra.mrb[0].mxu0 %v1031
    %v1101 = vpop.f32.mrb[0].mxu0
    %v1102 = vadd.f32 %v1026, %v1101
    %v1103 = vpop.f32.mrb[0].mxu0
    %1104 = vdwg.mxu0
    %v1105 = vsel %vm348, %v1102, -inf
    %1106 = vmax.xlane.f32.xlu0 %v1105
    %v1107 = vpop.xlane.xlu0 %1106
    %v1108 = vsub.f32 %v1102, %v1107
    %v1109 = vmul.f32 %v1108, 1.442695
    %v1110 = vpow.pop %v1109
    %v1111 = vsel %vm348, %v1110, 0.0
    %1112 = vadd.xlane.f32.xlu0 %v1111
    %v1113 = vpop.xlane.xlu0 %1112
    %v1114 = vrcp.pop %v1113
    %v1115 = vmul.f32 %v1110, %v1114
    %1116 = vrot.lane.b32.xlu0 %v336, 64
    %v1117 = vpop.permute.xlu0 %1116
    %v1120 = vsel %vm348, %v1115, 0
    %1122 = vmatprep.subr.mxu0 0.0
    %1123 = vmatpush1.msra.mxu0 %v1117
    %1124 = vmatprep.subr.mxu0 0.0
    %1125 = vmatpush1.msra.mxu0 0.0
    %1126 = vmatprep.subr.mxu0 0.0
    %1127 = vmatpush1.msra.mxu0 0.0
    %1128 = vmatprep.subr.mxu0 0.0
    %1129 = vmatpush1.msra.mxu0 0.0
    %1130 = vmatprep.subr.mxu0 0.0
    %1131 = vmatpush1.msra.mxu0 0.0
    %1132 = vmatprep.subr.mxu0 0.0
    %1133 = vmatpush1.msra.mxu0 0.0
    %1134 = vmatprep.subr.mxu0 0.0
    %1135 = vmatpush1.msra.mxu0 0.0
    %1136 = vmatprep.subr.mxu0 0.0
    %1137 = vmatpush1.msra.mxu0 0.0
    %1138 = vmatprep.subr.mxu0 0.0
    %1139 = vmatpush1.msra.mxu0 0.0
    %1140 = vmatprep.subr.mxu0 0.0
    %1141 = vmatpush1.msra.mxu0 0.0
    %1142 = vmatprep.subr.mxu0 0.0
    %1143 = vmatpush1.msra.mxu0 0.0
    %1144 = vmatprep.subr.mxu0 0.0
    %1145 = vmatpush1.msra.mxu0 0.0
    %1146 = vmatprep.subr.mxu0 0.0
    %1147 = vmatpush1.msra.mxu0 0.0
    %1148 = vmatprep.subr.mxu0 0.0
    %1149 = vmatpush1.msra.mxu0 0.0
    %1150 = vmatprep.subr.mxu0 0.0
    %1151 = vmatpush1.msra.mxu0 0.0
    %1152 = vmatprep.subr.mxu0 0.0
    %1153 = vmatpush1.msra.mxu0 0.0
    %1154 = vmatprep.subr.mxu0 0.0
    %1155 = vmatpush1.msra.mxu0 0.0
    %1156 = vmatprep.subr.mxu0 0.0
    %1157 = vmatpush1.msra.mxu0 0.0
    %1158 = vmatprep.subr.mxu0 0.0
    %1159 = vmatpush1.msra.mxu0 0.0
    %1160 = vmatprep.subr.mxu0 0.0
    %1161 = vmatpush1.msra.mxu0 0.0
    %1162 = vmatprep.subr.mxu0 0.0
    %1163 = vmatpush1.msra.mxu0 0.0
    %1164 = vmatprep.subr.mxu0 0.0
    %1165 = vmatpush1.msra.mxu0 0.0
    %1166 = vmatprep.subr.mxu0 0.0
    %1167 = vmatpush1.msra.mxu0 0.0
    %1168 = vmatprep.subr.mxu0 0.0
    %1169 = vmatpush1.msra.mxu0 0.0
    %1170 = vmatprep.subr.mxu0 0.0
    %1171 = vmatpush1.msra.mxu0 0.0
    %1172 = vmatprep.subr.mxu0 0.0
    %1173 = vmatpush1.msra.mxu0 0.0
    %1174 = vmatprep.subr.mxu0 0.0
    %1175 = vmatpush1.msra.mxu0 0.0
    %1176 = vmatprep.subr.mxu0 0.0
    %1177 = vmatpush1.msra.mxu0 0.0
    %1178 = vmatprep.subr.mxu0 0.0
    %1179 = vmatpush1.msra.mxu0 0.0
    %1180 = vmatprep.subr.mxu0 0.0
    %1181 = vmatpush1.msra.mxu0 0.0
    %1182 = vmatprep.subr.mxu0 0.0
    %1183 = vmatpush1.msra.mxu0 0.0
    %1184 = vmatprep.subr.mxu0 0.0
    %1185 = vmatpush1.msra.mxu0 0.0
    %1186 = vmatprep.mubr.f32.mxu0 0.0
    %1187 = vmatmul.mubr.f32.gmra.mrb[0].mxu0 %v1120
    %v1188 = vpop.f32.mrb[0].mxu0
    %v1189 = vadd.f32 0.0, %v1188
    %v1190 = vpop.f32.mrb[0].mxu0
    %1191 = vdwg.mxu0
    %1192 = vrot.lane.b32.xlu0 %v340, 120
    %v1193 = vpop.permute.xlu0 %1192
    %1194 = vrot.lane.b32.xlu0 %v336, 88
    %v1195 = vpop.permute.xlu0 %1194
    %v1196 = vsel %vm348, %v1193, 0
    %v1198 = vsel %vm348, %v1195, 0
    %1200 = vmatprep.subr.mxu0 0.0
    %1201 = vmatpush1.xpose.msra.mxu0 %v1198
    %1202 = vmatprep.subr.mxu0 0.0
    %1203 = vmatpush1.xpose.msra.mxu0 0.0
    %1204 = vmatprep.subr.mxu0 0.0
    %1205 = vmatpush1.xpose.msra.mxu0 0.0
    %1206 = vmatprep.subr.mxu0 0.0
    %1207 = vmatpush1.xpose.msra.mxu0 0.0
    %1208 = vmatprep.subr.mxu0 0.0
    %1209 = vmatpush1.xpose.msra.mxu0 0.0
    %1210 = vmatprep.subr.mxu0 0.0
    %1211 = vmatpush1.xpose.msra.mxu0 0.0
    %1212 = vmatprep.subr.mxu0 0.0
    %1213 = vmatpush1.xpose.msra.mxu0 0.0
    %1214 = vmatprep.subr.mxu0 0.0
    %1215 = vmatpush1.xpose.msra.mxu0 0.0
    %1216 = vmatprep.subr.mxu0 0.0
    %1217 = vmatpush1.xpose.msra.mxu0 0.0
    %1218 = vmatprep.subr.mxu0 0.0
    %1219 = vmatpush1.xpose.msra.mxu0 0.0
    %1220 = vmatprep.subr.mxu0 0.0
    %1221 = vmatpush1.xpose.msra.mxu0 0.0
    %1222 = vmatprep.subr.mxu0 0.0
    %1223 = vmatpush1.xpose.msra.mxu0 0.0
    %1224 = vmatprep.subr.mxu0 0.0
    %1225 = vmatpush1.xpose.msra.mxu0 0.0
    %1226 = vmatprep.subr.mxu0 0.0
    %1227 = vmatpush1.xpose.msra.mxu0 0.0
    %1228 = vmatprep.subr.mxu0 0.0
    %1229 = vmatpush1.xpose.msra.mxu0 0.0
    %1230 = vmatprep.subr.mxu0 0.0
    %1231 = vmatpush1.xpose.msra.mxu0 0.0
    %1232 = vmatprep.subr.mxu0 0.0
    %1233 = vmatpush1.xpose.msra.mxu0 0.0
    %1234 = vmatprep.subr.mxu0 0.0
    %1235 = vmatpush1.xpose.msra.mxu0 0.0
    %1236 = vmatprep.subr.mxu0 0.0
    %1237 = vmatpush1.xpose.msra.mxu0 0.0
    %1238 = vmatprep.subr.mxu0 0.0
    %1239 = vmatpush1.xpose.msra.mxu0 0.0
    %1240 = vmatprep.subr.mxu0 0.0
    %1241 = vmatpush1.xpose.msra.mxu0 0.0
    %1242 = vmatprep.subr.mxu0 0.0
    %1243 = vmatpush1.xpose.msra.mxu0 0.0
    %1244 = vmatprep.subr.mxu0 0.0
    %1245 = vmatpush1.xpose.msra.mxu0 0.0
    %1246 = vmatprep.subr.mxu0 0.0
    %1247 = vmatpush1.xpose.msra.mxu0 0.0
    %1248 = vmatprep.subr.mxu0 0.0
    %1249 = vmatpush1.xpose.msra.mxu0 0.0
    %1250 = vmatprep.subr.mxu0 0.0
    %1251 = vmatpush1.xpose.msra.mxu0 0.0
    %1252 = vmatprep.subr.mxu0 0.0
    %1253 = vmatpush1.xpose.msra.mxu0 0.0
    %1254 = vmatprep.subr.mxu0 0.0
    %1255 = vmatpush1.xpose.msra.mxu0 0.0
    %1256 = vmatprep.subr.mxu0 0.0
    %1257 = vmatpush1.xpose.msra.mxu0 0.0
    %1258 = vmatprep.subr.mxu0 0.0
    %1259 = vmatpush1.xpose.msra.mxu0 0.0
    %1260 = vmatprep.subr.mxu0 0.0
    %1261 = vmatpush1.xpose.msra.mxu0 0.0
    %1262 = vmatprep.subr.mxu0 0.0
    %1263 = vmatpush1.xpose.msra.mxu0 0.0
    %1264 = vmatprep.mubr.f32.mxu0 0.0
    %1265 = vmatmul.mubr.f32.gmra.mrb[0].mxu0 %v1196
    %v1266 = vpop.f32.mrb[0].mxu0
    %v1267 = vadd.f32 %v1026, %v1266
    %v1268 = vpop.f32.mrb[0].mxu0
    %1269 = vdwg.mxu0
    %v1270 = vsel %vm348, %v1267, -inf
    %1271 = vmax.xlane.f32.xlu0 %v1270
    %v1272 = vpop.xlane.xlu0 %1271
    %v1273 = vsub.f32 %v1267, %v1272
    %v1274 = vmul.f32 %v1273, 1.442695
    %v1275 = vpow.pop %v1274
    %v1276 = vsel %vm348, %v1275, 0.0
    %1277 = vadd.xlane.f32.xlu0 %v1276
    %v1278 = vpop.xlane.xlu0 %1277
    %v1279 = vrcp.pop %v1278
    %v1280 = vmul.f32 %v1275, %v1279
    %1281 = vrot.lane.b32.xlu0 %v336, 56
    %v1282 = vpop.permute.xlu0 %1281
    %v1285 = vsel %vm348, %v1280, 0
    %1287 = vmatprep.subr.mxu0 0.0
    %1288 = vmatpush1.msra.mxu0 %v1282
    %1289 = vmatprep.subr.mxu0 0.0
    %1290 = vmatpush1.msra.mxu0 0.0
    %1291 = vmatprep.subr.mxu0 0.0
    %1292 = vmatpush1.msra.mxu0 0.0
    %1293 = vmatprep.subr.mxu0 0.0
    %1294 = vmatpush1.msra.mxu0 0.0
    %1295 = vmatprep.subr.mxu0 0.0
    %1296 = vmatpush1.msra.mxu0 0.0
    %1297 = vmatprep.subr.mxu0 0.0
    %1298 = vmatpush1.msra.mxu0 0.0
    %1299 = vmatprep.subr.mxu0 0.0
    %1300 = vmatpush1.msra.mxu0 0.0
    %1301 = vmatprep.subr.mxu0 0.0
    %1302 = vmatpush1.msra.mxu0 0.0
    %1303 = vmatprep.subr.mxu0 0.0
    %1304 = vmatpush1.msra.mxu0 0.0
    %1305 = vmatprep.subr.mxu0 0.0
    %1306 = vmatpush1.msra.mxu0 0.0
    %1307 = vmatprep.subr.mxu0 0.0
    %1308 = vmatpush1.msra.mxu0 0.0
    %1309 = vmatprep.subr.mxu0 0.0
    %1310 = vmatpush1.msra.mxu0 0.0
    %1311 = vmatprep.subr.mxu0 0.0
    %1312 = vmatpush1.msra.mxu0 0.0
    %1313 = vmatprep.subr.mxu0 0.0
    %1314 = vmatpush1.msra.mxu0 0.0
    %1315 = vmatprep.subr.mxu0 0.0
    %1316 = vmatpush1.msra.mxu0 0.0
    %1317 = vmatprep.subr.mxu0 0.0
    %1318 = vmatpush1.msra.mxu0 0.0
    %1319 = vmatprep.subr.mxu0 0.0
    %1320 = vmatpush1.msra.mxu0 0.0
    %1321 = vmatprep.subr.mxu0 0.0
    %1322 = vmatpush1.msra.mxu0 0.0
    %1323 = vmatprep.subr.mxu0 0.0
    %1324 = vmatpush1.msra.mxu0 0.0
    %1325 = vmatprep.subr.mxu0 0.0
    %1326 = vmatpush1.msra.mxu0 0.0
    %1327 = vmatprep.subr.mxu0 0.0
    %1328 = vmatpush1.msra.mxu0 0.0
    %1329 = vmatprep.subr.mxu0 0.0
    %1330 = vmatpush1.msra.mxu0 0.0
    %1331 = vmatprep.subr.mxu0 0.0
    %1332 = vmatpush1.msra.mxu0 0.0
    %1333 = vmatprep.subr.mxu0 0.0
    %1334 = vmatpush1.msra.mxu0 0.0
    %1335 = vmatprep.subr.mxu0 0.0
    %1336 = vmatpush1.msra.mxu0 0.0
    %1337 = vmatprep.subr.mxu0 0.0
    %1338 = vmatpush1.msra.mxu0 0.0
    %1339 = vmatprep.subr.mxu0 0.0
    %1340 = vmatpush1.msra.mxu0 0.0
    %1341 = vmatprep.subr.mxu0 0.0
    %1342 = vmatpush1.msra.mxu0 0.0
    %1343 = vmatprep.subr.mxu0 0.0
    %1344 = vmatpush1.msra.mxu0 0.0
    %1345 = vmatprep.subr.mxu0 0.0
    %1346 = vmatpush1.msra.mxu0 0.0
    %1347 = vmatprep.subr.mxu0 0.0
    %1348 = vmatpush1.msra.mxu0 0.0
    %1349 = vmatprep.subr.mxu0 0.0
    %1350 = vmatpush1.msra.mxu0 0.0
    %1351 = vmatprep.mubr.f32.mxu0 0.0
    %1352 = vmatmul.mubr.f32.gmra.mrb[0].mxu0 %v1285
    %v1353 = vpop.f32.mrb[0].mxu0
    %v1354 = vadd.f32 0.0, %v1353
    %v1355 = vpop.f32.mrb[0].mxu0
    %1356 = vdwg.mxu0
    %1357 = vrot.lane.b32.xlu0 %v340, 112
    %v1358 = vpop.permute.xlu0 %1357
    %1359 = vrot.lane.b32.xlu0 %v336, 80
    %v1360 = vpop.permute.xlu0 %1359
    %v1361 = vsel %vm348, %v1358, 0
    %v1363 = vsel %vm348, %v1360, 0
    %1365 = vmatprep.subr.mxu0 0.0
    %1366 = vmatpush1.xpose.msra.mxu0 %v1363
    %1367 = vmatprep.subr.mxu0 0.0
    %1368 = vmatpush1.xpose.msra.mxu0 0.0
    %1369 = vmatprep.subr.mxu0 0.0
    %1370 = vmatpush1.xpose.msra.mxu0 0.0
    %1371 = vmatprep.subr.mxu0 0.0
    %1372 = vmatpush1.xpose.msra.mxu0 0.0
    %1373 = vmatprep.subr.mxu0 0.0
    %1374 = vmatpush1.xpose.msra.mxu0 0.0
    %1375 = vmatprep.subr.mxu0 0.0
    %1376 = vmatpush1.xpose.msra.mxu0 0.0
    %1377 = vmatprep.subr.mxu0 0.0
    %1378 = vmatpush1.xpose.msra.mxu0 0.0
    %1379 = vmatprep.subr.mxu0 0.0
    %1380 = vmatpush1.xpose.msra.mxu0 0.0
    %1381 = vmatprep.subr.mxu0 0.0
    %1382 = vmatpush1.xpose.msra.mxu0 0.0
    %1383 = vmatprep.subr.mxu0 0.0
    %1384 = vmatpush1.xpose.msra.mxu0 0.0
    %1385 = vmatprep.subr.mxu0 0.0
    %1386 = vmatpush1.xpose.msra.mxu0 0.0
    %1387 = vmatprep.subr.mxu0 0.0
    %1388 = vmatpush1.xpose.msra.mxu0 0.0
    %1389 = vmatprep.subr.mxu0 0.0
    %1390 = vmatpush1.xpose.msra.mxu0 0.0
    %1391 = vmatprep.subr.mxu0 0.0
    %1392 = vmatpush1.xpose.msra.mxu0 0.0
    %1393 = vmatprep.subr.mxu0 0.0
    %1394 = vmatpush1.xpose.msra.mxu0 0.0
    %1395 = vmatprep.subr.mxu0 0.0
    %1396 = vmatpush1.xpose.msra.mxu0 0.0
    %1397 = vmatprep.subr.mxu0 0.0
    %1398 = vmatpush1.xpose.msra.mxu0 0.0
    %1399 = vmatprep.subr.mxu0 0.0
    %1400 = vmatpush1.xpose.msra.mxu0 0.0
    %1401 = vmatprep.subr.mxu0 0.0
    %1402 = vmatpush1.xpose.msra.mxu0 0.0
    %1403 = vmatprep.subr.mxu0 0.0
    %1404 = vmatpush1.xpose.msra.mxu0 0.0
    %1405 = vmatprep.subr.mxu0 0.0
    %1406 = vmatpush1.xpose.msra.mxu0 0.0
    %1407 = vmatprep.subr.mxu0 0.0
    %1408 = vmatpush1.xpose.msra.mxu0 0.0
    %1409 = vmatprep.subr.mxu0 0.0
    %1410 = vmatpush1.xpose.msra.mxu0 0.0
    %1411 = vmatprep.subr.mxu0 0.0
    %1412 = vmatpush1.xpose.msra.mxu0 0.0
    %1413 = vmatprep.subr.mxu0 0.0
    %1414 = vmatpush1.xpose.msra.mxu0 0.0
    %1415 = vmatprep.subr.mxu0 0.0
    %1416 = vmatpush1.xpose.msra.mxu0 0.0
    %1417 = vmatprep.subr.mxu0 0.0
    %1418 = vmatpush1.xpose.msra.mxu0 0.0
    %1419 = vmatprep.subr.mxu0 0.0
    %1420 = vmatpush1.xpose.msra.mxu0 0.0
    %1421 = vmatprep.subr.mxu0 0.0
    %1422 = vmatpush1.xpose.msra.mxu0 0.0
    %1423 = vmatprep.subr.mxu0 0.0
    %1424 = vmatpush1.xpose.msra.mxu0 0.0
    %1425 = vmatprep.subr.mxu0 0.0
    %1426 = vmatpush1.xpose.msra.mxu0 0.0
    %1427 = vmatprep.subr.mxu0 0.0
    %1428 = vmatpush1.xpose.msra.mxu0 0.0
    %1429 = vmatprep.mubr.f32.mxu0 0.0
    %1430 = vmatmul.mubr.f32.gmra.mrb[0].mxu0 %v1361
    %v1431 = vpop.f32.mrb[0].mxu0
    %v1432 = vadd.f32 %v1026, %v1431
    %v1433 = vpop.f32.mrb[0].mxu0
    %1434 = vdwg.mxu0
    %v1435 = vsel %vm348, %v1432, -inf
    %1436 = vmax.xlane.f32.xlu0 %v1435
    %v1437 = vpop.xlane.xlu0 %1436
    %v1438 = vsub.f32 %v1432, %v1437
    %v1439 = vmul.f32 %v1438, 1.442695
    %v1440 = vpow.pop %v1439
    %v1441 = vsel %vm348, %v1440, 0.0
    %1442 = vadd.xlane.f32.xlu0 %v1441
    %v1443 = vpop.xlane.xlu0 %1442
    %v1444 = vrcp.pop %v1443
    %v1445 = vmul.f32 %v1440, %v1444
    %1446 = vrot.lane.b32.xlu0 %v336, 48
    %v1447 = vpop.permute.xlu0 %1446
    %v1450 = vsel %vm348, %v1445, 0
    %1452 = vmatprep.subr.mxu0 0.0
    %1453 = vmatpush1.msra.mxu0 %v1447
    %1454 = vmatprep.subr.mxu0 0.0
    %1455 = vmatpush1.msra.mxu0 0.0
    %1456 = vmatprep.subr.mxu0 0.0
    %1457 = vmatpush1.msra.mxu0 0.0
    %1458 = vmatprep.subr.mxu0 0.0
    %1459 = vmatpush1.msra.mxu0 0.0
    %1460 = vmatprep.subr.mxu0 0.0
    %1461 = vmatpush1.msra.mxu0 0.0
    %1462 = vmatprep.subr.mxu0 0.0
    %1463 = vmatpush1.msra.mxu0 0.0
    %1464 = vmatprep.subr.mxu0 0.0
    %1465 = vmatpush1.msra.mxu0 0.0
    %1466 = vmatprep.subr.mxu0 0.0
    %1467 = vmatpush1.msra.mxu0 0.0
    %1468 = vmatprep.subr.mxu0 0.0
    %1469 = vmatpush1.msra.mxu0 0.0
    %1470 = vmatprep.subr.mxu0 0.0
    %1471 = vmatpush1.msra.mxu0 0.0
    %1472 = vmatprep.subr.mxu0 0.0
    %1473 = vmatpush1.msra.mxu0 0.0
    %1474 = vmatprep.subr.mxu0 0.0
    %1475 = vmatpush1.msra.mxu0 0.0
    %1476 = vmatprep.subr.mxu0 0.0
    %1477 = vmatpush1.msra.mxu0 0.0
    %1478 = vmatprep.subr.mxu0 0.0
    %1479 = vmatpush1.msra.mxu0 0.0
    %1480 = vmatprep.subr.mxu0 0.0
    %1481 = vmatpush1.msra.mxu0 0.0
    %1482 = vmatprep.subr.mxu0 0.0
    %1483 = vmatpush1.msra.mxu0 0.0
    %1484 = vmatprep.subr.mxu0 0.0
    %1485 = vmatpush1.msra.mxu0 0.0
    %1486 = vmatprep.subr.mxu0 0.0
    %1487 = vmatpush1.msra.mxu0 0.0
    %1488 = vmatprep.subr.mxu0 0.0
    %1489 = vmatpush1.msra.mxu0 0.0
    %1490 = vmatprep.subr.mxu0 0.0
    %1491 = vmatpush1.msra.mxu0 0.0
    %1492 = vmatprep.subr.mxu0 0.0
    %1493 = vmatpush1.msra.mxu0 0.0
    %1494 = vmatprep.subr.mxu0 0.0
    %1495 = vmatpush1.msra.mxu0 0.0
    %1496 = vmatprep.subr.mxu0 0.0
    %1497 = vmatpush1.msra.mxu0 0.0
    %1498 = vmatprep.subr.mxu0 0.0
    %1499 = vmatpush1.msra.mxu0 0.0
    %1500 = vmatprep.subr.mxu0 0.0
    %1501 = vmatpush1.msra.mxu0 0.0
    %1502 = vmatprep.subr.mxu0 0.0
    %1503 = vmatpush1.msra.mxu0 0.0
    %1504 = vmatprep.subr.mxu0 0.0
    %1505 = vmatpush1.msra.mxu0 0.0
    %1506 = vmatprep.subr.mxu0 0.0
    %1507 = vmatpush1.msra.mxu0 0.0
    %1508 = vmatprep.subr.mxu0 0.0
    %1509 = vmatpush1.msra.mxu0 0.0
    %1510 = vmatprep.subr.mxu0 0.0
    %1511 = vmatpush1.msra.mxu0 0.0
    %1512 = vmatprep.subr.mxu0 0.0
    %1513 = vmatpush1.msra.mxu0 0.0
    %1514 = vmatprep.subr.mxu0 0.0
    %1515 = vmatpush1.msra.mxu0 0.0
    %1516 = vmatprep.mubr.f32.mxu0 0.0
    %1517 = vmatmul.mubr.f32.gmra.mrb[0].mxu0 %v1450
    %v1518 = vpop.f32.mrb[0].mxu0
    %v1519 = vadd.f32 0.0, %v1518
    %v1520 = vpop.f32.mrb[0].mxu0
    %1521 = vdwg.mxu0
    %1522 = vrot.lane.b32.xlu0 %v340, 104
    %v1523 = vpop.permute.xlu0 %1522
    %1524 = vrot.lane.b32.xlu0 %v336, 72
    %v1525 = vpop.permute.xlu0 %1524
    %v1526 = vsel %vm348, %v1523, 0
    %v1528 = vsel %vm348, %v1525, 0
    %1530 = vmatprep.subr.mxu0 0.0
    %1531 = vmatpush1.xpose.msra.mxu0 %v1528
    %1532 = vmatprep.subr.mxu0 0.0
    %1533 = vmatpush1.xpose.msra.mxu0 0.0
    %1534 = vmatprep.subr.mxu0 0.0
    %1535 = vmatpush1.xpose.msra.mxu0 0.0
    %1536 = vmatprep.subr.mxu0 0.0
    %1537 = vmatpush1.xpose.msra.mxu0 0.0
    %1538 = vmatprep.subr.mxu0 0.0
    %1539 = vmatpush1.xpose.msra.mxu0 0.0
    %1540 = vmatprep.subr.mxu0 0.0
    %1541 = vmatpush1.xpose.msra.mxu0 0.0
    %1542 = vmatprep.subr.mxu0 0.0
    %1543 = vmatpush1.xpose.msra.mxu0 0.0
    %1544 = vmatprep.subr.mxu0 0.0
    %1545 = vmatpush1.xpose.msra.mxu0 0.0
    %1546 = vmatprep.subr.mxu0 0.0
    %1547 = vmatpush1.xpose.msra.mxu0 0.0
    %1548 = vmatprep.subr.mxu0 0.0
    %1549 = vmatpush1.xpose.msra.mxu0 0.0
    %1550 = vmatprep.subr.mxu0 0.0
    %1551 = vmatpush1.xpose.msra.mxu0 0.0
    %1552 = vmatprep.subr.mxu0 0.0
    %1553 = vmatpush1.xpose.msra.mxu0 0.0
    %1554 = vmatprep.subr.mxu0 0.0
    %1555 = vmatpush1.xpose.msra.mxu0 0.0
    %1556 = vmatprep.subr.mxu0 0.0
    %1557 = vmatpush1.xpose.msra.mxu0 0.0
    %1558 = vmatprep.subr.mxu0 0.0
    %1559 = vmatpush1.xpose.msra.mxu0 0.0
    %1560 = vmatprep.subr.mxu0 0.0
    %1561 = vmatpush1.xpose.msra.mxu0 0.0
    %1562 = vmatprep.subr.mxu0 0.0
    %1563 = vmatpush1.xpose.msra.mxu0 0.0
    %1564 = vmatprep.subr.mxu0 0.0
    %1565 = vmatpush1.xpose.msra.mxu0 0.0
    %1566 = vmatprep.subr.mxu0 0.0
    %1567 = vmatpush1.xpose.msra.mxu0 0.0
    %1568 = vmatprep.subr.mxu0 0.0
    %1569 = vmatpush1.xpose.msra.mxu0 0.0
    %1570 = vmatprep.subr.mxu0 0.0
    %1571 = vmatpush1.xpose.msra.mxu0 0.0
    %1572 = vmatprep.subr.mxu0 0.0
    %1573 = vmatpush1.xpose.msra.mxu0 0.0
    %1574 = vmatprep.subr.mxu0 0.0
    %1575 = vmatpush1.xpose.msra.mxu0 0.0
    %1576 = vmatprep.subr.mxu0 0.0
    %1577 = vmatpush1.xpose.msra.mxu0 0.0
    %1578 = vmatprep.subr.mxu0 0.0
    %1579 = vmatpush1.xpose.msra.mxu0 0.0
    %1580 = vmatprep.subr.mxu0 0.0
    %1581 = vmatpush1.xpose.msra.mxu0 0.0
    %1582 = vmatprep.subr.mxu0 0.0
    %1583 = vmatpush1.xpose.msra.mxu0 0.0
    %1584 = vmatprep.subr.mxu0 0.0
    %1585 = vmatpush1.xpose.msra.mxu0 0.0
    %1586 = vmatprep.subr.mxu0 0.0
    %1587 = vmatpush1.xpose.msra.mxu0 0.0
    %1588 = vmatprep.subr.mxu0 0.0
    %1589 = vmatpush1.xpose.msra.mxu0 0.0
    %1590 = vmatprep.subr.mxu0 0.0
    %1591 = vmatpush1.xpose.msra.mxu0 0.0
    %1592 = vmatprep.subr.mxu0 0.0
    %1593 = vmatpush1.xpose.msra.mxu0 0.0
    %1594 = vmatprep.mubr.f32.mxu0 0.0
    %1595 = vmatmul.mubr.f32.gmra.mrb[0].mxu0 %v1526
    %v1596 = vpop.f32.mrb[0].mxu0
    %v1597 = vadd.f32 %v1026, %v1596
    %v1598 = vpop.f32.mrb[0].mxu0
    %1599 = vdwg.mxu0
    %v1600 = vsel %vm348, %v1597, -inf
    %1601 = vmax.xlane.f32.xlu0 %v1600
    %v1602 = vpop.xlane.xlu0 %1601
    %v1603 = vsub.f32 %v1597, %v1602
    %v1604 = vmul.f32 %v1603, 1.442695
    %v1605 = vpow.pop %v1604
    %v1606 = vsel %vm348, %v1605, 0.0
    %1607 = vadd.xlane.f32.xlu0 %v1606
    %v1608 = vpop.xlane.xlu0 %1607
    %v1609 = vrcp.pop %v1608
    %v1610 = vmul.f32 %v1605, %v1609
    %1611 = vrot.lane.b32.xlu0 %v336, 40
    %v1612 = vpop.permute.xlu0 %1611
    %v1615 = vsel %vm348, %v1610, 0
    %1617 = vmatprep.subr.mxu0 0.0
    %1618 = vmatpush1.msra.mxu0 %v1612
    %1619 = vmatprep.subr.mxu0 0.0
    %1620 = vmatpush1.msra.mxu0 0.0
    %1621 = vmatprep.subr.mxu0 0.0
    %1622 = vmatpush1.msra.mxu0 0.0
    %1623 = vmatprep.subr.mxu0 0.0
    %1624 = vmatpush1.msra.mxu0 0.0
    %1625 = vmatprep.subr.mxu0 0.0
    %1626 = vmatpush1.msra.mxu0 0.0
    %1627 = vmatprep.subr.mxu0 0.0
    %1628 = vmatpush1.msra.mxu0 0.0
    %1629 = vmatprep.subr.mxu0 0.0
    %1630 = vmatpush1.msra.mxu0 0.0
    %1631 = vmatprep.subr.mxu0 0.0
    %1632 = vmatpush1.msra.mxu0 0.0
    %1633 = vmatprep.subr.mxu0 0.0
    %1634 = vmatpush1.msra.mxu0 0.0
    %1635 = vmatprep.subr.mxu0 0.0
    %1636 = vmatpush1.msra.mxu0 0.0
    %1637 = vmatprep.subr.mxu0 0.0
    %1638 = vmatpush1.msra.mxu0 0.0
    %1639 = vmatprep.subr.mxu0 0.0
    %1640 = vmatpush1.msra.mxu0 0.0
    %1641 = vmatprep.subr.mxu0 0.0
    %1642 = vmatpush1.msra.mxu0 0.0
    %1643 = vmatprep.subr.mxu0 0.0
    %1644 = vmatpush1.msra.mxu0 0.0
    %1645 = vmatprep.subr.mxu0 0.0
    %1646 = vmatpush1.msra.mxu0 0.0
    %1647 = vmatprep.subr.mxu0 0.0
    %1648 = vmatpush1.msra.mxu0 0.0
    %1649 = vmatprep.subr.mxu0 0.0
    %1650 = vmatpush1.msra.mxu0 0.0
    %1651 = vmatprep.subr.mxu0 0.0
    %1652 = vmatpush1.msra.mxu0 0.0
    %1653 = vmatprep.subr.mxu0 0.0
    %1654 = vmatpush1.msra.mxu0 0.0
    %1655 = vmatprep.subr.mxu0 0.0
    %1656 = vmatpush1.msra.mxu0 0.0
    %1657 = vmatprep.subr.mxu0 0.0
    %1658 = vmatpush1.msra.mxu0 0.0
    %1659 = vmatprep.subr.mxu0 0.0
    %1660 = vmatpush1.msra.mxu0 0.0
    %1661 = vmatprep.subr.mxu0 0.0
    %1662 = vmatpush1.msra.mxu0 0.0
    %1663 = vmatprep.subr.mxu0 0.0
    %1664 = vmatpush1.msra.mxu0 0.0
    %1665 = vmatprep.subr.mxu0 0.0
    %1666 = vmatpush1.msra.mxu0 0.0
    %1667 = vmatprep.subr.mxu0 0.0
    %1668 = vmatpush1.msra.mxu0 0.0
    %1669 = vmatprep.subr.mxu0 0.0
    %1670 = vmatpush1.msra.mxu0 0.0
    %1671 = vmatprep.subr.mxu0 0.0
    %1672 = vmatpush1.msra.mxu0 0.0
    %1673 = vmatprep.subr.mxu0 0.0
    %1674 = vmatpush1.msra.mxu0 0.0
    %1675 = vmatprep.subr.mxu0 0.0
    %1676 = vmatpush1.msra.mxu0 0.0
    %1677 = vmatprep.subr.mxu0 0.0
    %1678 = vmatpush1.msra.mxu0 0.0
    %1679 = vmatprep.subr.mxu0 0.0
    %1680 = vmatpush1.msra.mxu0 0.0
    %1681 = vmatprep.mubr.f32.mxu0 0.0
    %1682 = vmatmul.mubr.f32.gmra.mrb[0].mxu0 %v1615
    %v1683 = vpop.f32.mrb[0].mxu0
    %v1684 = vadd.f32 0.0, %v1683
    %v1685 = vpop.f32.mrb[0].mxu0
    %1686 = vdwg.mxu0
    %1688 = vrot.lane.b32.xlu0 %v1354, 8
    %v1689 = vpop.permute.xlu0 %1688
    %1692 = vrot.lane.b32.xlu0 %v1519, 16
    %v1693 = vpop.permute.xlu0 %1692
    %1696 = vrot.lane.b32.xlu0 %v1684, 24
    %v1697 = vpop.permute.xlu0 %1696
    %v1699 = vsel %vm348, %v1189, %v1689
    %v1700 = vsel %vm1019, %v1699, %v1693
    %v1701 = vsel %vm1021, %v1700, %v1697
    %v1702 = vld [vmem:[%s9] sm:$0xff]
    %v1703 = vld [vmem:[%s9 + $0x8] sm:$0xff]
    %v1704 = vld [vmem:[%s9 + $0x10] sm:$0xff]
    %v1705 = vld [vmem:[%s9 + $0x18] sm:$0xff]
    %v1706 = vld [vmem:[%s10] sm:$0x1]
    %v1708 = vlaneseq
    %v1709 = vshrl.u32 %v1708, 7
    %v1710 = vsub.s32 0, %v1709
    %v1711 = vrot.slane %v1706, %v1710
    %v1714 = vsel %vm200, %v1022, 0
    %v1717 = vsel %vm200, %v1701, 0
    %1719 = vmatprep.subr.mxu0 0.0
    %1720 = vmatpush1.msra.mxu0 %v1702
    %1721 = vmatprep.subr.mxu0 0.0
    %1722 = vmatpush1.msra.mxu0 %v1703
    %1723 = vmatprep.subr.mxu0 0.0
    %1724 = vmatpush1.msra.mxu0 %v1704
    %1725 = vmatprep.subr.mxu0 0.0
    %1726 = vmatpush1.msra.mxu0 %v1705
    %1727 = vmatprep.subr.mxu0 0.0
    %1728 = vmatpush1.msra.mxu0 0.0
    %1729 = vmatprep.subr.mxu0 0.0
    %1730 = vmatpush1.msra.mxu0 0.0
    %1731 = vmatprep.subr.mxu0 0.0
    %1732 = vmatpush1.msra.mxu0 0.0
    %1733 = vmatprep.subr.mxu0 0.0
    %1734 = vmatpush1.msra.mxu0 0.0
    %1735 = vmatprep.subr.mxu0 0.0
    %1736 = vmatpush1.msra.mxu0 0.0
    %1737 = vmatprep.subr.mxu0 0.0
    %1738 = vmatpush1.msra.mxu0 0.0
    %1739 = vmatprep.subr.mxu0 0.0
    %1740 = vmatpush1.msra.mxu0 0.0
    %1741 = vmatprep.subr.mxu0 0.0
    %1742 = vmatpush1.msra.mxu0 0.0
    %1743 = vmatprep.subr.mxu0 0.0
    %1744 = vmatpush1.msra.mxu0 0.0
    %1745 = vmatprep.subr.mxu0 0.0
    %1746 = vmatpush1.msra.mxu0 0.0
    %1747 = vmatprep.subr.mxu0 0.0
    %1748 = vmatpush1.msra.mxu0 0.0
    %1749 = vmatprep.subr.mxu0 0.0
    %1750 = vmatpush1.msra.mxu0 0.0
    %1751 = vmatprep.subr.mxu0 0.0
    %1752 = vmatpush1.msra.mxu0 0.0
    %1753 = vmatprep.subr.mxu0 0.0
    %1754 = vmatpush1.msra.mxu0 0.0
    %1755 = vmatprep.subr.mxu0 0.0
    %1756 = vmatpush1.msra.mxu0 0.0
    %1757 = vmatprep.subr.mxu0 0.0
    %1758 = vmatpush1.msra.mxu0 0.0
    %1759 = vmatprep.subr.mxu0 0.0
    %1760 = vmatpush1.msra.mxu0 0.0
    %1761 = vmatprep.subr.mxu0 0.0
    %1762 = vmatpush1.msra.mxu0 0.0
    %1763 = vmatprep.subr.mxu0 0.0
    %1764 = vmatpush1.msra.mxu0 0.0
    %1765 = vmatprep.subr.mxu0 0.0
    %1766 = vmatpush1.msra.mxu0 0.0
    %1767 = vmatprep.subr.mxu0 0.0
    %1768 = vmatpush1.msra.mxu0 0.0
    %1769 = vmatprep.subr.mxu0 0.0
    %1770 = vmatpush1.msra.mxu0 0.0
    %1771 = vmatprep.subr.mxu0 0.0
    %1772 = vmatpush1.msra.mxu0 0.0
    %1773 = vmatprep.subr.mxu0 0.0
    %1774 = vmatpush1.msra.mxu0 0.0
    %1775 = vmatprep.subr.mxu0 0.0
    %1776 = vmatpush1.msra.mxu0 0.0
    %1777 = vmatprep.subr.mxu0 0.0
    %1778 = vmatpush1.msra.mxu0 0.0
    %1779 = vmatprep.subr.mxu0 0.0
    %1780 = vmatpush1.msra.mxu0 0.0
    %1781 = vmatprep.subr.mxu0 0.0
    %1782 = vmatpush1.msra.mxu0 0.0
    %1783 = vmatprep.mubr.f32.mxu0 0.0
    %1784 = vmatmul.mubr.f32.gmra.mrb[0].mxu0 %v1714
    %v1785 = vpop.f32.mrb[0].mxu0
    %v1786 = vadd.f32 %v1711, %v1785
    %v1787 = vpop.f32.mrb[0].mxu0
    %1788 = vmatprep.mubr.f32.mxu0 0.0
    %1789 = vmatmul.mubr.f32.gmra.mrb[0].mxu0 %v1717
    %v1790 = vpop.f32.mrb[0].mxu0
    %v1791 = vadd.f32 %v1711, %v1790
    %v1792 = vpop.f32.mrb[0].mxu0
    %1793 = vdwg.mxu0
    %v1794 = vadd.f32 %v1786, %v242
    %v1795 = vadd.f32 %v1791, %v243
    %v1796 = vld [vmem:[%s11] sm:$0x1]
    %v1797 = vld [vmem:[%s12] sm:$0x1]
    %v1798 = vsel %vm200, %v1794, 0.0
    %1799 = vadd.xlane.f32.xlu0 %v1798
    %v1800 = vpop.xlane.xlu0 %1799
    %v1801 = vsel %vm200, %v1795, 0.0
    %1802 = vadd.xlane.f32.xlu0 %v1801
    %v1803 = vpop.xlane.xlu0 %1802
    %v1804 = vmul.f32 %v1800, %v207
    %v1805 = vmul.f32 %v1803, %v207
    %v1806 = vsub.f32 %v1794, %v1804
    %v1807 = vsub.f32 %v1795, %v1805
    %v1808 = vmul.f32 %v1806, %v1806
    %v1809 = vmul.f32 %v1807, %v1807
    %v1810 = vsel %vm200, %v1808, 0.0
    %1811 = vadd.xlane.f32.xlu0 %v1810
    %v1812 = vpop.xlane.xlu0 %1811
    %v1813 = vsel %vm200, %v1809, 0.0
    %1814 = vadd.xlane.f32.xlu0 %v1813
    %v1815 = vpop.xlane.xlu0 %1814
    %v1816 = vmul.f32 %v1812, %v207
    %v1817 = vmul.f32 %v1815, %v207
    %v1818 = vadd.f32 %v1816, 1e-12
    %v1819 = vadd.f32 %v1817, 1e-12
    %v1820 = vrsqrt.pop %v1818
    %v1821 = vrsqrt.pop %v1819
    %v1822 = vmul.f32 %v1806, %v1820
    %v1823 = vmul.f32 %v1807, %v1821
    %v1825 = vlaneseq
    %v1826 = vshrl.u32 %v1825, 7
    %v1827 = vsub.s32 0, %v1826
    %v1828 = vrot.slane %v1796, %v1827
    %v1830 = vmul.f32 %v1822, %v1828
    %v1831 = vmul.f32 %v1823, %v1828
    %v1833 = vlaneseq
    %v1834 = vshrl.u32 %v1833, 7
    %v1835 = vsub.s32 0, %v1834
    %v1836 = vrot.slane %v1797, %v1835
    %v1838 = vadd.f32 %v1830, %v1836
    %v1839 = vadd.f32 %v1831, %v1836
    %v1840 = vld [vmem:[%s13] sm:$0xff]
    %v1841 = vld [vmem:[%s13 + $0x8] sm:$0xff]
    %v1842 = vld [vmem:[%s13 + $0x10] sm:$0xff]
    %v1843 = vld [vmem:[%s13 + $0x18] sm:$0xff]
    %v1844 = vld [vmem:[%s14] sm:$0x1]
    %v1846 = vlaneseq
    %v1847 = vshrl.u32 %v1846, 7
    %v1848 = vsub.s32 0, %v1847
    %v1849 = vrot.slane %v1844, %v1848
    %v1852 = vsel %vm200, %v1838, 0
    %v1855 = vsel %vm200, %v1839, 0
    %1857 = vmatprep.subr.mxu0 0.0
    %1858 = vmatpush1.msra.mxu0 %v1840
    %1859 = vmatprep.subr.mxu0 0.0
    %1860 = vmatpush1.msra.mxu0 %v1841
    %1861 = vmatprep.subr.mxu0 0.0
    %1862 = vmatpush1.msra.mxu0 %v1842
    %1863 = vmatprep.subr.mxu0 0.0
    %1864 = vmatpush1.msra.mxu0 %v1843
    %1865 = vmatprep.subr.mxu0 0.0
    %1866 = vmatpush1.msra.mxu0 0.0
    %1867 = vmatprep.subr.mxu0 0.0
    %1868 = vmatpush1.msra.mxu0 0.0
    %1869 = vmatprep.subr.mxu0 0.0
    %1870 = vmatpush1.msra.mxu0 0.0
    %1871 = vmatprep.subr.mxu0 0.0
    %1872 = vmatpush1.msra.mxu0 0.0
    %1873 = vmatprep.subr.mxu0 0.0
    %1874 = vmatpush1.msra.mxu0 0.0
    %1875 = vmatprep.subr.mxu0 0.0
    %1876 = vmatpush1.msra.mxu0 0.0
    %1877 = vmatprep.subr.mxu0 0.0
    %1878 = vmatpush1.msra.mxu0 0.0
    %1879 = vmatprep.subr.mxu0 0.0
    %1880 = vmatpush1.msra.mxu0 0.0
    %1881 = vmatprep.subr.mxu0 0.0
    %1882 = vmatpush1.msra.mxu0 0.0
    %1883 = vmatprep.subr.mxu0 0.0
    %1884 = vmatpush1.msra.mxu0 0.0
    %1885 = vmatprep.subr.mxu0 0.0
    %1886 = vmatpush1.msra.mxu0 0.0
    %1887 = vmatprep.subr.mxu0 0.0
    %1888 = vmatpush1.msra.mxu0 0.0
    %1889 = vmatprep.subr.mxu0 0.0
    %1890 = vmatpush1.msra.mxu0 0.0
    %1891 = vmatprep.subr.mxu0 0.0
    %1892 = vmatpush1.msra.mxu0 0.0
    %1893 = vmatprep.subr.mxu0 0.0
    %1894 = vmatpush1.msra.mxu0 0.0
    %1895 = vmatprep.subr.mxu0 0.0
    %1896 = vmatpush1.msra.mxu0 0.0
    %1897 = vmatprep.subr.mxu0 0.0
    %1898 = vmatpush1.msra.mxu0 0.0
    %1899 = vmatprep.subr.mxu0 0.0
    %1900 = vmatpush1.msra.mxu0 0.0
    %1901 = vmatprep.subr.mxu0 0.0
    %1902 = vmatpush1.msra.mxu0 0.0
    %1903 = vmatprep.subr.mxu0 0.0
    %1904 = vmatpush1.msra.mxu0 0.0
    %1905 = vmatprep.subr.mxu0 0.0
    %1906 = vmatpush1.msra.mxu0 0.0
    %1907 = vmatprep.subr.mxu0 0.0
    %1908 = vmatpush1.msra.mxu0 0.0
    %1909 = vmatprep.subr.mxu0 0.0
    %1910 = vmatpush1.msra.mxu0 0.0
    %1911 = vmatprep.subr.mxu0 0.0
    %1912 = vmatpush1.msra.mxu0 0.0
    %1913 = vmatprep.subr.mxu0 0.0
    %1914 = vmatpush1.msra.mxu0 0.0
    %1915 = vmatprep.subr.mxu0 0.0
    %1916 = vmatpush1.msra.mxu0 0.0
    %1917 = vmatprep.subr.mxu0 0.0
    %1918 = vmatpush1.msra.mxu0 0.0
    %1919 = vmatprep.subr.mxu0 0.0
    %1920 = vmatpush1.msra.mxu0 0.0
    %1921 = vmatprep.mubr.f32.mxu0 0.0
    %1922 = vmatmul.mubr.f32.gmra.mrb[0].mxu0 %v1852
    %v1923 = vpop.f32.mrb[0].mxu0
    %v1924 = vadd.f32 %v1849, %v1923
    %v1925 = vpop.f32.mrb[0].mxu0
    %1926 = vmatprep.mubr.f32.mxu0 0.0
    %1927 = vmatmul.mubr.f32.gmra.mrb[0].mxu0 %v1855
    %v1928 = vpop.f32.mrb[0].mxu0
    %v1929 = vadd.f32 %v1849, %v1928
    %v1930 = vpop.f32.mrb[0].mxu0
    %1931 = vdwg.mxu0
    %v1932 = vmul.f32 %v1924, 0.5
    %v1933 = vmul.f32 %v1929, 0.5
    %v1934 = vmul.f32 %v1924, 0.044715
    %v1935 = vmul.f32 %v1929, 0.044715
    %v1936 = vmul.f32 %v1934, %v1924
    %v1937 = vmul.f32 %v1935, %v1929
    %v1938 = vmul.f32 %v1936, %v1924
    %v1939 = vmul.f32 %v1937, %v1929
    %v1940 = vadd.f32 %v1924, %v1938
    %v1941 = vadd.f32 %v1929, %v1939
    %v1942 = vmul.f32 %v1940, 0.7978846
    %v1943 = vmul.f32 %v1941, 0.7978846
    %v1944 = vtanh.pop %v1942
    %v1945 = vtanh.pop %v1943
    %v1946 = vadd.f32 %v1944, 1.0
    %v1947 = vadd.f32 %v1945, 1.0
    %v1948 = vmul.f32 %v1932, %v1946
    %v1949 = vmul.f32 %v1933, %v1947
    %v1950 = vld [vmem:[%s15] sm:$0xff]
    %v1951 = vld [vmem:[%s15 + $0x8] sm:$0xff]
    %v1952 = vld [vmem:[%s15 + $0x10] sm:$0xff]
    %v1953 = vld [vmem:[%s15 + $0x18] sm:$0xff]
    %v1954 = vld [vmem:[%s15 + $0x20] sm:$0xff]
    %v1955 = vld [vmem:[%s15 + $0x28] sm:$0xff]
    %v1956 = vld [vmem:[%s15 + $0x30] sm:$0xff]
    %v1957 = vld [vmem:[%s15 + $0x38] sm:$0xff]
    %v1958 = vld [vmem:[%s16] sm:$0x1]
    %v1960 = vlaneseq
    %v1961 = vshrl.u32 %v1960, 7
    %v1962 = vsub.s32 0, %v1961
    %v1963 = vrot.slane %v1958, %v1962
    %vm1965 = vcmask 523264
    %v1967 = vsel %vm1965, %v1948, 0
    %v1970 = vsel %vm1965, %v1949, 0
    %1972 = vmatprep.subr.mxu0 0.0
    %1973 = vmatpush1.msra.mxu0 %v1950
    %1974 = vmatprep.subr.mxu0 0.0
    %1975 = vmatpush1.msra.mxu0 %v1951
    %1976 = vmatprep.subr.mxu0 0.0
    %1977 = vmatpush1.msra.mxu0 %v1952
    %1978 = vmatprep.subr.mxu0 0.0
    %1979 = vmatpush1.msra.mxu0 %v1953
    %1980 = vmatprep.subr.mxu0 0.0
    %1981 = vmatpush1.msra.mxu0 %v1954
    %1982 = vmatprep.subr.mxu0 0.0
    %1983 = vmatpush1.msra.mxu0 %v1955
    %1984 = vmatprep.subr.mxu0 0.0
    %1985 = vmatpush1.msra.mxu0 %v1956
    %1986 = vmatprep.subr.mxu0 0.0
    %1987 = vmatpush1.msra.mxu0 %v1957
    %1988 = vmatprep.subr.mxu0 0.0
    %1989 = vmatpush1.msra.mxu0 0.0
    %1990 = vmatprep.subr.mxu0 0.0
    %1991 = vmatpush1.msra.mxu0 0.0
    %1992 = vmatprep.subr.mxu0 0.0
    %1993 = vmatpush1.msra.mxu0 0.0
    %1994 = vmatprep.subr.mxu0 0.0
    %1995 = vmatpush1.msra.mxu0 0.0
    %1996 = vmatprep.subr.mxu0 0.0
    %1997 = vmatpush1.msra.mxu0 0.0
    %1998 = vmatprep.subr.mxu0 0.0
    %1999 = vmatpush1.msra.mxu0 0.0
    %2000 = vmatprep.subr.mxu0 0.0
    %2001 = vmatpush1.msra.mxu0 0.0
    %2002 = vmatprep.subr.mxu0 0.0
    %2003 = vmatpush1.msra.mxu0 0.0
    %2004 = vmatprep.subr.mxu0 0.0
    %2005 = vmatpush1.msra.mxu0 0.0
    %2006 = vmatprep.subr.mxu0 0.0
    %2007 = vmatpush1.msra.mxu0 0.0
    %2008 = vmatprep.subr.mxu0 0.0
    %2009 = vmatpush1.msra.mxu0 0.0
    %2010 = vmatprep.subr.mxu0 0.0
    %2011 = vmatpush1.msra.mxu0 0.0
    %2012 = vmatprep.subr.mxu0 0.0
    %2013 = vmatpush1.msra.mxu0 0.0
    %2014 = vmatprep.subr.mxu0 0.0
    %2015 = vmatpush1.msra.mxu0 0.0
    %2016 = vmatprep.subr.mxu0 0.0
    %2017 = vmatpush1.msra.mxu0 0.0
    %2018 = vmatprep.subr.mxu0 0.0
    %2019 = vmatpush1.msra.mxu0 0.0
    %2020 = vmatprep.subr.mxu0 0.0
    %2021 = vmatpush1.msra.mxu0 0.0
    %2022 = vmatprep.subr.mxu0 0.0
    %2023 = vmatpush1.msra.mxu0 0.0
    %2024 = vmatprep.subr.mxu0 0.0
    %2025 = vmatpush1.msra.mxu0 0.0
    %2026 = vmatprep.subr.mxu0 0.0
    %2027 = vmatpush1.msra.mxu0 0.0
    %2028 = vmatprep.subr.mxu0 0.0
    %2029 = vmatpush1.msra.mxu0 0.0
    %2030 = vmatprep.subr.mxu0 0.0
    %2031 = vmatpush1.msra.mxu0 0.0
    %2032 = vmatprep.subr.mxu0 0.0
    %2033 = vmatpush1.msra.mxu0 0.0
    %2034 = vmatprep.subr.mxu0 0.0
    %2035 = vmatpush1.msra.mxu0 0.0
    %2036 = vmatprep.mubr.f32.mxu0 0.0
    %2037 = vmatmul.mubr.f32.gmra.mrb[0].mxu0 %v1967
    %v2038 = vpop.f32.mrb[0].mxu0
    %v2039 = vadd.f32 %v1963, %v2038
    %v2040 = vpop.f32.mrb[0].mxu0
    %2041 = vmatprep.mubr.f32.mxu0 0.0
    %2042 = vmatmul.mubr.f32.gmra.mrb[0].mxu0 %v1970
    %v2043 = vpop.f32.mrb[0].mxu0
    %v2044 = vadd.f32 %v1963, %v2043
    %v2045 = vpop.f32.mrb[0].mxu0
    %2046 = vdwg.mxu0
    %v2047 = vadd.f32 %v2039, %v1838
    %v2048 = vadd.f32 %v2044, %v1839
    %v2049 = vld [vmem:[%s17] sm:$0x1]
    %v2050 = vld [vmem:[%s18] sm:$0x1]
    %v2051 = vsel %vm200, %v2047, 0.0
    %2052 = vadd.xlane.f32.xlu0 %v2051
    %v2053 = vpop.xlane.xlu0 %2052
    %v2054 = vsel %vm200, %v2048, 0.0
    %2055 = vadd.xlane.f32.xlu0 %v2054
    %v2056 = vpop.xlane.xlu0 %2055
    %v2057 = vmul.f32 %v2053, %v207
    %v2058 = vmul.f32 %v2056, %v207
    %v2059 = vsub.f32 %v2047, %v2057
    %v2060 = vsub.f32 %v2048, %v2058
    %v2061 = vmul.f32 %v2059, %v2059
    %v2062 = vmul.f32 %v2060, %v2060
    %v2063 = vsel %vm200, %v2061, 0.0
    %2064 = vadd.xlane.f32.xlu0 %v2063
    %v2065 = vpop.xlane.xlu0 %2064
    %v2066 = vsel %vm200, %v2062, 0.0
    %2067 = vadd.xlane.f32.xlu0 %v2066
    %v2068 = vpop.xlane.xlu0 %2067
    %v2069 = vmul.f32 %v2065, %v207
    %v2070 = vmul.f32 %v2068, %v207
    %v2071 = vadd.f32 %v2069, 1e-12
    %v2072 = vadd.f32 %v2070, 1e-12
    %v2073 = vrsqrt.pop %v2071
    %v2074 = vrsqrt.pop %v2072
    %v2075 = vmul.f32 %v2059, %v2073
    %v2076 = vmul.f32 %v2060, %v2074
    %v2078 = vlaneseq
    %v2079 = vshrl.u32 %v2078, 7
    %v2080 = vsub.s32 0, %v2079
    %v2081 = vrot.slane %v2049, %v2080
    %v2083 = vmul.f32 %v2075, %v2081
    %v2084 = vmul.f32 %v2076, %v2081
    %v2086 = vlaneseq
    %v2087 = vshrl.u32 %v2086, 7
    %v2088 = vsub.s32 0, %v2087
    %v2089 = vrot.slane %v2050, %v2088
    %v2091 = vadd.f32 %v2083, %v2089
    %v2092 = vadd.f32 %v2084, %v2089
    %s2093 = scalar_lea.vmem %s7, 32
    %v2094 = vld [vmem:[%s2093] sm:$0xff]
    %v2095 = vld [vmem:[%s2093 + $0x8] sm:$0xff]
    %v2096 = vld [vmem:[%s2093 + $0x10] sm:$0xff]
    %v2097 = vld [vmem:[%s2093 + $0x18] sm:$0xff]
    %s2098 = scalar_lea.vmem %s8, 1
    %v2099 = vld [vmem:[%s2098] sm:$0x1]
    %v2101 = vlaneseq
    %v2102 = vshrl.u32 %v2101, 7
    %v2103 = vsub.s32 0, %v2102
    %v2104 = vrot.slane %v2099, %v2103
    %v2107 = vsel %vm200, %v2091, 0
    %v2110 = vsel %vm200, %v2092, 0
    %2112 = vmatprep.subr.mxu0 0.0
    %2113 = vmatpush1.msra.mxu0 %v2094
    %2114 = vmatprep.subr.mxu0 0.0
    %2115 = vmatpush1.msra.mxu0 %v2095
    %2116 = vmatprep.subr.mxu0 0.0
    %2117 = vmatpush1.msra.mxu0 %v2096
    %2118 = vmatprep.subr.mxu0 0.0
    %2119 = vmatpush1.msra.mxu0 %v2097
    %2120 = vmatprep.subr.mxu0 0.0
    %2121 = vmatpush1.msra.mxu0 0.0
    %2122 = vmatprep.subr.mxu0 0.0
    %2123 = vmatpush1.msra.mxu0 0.0
    %2124 = vmatprep.subr.mxu0 0.0
    %2125 = vmatpush1.msra.mxu0 0.0
    %2126 = vmatprep.subr.mxu0 0.0
    %2127 = vmatpush1.msra.mxu0 0.0
    %2128 = vmatprep.subr.mxu0 0.0
    %2129 = vmatpush1.msra.mxu0 0.0
    %2130 = vmatprep.subr.mxu0 0.0
    %2131 = vmatpush1.msra.mxu0 0.0
    %2132 = vmatprep.subr.mxu0 0.0
    %2133 = vmatpush1.msra.mxu0 0.0
    %2134 = vmatprep.subr.mxu0 0.0
    %2135 = vmatpush1.msra.mxu0 0.0
    %2136 = vmatprep.subr.mxu0 0.0
    %2137 = vmatpush1.msra.mxu0 0.0
    %2138 = vmatprep.subr.mxu0 0.0
    %2139 = vmatpush1.msra.mxu0 0.0
    %2140 = vmatprep.subr.mxu0 0.0
    %2141 = vmatpush1.msra.mxu0 0.0
    %2142 = vmatprep.subr.mxu0 0.0
    %2143 = vmatpush1.msra.mxu0 0.0
    %2144 = vmatprep.subr.mxu0 0.0
    %2145 = vmatpush1.msra.mxu0 0.0
    %2146 = vmatprep.subr.mxu0 0.0
    %2147 = vmatpush1.msra.mxu0 0.0
    %2148 = vmatprep.subr.mxu0 0.0
    %2149 = vmatpush1.msra.mxu0 0.0
    %2150 = vmatprep.subr.mxu0 0.0
    %2151 = vmatpush1.msra.mxu0 0.0
    %2152 = vmatprep.subr.mxu0 0.0
    %2153 = vmatpush1.msra.mxu0 0.0
    %2154 = vmatprep.subr.mxu0 0.0
    %2155 = vmatpush1.msra.mxu0 0.0
    %2156 = vmatprep.subr.mxu0 0.0
    %2157 = vmatpush1.msra.mxu0 0.0
    %2158 = vmatprep.subr.mxu0 0.0
    %2159 = vmatpush1.msra.mxu0 0.0
    %2160 = vmatprep.subr.mxu0 0.0
    %2161 = vmatpush1.msra.mxu0 0.0
    %2162 = vmatprep.subr.mxu0 0.0
    %2163 = vmatpush1.msra.mxu0 0.0
    %2164 = vmatprep.subr.mxu0 0.0
    %2165 = vmatpush1.msra.mxu0 0.0
    %2166 = vmatprep.subr.mxu0 0.0
    %2167 = vmatpush1.msra.mxu0 0.0
    %2168 = vmatprep.subr.mxu0 0.0
    %2169 = vmatpush1.msra.mxu0 0.0
    %2170 = vmatprep.subr.mxu0 0.0
    %2171 = vmatpush1.msra.mxu0 0.0
    %2172 = vmatprep.subr.mxu0 0.0
    %2173 = vmatpush1.msra.mxu0 0.0
    %2174 = vmatprep.subr.mxu0 0.0
    %2175 = vmatpush1.msra.mxu0 0.0
    %2176 = vmatprep.mubr.f32.mxu0 0.0
    %2177 = vmatmul.mubr.f32.gmra.mrb[0].mxu0 %v2107
    %v2178 = vpop.f32.mrb[0].mxu0
    %v2179 = vadd.f32 %v2104, %v2178
    %v2180 = vpop.f32.mrb[0].mxu0
    %2181 = vmatprep.mubr.f32.mxu0 0.0
    %2182 = vmatmul.mubr.f32.gmra.mrb[0].mxu0 %v2110
    %v2183 = vpop.f32.mrb[0].mxu0
    %v2184 = vadd.f32 %v2104, %v2183
    %v2185 = vpop.f32.mrb[0].mxu0
    %2186 = vdwg.mxu0
    %v2187 = vmul.f32 %v2179, 0.35355338
    %v2188 = vmul.f32 %v2184, 0.35355338
    %2190 = vrot.lane.b32.xlu0 %v2179, 96
    %v2191 = vpop.permute.xlu0 %2190
    %v2193 = vsel %vm348, %v2187, 0
    %v2195 = vsel %vm348, %v2191, 0
    %2197 = vmatprep.subr.mxu0 0.0
    %2198 = vmatpush1.xpose.msra.mxu0 %v2195
    %2199 = vmatprep.subr.mxu0 0.0
    %2200 = vmatpush1.xpose.msra.mxu0 0.0
    %2201 = vmatprep.subr.mxu0 0.0
    %2202 = vmatpush1.xpose.msra.mxu0 0.0
    %2203 = vmatprep.subr.mxu0 0.0
    %2204 = vmatpush1.xpose.msra.mxu0 0.0
    %2205 = vmatprep.subr.mxu0 0.0
    %2206 = vmatpush1.xpose.msra.mxu0 0.0
    %2207 = vmatprep.subr.mxu0 0.0
    %2208 = vmatpush1.xpose.msra.mxu0 0.0
    %2209 = vmatprep.subr.mxu0 0.0
    %2210 = vmatpush1.xpose.msra.mxu0 0.0
    %2211 = vmatprep.subr.mxu0 0.0
    %2212 = vmatpush1.xpose.msra.mxu0 0.0
    %2213 = vmatprep.subr.mxu0 0.0
    %2214 = vmatpush1.xpose.msra.mxu0 0.0
    %2215 = vmatprep.subr.mxu0 0.0
    %2216 = vmatpush1.xpose.msra.mxu0 0.0
    %2217 = vmatprep.subr.mxu0 0.0
    %2218 = vmatpush1.xpose.msra.mxu0 0.0
    %2219 = vmatprep.subr.mxu0 0.0
    %2220 = vmatpush1.xpose.msra.mxu0 0.0
    %2221 = vmatprep.subr.mxu0 0.0
    %2222 = vmatpush1.xpose.msra.mxu0 0.0
    %2223 = vmatprep.subr.mxu0 0.0
    %2224 = vmatpush1.xpose.msra.mxu0 0.0
    %2225 = vmatprep.subr.mxu0 0.0
    %2226 = vmatpush1.xpose.msra.mxu0 0.0
    %2227 = vmatprep.subr.mxu0 0.0
    %2228 = vmatpush1.xpose.msra.mxu0 0.0
    %2229 = vmatprep.subr.mxu0 0.0
    %2230 = vmatpush1.xpose.msra.mxu0 0.0
    %2231 = vmatprep.subr.mxu0 0.0
    %2232 = vmatpush1.xpose.msra.mxu0 0.0
    %2233 = vmatprep.subr.mxu0 0.0
    %2234 = vmatpush1.xpose.msra.mxu0 0.0
    %2235 = vmatprep.subr.mxu0 0.0
    %2236 = vmatpush1.xpose.msra.mxu0 0.0
    %2237 = vmatprep.subr.mxu0 0.0
    %2238 = vmatpush1.xpose.msra.mxu0 0.0
    %2239 = vmatprep.subr.mxu0 0.0
    %2240 = vmatpush1.xpose.msra.mxu0 0.0
    %2241 = vmatprep.subr.mxu0 0.0
    %2242 = vmatpush1.xpose.msra.mxu0 0.0
    %2243 = vmatprep.subr.mxu0 0.0
    %2244 = vmatpush1.xpose.msra.mxu0 0.0
    %2245 = vmatprep.subr.mxu0 0.0
    %2246 = vmatpush1.xpose.msra.mxu0 0.0
    %2247 = vmatprep.subr.mxu0 0.0
    %2248 = vmatpush1.xpose.msra.mxu0 0.0
    %2249 = vmatprep.subr.mxu0 0.0
    %2250 = vmatpush1.xpose.msra.mxu0 0.0
    %2251 = vmatprep.subr.mxu0 0.0
    %2252 = vmatpush1.xpose.msra.mxu0 0.0
    %2253 = vmatprep.subr.mxu0 0.0
    %2254 = vmatpush1.xpose.msra.mxu0 0.0
    %2255 = vmatprep.subr.mxu0 0.0
    %2256 = vmatpush1.xpose.msra.mxu0 0.0
    %2257 = vmatprep.subr.mxu0 0.0
    %2258 = vmatpush1.xpose.msra.mxu0 0.0
    %2259 = vmatprep.subr.mxu0 0.0
    %2260 = vmatpush1.xpose.msra.mxu0 0.0
    %2261 = vmatprep.mubr.f32.mxu0 0.0
    %2262 = vmatmul.mubr.f32.gmra.mrb[0].mxu0 %v2193
    %v2263 = vpop.f32.mrb[0].mxu0
    %v2264 = vadd.f32 %v344, %v2263
    %v2265 = vpop.f32.mrb[0].mxu0
    %2266 = vdwg.mxu0
    %v2267 = vsel %vm348, %v2264, -inf
    %2268 = vmax.xlane.f32.xlu0 %v2267
    %v2269 = vpop.xlane.xlu0 %2268
    %v2270 = vsub.f32 %v2264, %v2269
    %v2271 = vmul.f32 %v2270, 1.442695
    %v2272 = vpow.pop %v2271
    %v2273 = vsel %vm348, %v2272, 0.0
    %2274 = vadd.xlane.f32.xlu0 %v2273
    %v2275 = vpop.xlane.xlu0 %2274
    %v2276 = vrcp.pop %v2275
    %v2277 = vmul.f32 %v2272, %v2276
    %2278 = vrot.lane.b32.xlu0 %v2179, 64
    %v2279 = vpop.permute.xlu0 %2278
    %v2282 = vsel %vm348, %v2277, 0
    %2284 = vmatprep.subr.mxu0 0.0
    %2285 = vmatpush1.msra.mxu0 %v2279
    %2286 = vmatprep.subr.mxu0 0.0
    %2287 = vmatpush1.msra.mxu0 0.0
    %2288 = vmatprep.subr.mxu0 0.0
    %2289 = vmatpush1.msra.mxu0 0.0
    %2290 = vmatprep.subr.mxu0 0.0
    %2291 = vmatpush1.msra.mxu0 0.0
    %2292 = vmatprep.subr.mxu0 0.0
    %2293 = vmatpush1.msra.mxu0 0.0
    %2294 = vmatprep.subr.mxu0 0.0
    %2295 = vmatpush1.msra.mxu0 0.0
    %2296 = vmatprep.subr.mxu0 0.0
    %2297 = vmatpush1.msra.mxu0 0.0
    %2298 = vmatprep.subr.mxu0 0.0
    %2299 = vmatpush1.msra.mxu0 0.0
    %2300 = vmatprep.subr.mxu0 0.0
    %2301 = vmatpush1.msra.mxu0 0.0
    %2302 = vmatprep.subr.mxu0 0.0
    %2303 = vmatpush1.msra.mxu0 0.0
    %2304 = vmatprep.subr.mxu0 0.0
    %2305 = vmatpush1.msra.mxu0 0.0
    %2306 = vmatprep.subr.mxu0 0.0
    %2307 = vmatpush1.msra.mxu0 0.0
    %2308 = vmatprep.subr.mxu0 0.0
    %2309 = vmatpush1.msra.mxu0 0.0
    %2310 = vmatprep.subr.mxu0 0.0
    %2311 = vmatpush1.msra.mxu0 0.0
    %2312 = vmatprep.subr.mxu0 0.0
    %2313 = vmatpush1.msra.mxu0 0.0
    %2314 = vmatprep.subr.mxu0 0.0
    %2315 = vmatpush1.msra.mxu0 0.0
    %2316 = vmatprep.subr.mxu0 0.0
    %2317 = vmatpush1.msra.mxu0 0.0
    %2318 = vmatprep.subr.mxu0 0.0
    %2319 = vmatpush1.msra.mxu0 0.0
    %2320 = vmatprep.subr.mxu0 0.0
    %2321 = vmatpush1.msra.mxu0 0.0
    %2322 = vmatprep.subr.mxu0 0.0
    %2323 = vmatpush1.msra.mxu0 0.0
    %2324 = vmatprep.subr.mxu0 0.0
    %2325 = vmatpush1.msra.mxu0 0.0
    %2326 = vmatprep.subr.mxu0 0.0
    %2327 = vmatpush1.msra.mxu0 0.0
    %2328 = vmatprep.subr.mxu0 0.0
    %2329 = vmatpush1.msra.mxu0 0.0
    %2330 = vmatprep.subr.mxu0 0.0
    %2331 = vmatpush1.msra.mxu0 0.0
    %2332 = vmatprep.subr.mxu0 0.0
    %2333 = vmatpush1.msra.mxu0 0.0
    %2334 = vmatprep.subr.mxu0 0.0
    %2335 = vmatpush1.msra.mxu0 0.0
    %2336 = vmatprep.subr.mxu0 0.0
    %2337 = vmatpush1.msra.mxu0 0.0
    %2338 = vmatprep.subr.mxu0 0.0
    %2339 = vmatpush1.msra.mxu0 0.0
    %2340 = vmatprep.subr.mxu0 0.0
    %2341 = vmatpush1.msra.mxu0 0.0
    %2342 = vmatprep.subr.mxu0 0.0
    %2343 = vmatpush1.msra.mxu0 0.0
    %2344 = vmatprep.subr.mxu0 0.0
    %2345 = vmatpush1.msra.mxu0 0.0
    %2346 = vmatprep.subr.mxu0 0.0
    %2347 = vmatpush1.msra.mxu0 0.0
    %2348 = vmatprep.mubr.f32.mxu0 0.0
    %2349 = vmatmul.mubr.f32.gmra.mrb[0].mxu0 %v2282
    %v2350 = vpop.f32.mrb[0].mxu0
    %v2351 = vadd.f32 0.0, %v2350
    %v2352 = vpop.f32.mrb[0].mxu0
    %2353 = vdwg.mxu0
    %2354 = vrot.lane.b32.xlu0 %v2187, 120
    %v2355 = vpop.permute.xlu0 %2354
    %2356 = vrot.lane.b32.xlu0 %v2179, 88
    %v2357 = vpop.permute.xlu0 %2356
    %v2358 = vsel %vm348, %v2355, 0
    %v2360 = vsel %vm348, %v2357, 0
    %2362 = vmatprep.subr.mxu0 0.0
    %2363 = vmatpush1.xpose.msra.mxu0 %v2360
    %2364 = vmatprep.subr.mxu0 0.0
    %2365 = vmatpush1.xpose.msra.mxu0 0.0
    %2366 = vmatprep.subr.mxu0 0.0
    %2367 = vmatpush1.xpose.msra.mxu0 0.0
    %2368 = vmatprep.subr.mxu0 0.0
    %2369 = vmatpush1.xpose.msra.mxu0 0.0
    %2370 = vmatprep.subr.mxu0 0.0
    %2371 = vmatpush1.xpose.msra.mxu0 0.0
    %2372 = vmatprep.subr.mxu0 0.0
    %2373 = vmatpush1.xpose.msra.mxu0 0.0
    %2374 = vmatprep.subr.mxu0 0.0
    %2375 = vmatpush1.xpose.msra.mxu0 0.0
    %2376 = vmatprep.subr.mxu0 0.0
    %2377 = vmatpush1.xpose.msra.mxu0 0.0
    %2378 = vmatprep.subr.mxu0 0.0
    %2379 = vmatpush1.xpose.msra.mxu0 0.0
    %2380 = vmatprep.subr.mxu0 0.0
    %2381 = vmatpush1.xpose.msra.mxu0 0.0
    %2382 = vmatprep.subr.mxu0 0.0
    %2383 = vmatpush1.xpose.msra.mxu0 0.0
    %2384 = vmatprep.subr.mxu0 0.0
    %2385 = vmatpush1.xpose.msra.mxu0 0.0
    %2386 = vmatprep.subr.mxu0 0.0
    %2387 = vmatpush1.xpose.msra.mxu0 0.0
    %2388 = vmatprep.subr.mxu0 0.0
    %2389 = vmatpush1.xpose.msra.mxu0 0.0
    %2390 = vmatprep.subr.mxu0 0.0
    %2391 = vmatpush1.xpose.msra.mxu0 0.0
    %2392 = vmatprep.subr.mxu0 0.0
    %2393 = vmatpush1.xpose.msra.mxu0 0.0
    %2394 = vmatprep.subr.mxu0 0.0
    %2395 = vmatpush1.xpose.msra.mxu0 0.0
    %2396 = vmatprep.subr.mxu0 0.0
    %2397 = vmatpush1.xpose.msra.mxu0 0.0
    %2398 = vmatprep.subr.mxu0 0.0
    %2399 = vmatpush1.xpose.msra.mxu0 0.0
    %2400 = vmatprep.subr.mxu0 0.0
    %2401 = vmatpush1.xpose.msra.mxu0 0.0
    %2402 = vmatprep.subr.mxu0 0.0
    %2403 = vmatpush1.xpose.msra.mxu0 0.0
    %2404 = vmatprep.subr.mxu0 0.0
    %2405 = vmatpush1.xpose.msra.mxu0 0.0
    %2406 = vmatprep.subr.mxu0 0.0
    %2407 = vmatpush1.xpose.msra.mxu0 0.0
    %2408 = vmatprep.subr.mxu0 0.0
    %2409 = vmatpush1.xpose.msra.mxu0 0.0
    %2410 = vmatprep.subr.mxu0 0.0
    %2411 = vmatpush1.xpose.msra.mxu0 0.0
    %2412 = vmatprep.subr.mxu0 0.0
    %2413 = vmatpush1.xpose.msra.mxu0 0.0
    %2414 = vmatprep.subr.mxu0 0.0
    %2415 = vmatpush1.xpose.msra.mxu0 0.0
    %2416 = vmatprep.subr.mxu0 0.0
    %2417 = vmatpush1.xpose.msra.mxu0 0.0
    %2418 = vmatprep.subr.mxu0 0.0
    %2419 = vmatpush1.xpose.msra.mxu0 0.0
    %2420 = vmatprep.subr.mxu0 0.0
    %2421 = vmatpush1.xpose.msra.mxu0 0.0
    %2422 = vmatprep.subr.mxu0 0.0
    %2423 = vmatpush1.xpose.msra.mxu0 0.0
    %2424 = vmatprep.subr.mxu0 0.0
    %2425 = vmatpush1.xpose.msra.mxu0 0.0
    %2426 = vmatprep.mubr.f32.mxu0 0.0
    %2427 = vmatmul.mubr.f32.gmra.mrb[0].mxu0 %v2358
    %v2428 = vpop.f32.mrb[0].mxu0
    %v2429 = vadd.f32 %v344, %v2428
    %v2430 = vpop.f32.mrb[0].mxu0
    %2431 = vdwg.mxu0
    %v2432 = vsel %vm348, %v2429, -inf
    %2433 = vmax.xlane.f32.xlu0 %v2432
    %v2434 = vpop.xlane.xlu0 %2433
    %v2435 = vsub.f32 %v2429, %v2434
    %v2436 = vmul.f32 %v2435, 1.442695
    %v2437 = vpow.pop %v2436
    %v2438 = vsel %vm348, %v2437, 0.0
    %2439 = vadd.xlane.f32.xlu0 %v2438
    %v2440 = vpop.xlane.xlu0 %2439
    %v2441 = vrcp.pop %v2440
    %v2442 = vmul.f32 %v2437, %v2441
    %2443 = vrot.lane.b32.xlu0 %v2179, 56
    %v2444 = vpop.permute.xlu0 %2443
    %v2447 = vsel %vm348, %v2442, 0
    %2449 = vmatprep.subr.mxu0 0.0
    %2450 = vmatpush1.msra.mxu0 %v2444
    %2451 = vmatprep.subr.mxu0 0.0
    %2452 = vmatpush1.msra.mxu0 0.0
    %2453 = vmatprep.subr.mxu0 0.0
    %2454 = vmatpush1.msra.mxu0 0.0
    %2455 = vmatprep.subr.mxu0 0.0
    %2456 = vmatpush1.msra.mxu0 0.0
    %2457 = vmatprep.subr.mxu0 0.0
    %2458 = vmatpush1.msra.mxu0 0.0
    %2459 = vmatprep.subr.mxu0 0.0
    %2460 = vmatpush1.msra.mxu0 0.0
    %2461 = vmatprep.subr.mxu0 0.0
    %2462 = vmatpush1.msra.mxu0 0.0
    %2463 = vmatprep.subr.mxu0 0.0
    %2464 = vmatpush1.msra.mxu0 0.0
    %2465 = vmatprep.subr.mxu0 0.0
    %2466 = vmatpush1.msra.mxu0 0.0
    %2467 = vmatprep.subr.mxu0 0.0
    %2468 = vmatpush1.msra.mxu0 0.0
    %2469 = vmatprep.subr.mxu0 0.0
    %2470 = vmatpush1.msra.mxu0 0.0
    %2471 = vmatprep.subr.mxu0 0.0
    %2472 = vmatpush1.msra.mxu0 0.0
    %2473 = vmatprep.subr.mxu0 0.0
    %2474 = vmatpush1.msra.mxu0 0.0
    %2475 = vmatprep.subr.mxu0 0.0
    %2476 = vmatpush1.msra.mxu0 0.0
    %2477 = vmatprep.subr.mxu0 0.0
    %2478 = vmatpush1.msra.mxu0 0.0
    %2479 = vmatprep.subr.mxu0 0.0
    %2480 = vmatpush1.msra.mxu0 0.0
    %2481 = vmatprep.subr.mxu0 0.0
    %2482 = vmatpush1.msra.mxu0 0.0
    %2483 = vmatprep.subr.mxu0 0.0
    %2484 = vmatpush1.msra.mxu0 0.0
    %2485 = vmatprep.subr.mxu0 0.0
    %2486 = vmatpush1.msra.mxu0 0.0
    %2487 = vmatprep.subr.mxu0 0.0
    %2488 = vmatpush1.msra.mxu0 0.0
    %2489 = vmatprep.subr.mxu0 0.0
    %2490 = vmatpush1.msra.mxu0 0.0
    %2491 = vmatprep.subr.mxu0 0.0
    %2492 = vmatpush1.msra.mxu0 0.0
    %2493 = vmatprep.subr.mxu0 0.0
    %2494 = vmatpush1.msra.mxu0 0.0
    %2495 = vmatprep.subr.mxu0 0.0
    %2496 = vmatpush1.msra.mxu0 0.0
    %2497 = vmatprep.subr.mxu0 0.0
    %2498 = vmatpush1.msra.mxu0 0.0
    %2499 = vmatprep.subr.mxu0 0.0
    %2500 = vmatpush1.msra.mxu0 0.0
    %2501 = vmatprep.subr.mxu0 0.0
    %2502 = vmatpush1.msra.mxu0 0.0
    %2503 = vmatprep.subr.mxu0 0.0
    %2504 = vmatpush1.msra.mxu0 0.0
    %2505 = vmatprep.subr.mxu0 0.0
    %2506 = vmatpush1.msra.mxu0 0.0
    %2507 = vmatprep.subr.mxu0 0.0
    %2508 = vmatpush1.msra.mxu0 0.0
    %2509 = vmatprep.subr.mxu0 0.0
    %2510 = vmatpush1.msra.mxu0 0.0
    %2511 = vmatprep.subr.mxu0 0.0
    %2512 = vmatpush1.msra.mxu0 0.0
    %2513 = vmatprep.mubr.f32.mxu0 0.0
    %2514 = vmatmul.mubr.f32.gmra.mrb[0].mxu0 %v2447
    %v2515 = vpop.f32.mrb[0].mxu0
    %v2516 = vadd.f32 0.0, %v2515
    %v2517 = vpop.f32.mrb[0].mxu0
    %2518 = vdwg.mxu0
    %2519 = vrot.lane.b32.xlu0 %v2187, 112
    %v2520 = vpop.permute.xlu0 %2519
    %2521 = vrot.lane.b32.xlu0 %v2179, 80
    %v2522 = vpop.permute.xlu0 %2521
    %v2523 = vsel %vm348, %v2520, 0
    %v2525 = vsel %vm348, %v2522, 0
    %2527 = vmatprep.subr.mxu0 0.0
    %2528 = vmatpush1.xpose.msra.mxu0 %v2525
    %2529 = vmatprep.subr.mxu0 0.0
    %2530 = vmatpush1.xpose.msra.mxu0 0.0
    %2531 = vmatprep.subr.mxu0 0.0
    %2532 = vmatpush1.xpose.msra.mxu0 0.0
    %2533 = vmatprep.subr.mxu0 0.0
    %2534 = vmatpush1.xpose.msra.mxu0 0.0
    %2535 = vmatprep.subr.mxu0 0.0
    %2536 = vmatpush1.xpose.msra.mxu0 0.0
    %2537 = vmatprep.subr.mxu0 0.0
    %2538 = vmatpush1.xpose.msra.mxu0 0.0
    %2539 = vmatprep.subr.mxu0 0.0
    %2540 = vmatpush1.xpose.msra.mxu0 0.0
    %2541 = vmatprep.subr.mxu0 0.0
    %2542 = vmatpush1.xpose.msra.mxu0 0.0
    %2543 = vmatprep.subr.mxu0 0.0
    %2544 = vmatpush1.xpose.msra.mxu0 0.0
    %2545 = vmatprep.subr.mxu0 0.0
    %2546 = vmatpush1.xpose.msra.mxu0 0.0
    %2547 = vmatprep.subr.mxu0 0.0
    %2548 = vmatpush1.xpose.msra.mxu0 0.0
    %2549 = vmatprep.subr.mxu0 0.0
    %2550 = vmatpush1.xpose.msra.mxu0 0.0
    %2551 = vmatprep.subr.mxu0 0.0
    %2552 = vmatpush1.xpose.msra.mxu0 0.0
    %2553 = vmatprep.subr.mxu0 0.0
    %2554 = vmatpush1.xpose.msra.mxu0 0.0
    %2555 = vmatprep.subr.mxu0 0.0
    %2556 = vmatpush1.xpose.msra.mxu0 0.0
    %2557 = vmatprep.subr.mxu0 0.0
    %2558 = vmatpush1.xpose.msra.mxu0 0.0
    %2559 = vmatprep.subr.mxu0 0.0
    %2560 = vmatpush1.xpose.msra.mxu0 0.0
    %2561 = vmatprep.subr.mxu0 0.0
    %2562 = vmatpush1.xpose.msra.mxu0 0.0
    %2563 = vmatprep.subr.mxu0 0.0
    %2564 = vmatpush1.xpose.msra.mxu0 0.0
    %2565 = vmatprep.subr.mxu0 0.0
    %2566 = vmatpush1.xpose.msra.mxu0 0.0
    %2567 = vmatprep.subr.mxu0 0.0
    %2568 = vmatpush1.xpose.msra.mxu0 0.0
    %2569 = vmatprep.subr.mxu0 0.0
    %2570 = vmatpush1.xpose.msra.mxu0 0.0
    %2571 = vmatprep.subr.mxu0 0.0
    %2572 = vmatpush1.xpose.msra.mxu0 0.0
    %2573 = vmatprep.subr.mxu0 0.0
    %2574 = vmatpush1.xpose.msra.mxu0 0.0
    %2575 = vmatprep.subr.mxu0 0.0
    %2576 = vmatpush1.xpose.msra.mxu0 0.0
    %2577 = vmatprep.subr.mxu0 0.0
    %2578 = vmatpush1.xpose.msra.mxu0 0.0
    %2579 = vmatprep.subr.mxu0 0.0
    %2580 = vmatpush1.xpose.msra.mxu0 0.0
    %2581 = vmatprep.subr.mxu0 0.0
    %2582 = vmatpush1.xpose.msra.mxu0 0.0
    %2583 = vmatprep.subr.mxu0 0.0
    %2584 = vmatpush1.xpose.msra.mxu0 0.0
    %2585 = vmatprep.subr.mxu0 0.0
    %2586 = vmatpush1.xpose.msra.mxu0 0.0
    %2587 = vmatprep.subr.mxu0 0.0
    %2588 = vmatpush1.xpose.msra.mxu0 0.0
    %2589 = vmatprep.subr.mxu0 0.0
    %2590 = vmatpush1.xpose.msra.mxu0 0.0
    %2591 = vmatprep.mubr.f32.mxu0 0.0
    %2592 = vmatmul.mubr.f32.gmra.mrb[0].mxu0 %v2523
    %v2593 = vpop.f32.mrb[0].mxu0
    %v2594 = vadd.f32 %v344, %v2593
    %v2595 = vpop.f32.mrb[0].mxu0
    %2596 = vdwg.mxu0
    %v2597 = vsel %vm348, %v2594, -inf
    %2598 = vmax.xlane.f32.xlu0 %v2597
    %v2599 = vpop.xlane.xlu0 %2598
    %v2600 = vsub.f32 %v2594, %v2599
    %v2601 = vmul.f32 %v2600, 1.442695
    %v2602 = vpow.pop %v2601
    %v2603 = vsel %vm348, %v2602, 0.0
    %2604 = vadd.xlane.f32.xlu0 %v2603
    %v2605 = vpop.xlane.xlu0 %2604
    %v2606 = vrcp.pop %v2605
    %v2607 = vmul.f32 %v2602, %v2606
    %2608 = vrot.lane.b32.xlu0 %v2179, 48
    %v2609 = vpop.permute.xlu0 %2608
    %v2612 = vsel %vm348, %v2607, 0
    %2614 = vmatprep.subr.mxu0 0.0
    %2615 = vmatpush1.msra.mxu0 %v2609
    %2616 = vmatprep.subr.mxu0 0.0
    %2617 = vmatpush1.msra.mxu0 0.0
    %2618 = vmatprep.subr.mxu0 0.0
    %2619 = vmatpush1.msra.mxu0 0.0
    %2620 = vmatprep.subr.mxu0 0.0
    %2621 = vmatpush1.msra.mxu0 0.0
    %2622 = vmatprep.subr.mxu0 0.0
    %2623 = vmatpush1.msra.mxu0 0.0
    %2624 = vmatprep.subr.mxu0 0.0
    %2625 = vmatpush1.msra.mxu0 0.0
    %2626 = vmatprep.subr.mxu0 0.0
    %2627 = vmatpush1.msra.mxu0 0.0
    %2628 = vmatprep.subr.mxu0 0.0
    %2629 = vmatpush1.msra.mxu0 0.0
    %2630 = vmatprep.subr.mxu0 0.0
    %2631 = vmatpush1.msra.mxu0 0.0
    %2632 = vmatprep.subr.mxu0 0.0
    %2633 = vmatpush1.msra.mxu0 0.0
    %2634 = vmatprep.subr.mxu0 0.0
    %2635 = vmatpush1.msra.mxu0 0.0
    %2636 = vmatprep.subr.mxu0 0.0
    %2637 = vmatpush1.msra.mxu0 0.0
    %2638 = vmatprep.subr.mxu0 0.0
    %2639 = vmatpush1.msra.mxu0 0.0
    %2640 = vmatprep.subr.mxu0 0.0
    %2641 = vmatpush1.msra.mxu0 0.0
    %2642 = vmatprep.subr.mxu0 0.0
    %2643 = vmatpush1.msra.mxu0 0.0
    %2644 = vmatprep.subr.mxu0 0.0
    %2645 = vmatpush1.msra.mxu0 0.0
    %2646 = vmatprep.subr.mxu0 0.0
    %2647 = vmatpush1.msra.mxu0 0.0
    %2648 = vmatprep.subr.mxu0 0.0
    %2649 = vmatpush1.msra.mxu0 0.0
    %2650 = vmatprep.subr.mxu0 0.0
    %2651 = vmatpush1.msra.mxu0 0.0
    %2652 = vmatprep.subr.mxu0 0.0
    %2653 = vmatpush1.msra.mxu0 0.0
    %2654 = vmatprep.subr.mxu0 0.0
    %2655 = vmatpush1.msra.mxu0 0.0
    %2656 = vmatprep.subr.mxu0 0.0
    %2657 = vmatpush1.msra.mxu0 0.0
    %2658 = vmatprep.subr.mxu0 0.0
    %2659 = vmatpush1.msra.mxu0 0.0
    %2660 = vmatprep.subr.mxu0 0.0
    %2661 = vmatpush1.msra.mxu0 0.0
    %2662 = vmatprep.subr.mxu0 0.0
    %2663 = vmatpush1.msra.mxu0 0.0
    %2664 = vmatprep.subr.mxu0 0.0
    %2665 = vmatpush1.msra.mxu0 0.0
    %2666 = vmatprep.subr.mxu0 0.0
    %2667 = vmatpush1.msra.mxu0 0.0
    %2668 = vmatprep.subr.mxu0 0.0
    %2669 = vmatpush1.msra.mxu0 0.0
    %2670 = vmatprep.subr.mxu0 0.0
    %2671 = vmatpush1.msra.mxu0 0.0
    %2672 = vmatprep.subr.mxu0 0.0
    %2673 = vmatpush1.msra.mxu0 0.0
    %2674 = vmatprep.subr.mxu0 0.0
    %2675 = vmatpush1.msra.mxu0 0.0
    %2676 = vmatprep.subr.mxu0 0.0
    %2677 = vmatpush1.msra.mxu0 0.0
    %2678 = vmatprep.mubr.f32.mxu0 0.0
    %2679 = vmatmul.mubr.f32.gmra.mrb[0].mxu0 %v2612
    %v2680 = vpop.f32.mrb[0].mxu0
    %v2681 = vadd.f32 0.0, %v2680
    %v2682 = vpop.f32.mrb[0].mxu0
    %2683 = vdwg.mxu0
    %2684 = vrot.lane.b32.xlu0 %v2187, 104
    %v2685 = vpop.permute.xlu0 %2684
    %2686 = vrot.lane.b32.xlu0 %v2179, 72
    %v2687 = vpop.permute.xlu0 %2686
    %v2688 = vsel %vm348, %v2685, 0
    %v2690 = vsel %vm348, %v2687, 0
    %2692 = vmatprep.subr.mxu0 0.0
    %2693 = vmatpush1.xpose.msra.mxu0 %v2690
    %2694 = vmatprep.subr.mxu0 0.0
    %2695 = vmatpush1.xpose.msra.mxu0 0.0
    %2696 = vmatprep.subr.mxu0 0.0
    %2697 = vmatpush1.xpose.msra.mxu0 0.0
    %2698 = vmatprep.subr.mxu0 0.0
    %2699 = vmatpush1.xpose.msra.mxu0 0.0
    %2700 = vmatprep.subr.mxu0 0.0
    %2701 = vmatpush1.xpose.msra.mxu0 0.0
    %2702 = vmatprep.subr.mxu0 0.0
    %2703 = vmatpush1.xpose.msra.mxu0 0.0
    %2704 = vmatprep.subr.mxu0 0.0
    %2705 = vmatpush1.xpose.msra.mxu0 0.0
    %2706 = vmatprep.subr.mxu0 0.0
    %2707 = vmatpush1.xpose.msra.mxu0 0.0
    %2708 = vmatprep.subr.mxu0 0.0
    %2709 = vmatpush1.xpose.msra.mxu0 0.0
    %2710 = vmatprep.subr.mxu0 0.0
    %2711 = vmatpush1.xpose.msra.mxu0 0.0
    %2712 = vmatprep.subr.mxu0 0.0
    %2713 = vmatpush1.xpose.msra.mxu0 0.0
    %2714 = vmatprep.subr.mxu0 0.0
    %2715 = vmatpush1.xpose.msra.mxu0 0.0
    %2716 = vmatprep.subr.mxu0 0.0
    %2717 = vmatpush1.xpose.msra.mxu0 0.0
    %2718 = vmatprep.subr.mxu0 0.0
    %2719 = vmatpush1.xpose.msra.mxu0 0.0
    %2720 = vmatprep.subr.mxu0 0.0
    %2721 = vmatpush1.xpose.msra.mxu0 0.0
    %2722 = vmatprep.subr.mxu0 0.0
    %2723 = vmatpush1.xpose.msra.mxu0 0.0
    %2724 = vmatprep.subr.mxu0 0.0
    %2725 = vmatpush1.xpose.msra.mxu0 0.0
    %2726 = vmatprep.subr.mxu0 0.0
    %2727 = vmatpush1.xpose.msra.mxu0 0.0
    %2728 = vmatprep.subr.mxu0 0.0
    %2729 = vmatpush1.xpose.msra.mxu0 0.0
    %2730 = vmatprep.subr.mxu0 0.0
    %2731 = vmatpush1.xpose.msra.mxu0 0.0
    %2732 = vmatprep.subr.mxu0 0.0
    %2733 = vmatpush1.xpose.msra.mxu0 0.0
    %2734 = vmatprep.subr.mxu0 0.0
    %2735 = vmatpush1.xpose.msra.mxu0 0.0
    %2736 = vmatprep.subr.mxu0 0.0
    %2737 = vmatpush1.xpose.msra.mxu0 0.0
    %2738 = vmatprep.subr.mxu0 0.0
    %2739 = vmatpush1.xpose.msra.mxu0 0.0
    %2740 = vmatprep.subr.mxu0 0.0
    %2741 = vmatpush1.xpose.msra.mxu0 0.0
    %2742 = vmatprep.subr.mxu0 0.0
    %2743 = vmatpush1.xpose.msra.mxu0 0.0
    %2744 = vmatprep.subr.mxu0 0.0
    %2745 = vmatpush1.xpose.msra.mxu0 0.0
    %2746 = vmatprep.subr.mxu0 0.0
    %2747 = vmatpush1.xpose.msra.mxu0 0.0
    %2748 = vmatprep.subr.mxu0 0.0
    %2749 = vmatpush1.xpose.msra.mxu0 0.0
    %2750 = vmatprep.subr.mxu0 0.0
    %2751 = vmatpush1.xpose.msra.mxu0 0.0
    %2752 = vmatprep.subr.mxu0 0.0
    %2753 = vmatpush1.xpose.msra.mxu0 0.0
    %2754 = vmatprep.subr.mxu0 0.0
    %2755 = vmatpush1.xpose.msra.mxu0 0.0
    %2756 = vmatprep.mubr.f32.mxu0 0.0
    %2757 = vmatmul.mubr.f32.gmra.mrb[0].mxu0 %v2688
    %v2758 = vpop.f32.mrb[0].mxu0
    %v2759 = vadd.f32 %v344, %v2758
    %v2760 = vpop.f32.mrb[0].mxu0
    %2761 = vdwg.mxu0
    %v2762 = vsel %vm348, %v2759, -inf
    %2763 = vmax.xlane.f32.xlu0 %v2762
    %v2764 = vpop.xlane.xlu0 %2763
    %v2765 = vsub.f32 %v2759, %v2764
    %v2766 = vmul.f32 %v2765, 1.442695
    %v2767 = vpow.pop %v2766
    %v2768 = vsel %vm348, %v2767, 0.0
    %2769 = vadd.xlane.f32.xlu0 %v2768
    %v2770 = vpop.xlane.xlu0 %2769
    %v2771 = vrcp.pop %v2770
    %v2772 = vmul.f32 %v2767, %v2771
    %2773 = vrot.lane.b32.xlu0 %v2179, 40
    %v2774 = vpop.permute.xlu0 %2773
    %v2777 = vsel %vm348, %v2772, 0
    %2779 = vmatprep.subr.mxu0 0.0
    %2780 = vmatpush1.msra.mxu0 %v2774
    %2781 = vmatprep.subr.mxu0 0.0
    %2782 = vmatpush1.msra.mxu0 0.0
    %2783 = vmatprep.subr.mxu0 0.0
    %2784 = vmatpush1.msra.mxu0 0.0
    %2785 = vmatprep.subr.mxu0 0.0
    %2786 = vmatpush1.msra.mxu0 0.0
    %2787 = vmatprep.subr.mxu0 0.0
    %2788 = vmatpush1.msra.mxu0 0.0
    %2789 = vmatprep.subr.mxu0 0.0
    %2790 = vmatpush1.msra.mxu0 0.0
    %2791 = vmatprep.subr.mxu0 0.0
    %2792 = vmatpush1.msra.mxu0 0.0
    %2793 = vmatprep.subr.mxu0 0.0
    %2794 = vmatpush1.msra.mxu0 0.0
    %2795 = vmatprep.subr.mxu0 0.0
    %2796 = vmatpush1.msra.mxu0 0.0
    %2797 = vmatprep.subr.mxu0 0.0
    %2798 = vmatpush1.msra.mxu0 0.0
    %2799 = vmatprep.subr.mxu0 0.0
    %2800 = vmatpush1.msra.mxu0 0.0
    %2801 = vmatprep.subr.mxu0 0.0
    %2802 = vmatpush1.msra.mxu0 0.0
    %2803 = vmatprep.subr.mxu0 0.0
    %2804 = vmatpush1.msra.mxu0 0.0
    %2805 = vmatprep.subr.mxu0 0.0
    %2806 = vmatpush1.msra.mxu0 0.0
    %2807 = vmatprep.subr.mxu0 0.0
    %2808 = vmatpush1.msra.mxu0 0.0
    %2809 = vmatprep.subr.mxu0 0.0
    %2810 = vmatpush1.msra.mxu0 0.0
    %2811 = vmatprep.subr.mxu0 0.0
    %2812 = vmatpush1.msra.mxu0 0.0
    %2813 = vmatprep.subr.mxu0 0.0
    %2814 = vmatpush1.msra.mxu0 0.0
    %2815 = vmatprep.subr.mxu0 0.0
    %2816 = vmatpush1.msra.mxu0 0.0
    %2817 = vmatprep.subr.mxu0 0.0
    %2818 = vmatpush1.msra.mxu0 0.0
    %2819 = vmatprep.subr.mxu0 0.0
    %2820 = vmatpush1.msra.mxu0 0.0
    %2821 = vmatprep.subr.mxu0 0.0
    %2822 = vmatpush1.msra.mxu0 0.0
    %2823 = vmatprep.subr.mxu0 0.0
    %2824 = vmatpush1.msra.mxu0 0.0
    %2825 = vmatprep.subr.mxu0 0.0
    %2826 = vmatpush1.msra.mxu0 0.0
    %2827 = vmatprep.subr.mxu0 0.0
    %2828 = vmatpush1.msra.mxu0 0.0
    %2829 = vmatprep.subr.mxu0 0.0
    %2830 = vmatpush1.msra.mxu0 0.0
    %2831 = vmatprep.subr.mxu0 0.0
    %2832 = vmatpush1.msra.mxu0 0.0
    %2833 = vmatprep.subr.mxu0 0.0
    %2834 = vmatpush1.msra.mxu0 0.0
    %2835 = vmatprep.subr.mxu0 0.0
    %2836 = vmatpush1.msra.mxu0 0.0
    %2837 = vmatprep.subr.mxu0 0.0
    %2838 = vmatpush1.msra.mxu0 0.0
    %2839 = vmatprep.subr.mxu0 0.0
    %2840 = vmatpush1.msra.mxu0 0.0
    %2841 = vmatprep.subr.mxu0 0.0
    %2842 = vmatpush1.msra.mxu0 0.0
    %2843 = vmatprep.mubr.f32.mxu0 0.0
    %2844 = vmatmul.mubr.f32.gmra.mrb[0].mxu0 %v2777
    %v2845 = vpop.f32.mrb[0].mxu0
    %v2846 = vadd.f32 0.0, %v2845
    %v2847 = vpop.f32.mrb[0].mxu0
    %2848 = vdwg.mxu0
    %2850 = vrot.lane.b32.xlu0 %v2516, 8
    %v2851 = vpop.permute.xlu0 %2850
    %2854 = vrot.lane.b32.xlu0 %v2681, 16
    %v2855 = vpop.permute.xlu0 %2854
    %2858 = vrot.lane.b32.xlu0 %v2846, 24
    %v2859 = vpop.permute.xlu0 %2858
    %v2861 = vsel %vm348, %v2351, %v2851
    %v2862 = vsel %vm1019, %v2861, %v2855
    %v2863 = vsel %vm1021, %v2862, %v2859
    %2865 = vrot.lane.b32.xlu0 %v2184, 96
    %v2866 = vpop.permute.xlu0 %2865
    %v2868 = vsel %vm348, %v2188, 0
    %v2870 = vsel %vm348, %v2866, 0
    %2872 = vmatprep.subr.mxu0 0.0
    %2873 = vmatpush1.xpose.msra.mxu0 %v2870
    %2874 = vmatprep.subr.mxu0 0.0
    %2875 = vmatpush1.xpose.msra.mxu0 0.0
    %2876 = vmatprep.subr.mxu0 0.0
    %2877 = vmatpush1.xpose.msra.mxu0 0.0
    %2878 = vmatprep.subr.mxu0 0.0
    %2879 = vmatpush1.xpose.msra.mxu0 0.0
    %2880 = vmatprep.subr.mxu0 0.0
    %2881 = vmatpush1.xpose.msra.mxu0 0.0
    %2882 = vmatprep.subr.mxu0 0.0
    %2883 = vmatpush1.xpose.msra.mxu0 0.0
    %2884 = vmatprep.subr.mxu0 0.0
    %2885 = vmatpush1.xpose.msra.mxu0 0.0
    %2886 = vmatprep.subr.mxu0 0.0
    %2887 = vmatpush1.xpose.msra.mxu0 0.0
    %2888 = vmatprep.subr.mxu0 0.0
    %2889 = vmatpush1.xpose.msra.mxu0 0.0
    %2890 = vmatprep.subr.mxu0 0.0
    %2891 = vmatpush1.xpose.msra.mxu0 0.0
    %2892 = vmatprep.subr.mxu0 0.0
    %2893 = vmatpush1.xpose.msra.mxu0 0.0
    %2894 = vmatprep.subr.mxu0 0.0
    %2895 = vmatpush1.xpose.msra.mxu0 0.0
    %2896 = vmatprep.subr.mxu0 0.0
    %2897 = vmatpush1.xpose.msra.mxu0 0.0
    %2898 = vmatprep.subr.mxu0 0.0
    %2899 = vmatpush1.xpose.msra.mxu0 0.0
    %2900 = vmatprep.subr.mxu0 0.0
    %2901 = vmatpush1.xpose.msra.mxu0 0.0
    %2902 = vmatprep.subr.mxu0 0.0
    %2903 = vmatpush1.xpose.msra.mxu0 0.0
    %2904 = vmatprep.subr.mxu0 0.0
    %2905 = vmatpush1.xpose.msra.mxu0 0.0
    %2906 = vmatprep.subr.mxu0 0.0
    %2907 = vmatpush1.xpose.msra.mxu0 0.0
    %2908 = vmatprep.subr.mxu0 0.0
    %2909 = vmatpush1.xpose.msra.mxu0 0.0
    %2910 = vmatprep.subr.mxu0 0.0
    %2911 = vmatpush1.xpose.msra.mxu0 0.0
    %2912 = vmatprep.subr.mxu0 0.0
    %2913 = vmatpush1.xpose.msra.mxu0 0.0
    %2914 = vmatprep.subr.mxu0 0.0
    %2915 = vmatpush1.xpose.msra.mxu0 0.0
    %2916 = vmatprep.subr.mxu0 0.0
    %2917 = vmatpush1.xpose.msra.mxu0 0.0
    %2918 = vmatprep.subr.mxu0 0.0
    %2919 = vmatpush1.xpose.msra.mxu0 0.0
    %2920 = vmatprep.subr.mxu0 0.0
    %2921 = vmatpush1.xpose.msra.mxu0 0.0
    %2922 = vmatprep.subr.mxu0 0.0
    %2923 = vmatpush1.xpose.msra.mxu0 0.0
    %2924 = vmatprep.subr.mxu0 0.0
    %2925 = vmatpush1.xpose.msra.mxu0 0.0
    %2926 = vmatprep.subr.mxu0 0.0
    %2927 = vmatpush1.xpose.msra.mxu0 0.0
    %2928 = vmatprep.subr.mxu0 0.0
    %2929 = vmatpush1.xpose.msra.mxu0 0.0
    %2930 = vmatprep.subr.mxu0 0.0
    %2931 = vmatpush1.xpose.msra.mxu0 0.0
    %2932 = vmatprep.subr.mxu0 0.0
    %2933 = vmatpush1.xpose.msra.mxu0 0.0
    %2934 = vmatprep.subr.mxu0 0.0
    %2935 = vmatpush1.xpose.msra.mxu0 0.0
    %2936 = vmatprep.mubr.f32.mxu0 0.0
    %2937 = vmatmul.mubr.f32.gmra.mrb[0].mxu0 %v2868
    %v2938 = vpop.f32.mrb[0].mxu0
    %v2939 = vadd.f32 %v1026, %v2938
    %v2940 = vpop.f32.mrb[0].mxu0
    %2941 = vdwg.mxu0
    %v2942 = vsel %vm348, %v2939, -inf
    %2943 = vmax.xlane.f32.xlu0 %v2942
    %v2944 = vpop.xlane.xlu0 %2943
    %v2945 = vsub.f32 %v2939, %v2944
    %v2946 = vmul.f32 %v2945, 1.442695
    %v2947 = vpow.pop %v2946
    %v2948 = vsel %vm348, %v2947, 0.0
    %2949 = vadd.xlane.f32.xlu0 %v2948
    %v2950 = vpop.xlane.xlu0 %2949
    %v2951 = vrcp.pop %v2950
    %v2952 = vmul.f32 %v2947, %v2951
    %2953 = vrot.lane.b32.xlu0 %v2184, 64
    %v2954 = vpop.permute.xlu0 %2953
    %v2957 = vsel %vm348, %v2952, 0
    %2959 = vmatprep.subr.mxu0 0.0
    %2960 = vmatpush1.msra.mxu0 %v2954
    %2961 = vmatprep.subr.mxu0 0.0
    %2962 = vmatpush1.msra.mxu0 0.0
    %2963 = vmatprep.subr.mxu0 0.0
    %2964 = vmatpush1.msra.mxu0 0.0
    %2965 = vmatprep.subr.mxu0 0.0
    %2966 = vmatpush1.msra.mxu0 0.0
    %2967 = vmatprep.subr.mxu0 0.0
    %2968 = vmatpush1.msra.mxu0 0.0
    %2969 = vmatprep.subr.mxu0 0.0
    %2970 = vmatpush1.msra.mxu0 0.0
    %2971 = vmatprep.subr.mxu0 0.0
    %2972 = vmatpush1.msra.mxu0 0.0
    %2973 = vmatprep.subr.mxu0 0.0
    %2974 = vmatpush1.msra.mxu0 0.0
    %2975 = vmatprep.subr.mxu0 0.0
    %2976 = vmatpush1.msra.mxu0 0.0
    %2977 = vmatprep.subr.mxu0 0.0
    %2978 = vmatpush1.msra.mxu0 0.0
    %2979 = vmatprep.subr.mxu0 0.0
    %2980 = vmatpush1.msra.mxu0 0.0
    %2981 = vmatprep.subr.mxu0 0.0
    %2982 = vmatpush1.msra.mxu0 0.0
    %2983 = vmatprep.subr.mxu0 0.0
    %2984 = vmatpush1.msra.mxu0 0.0
    %2985 = vmatprep.subr.mxu0 0.0
    %2986 = vmatpush1.msra.mxu0 0.0
    %2987 = vmatprep.subr.mxu0 0.0
    %2988 = vmatpush1.msra.mxu0 0.0
    %2989 = vmatprep.subr.mxu0 0.0
    %2990 = vmatpush1.msra.mxu0 0.0
    %2991 = vmatprep.subr.mxu0 0.0
    %2992 = vmatpush1.msra.mxu0 0.0
    %2993 = vmatprep.subr.mxu0 0.0
    %2994 = vmatpush1.msra.mxu0 0.0
    %2995 = vmatprep.subr.mxu0 0.0
    %2996 = vmatpush1.msra.mxu0 0.0
    %2997 = vmatprep.subr.mxu0 0.0
    %2998 = vmatpush1.msra.mxu0 0.0
    %2999 = vmatprep.subr.mxu0 0.0
    %3000 = vmatpush1.msra.mxu0 0.0
    %3001 = vmatprep.subr.mxu0 0.0
    %3002 = vmatpush1.msra.mxu0 0.0
    %3003 = vmatprep.subr.mxu0 0.0
    %3004 = vmatpush1.msra.mxu0 0.0
    %3005 = vmatprep.subr.mxu0 0.0
    %3006 = vmatpush1.msra.mxu0 0.0
    %3007 = vmatprep.subr.mxu0 0.0
    %3008 = vmatpush1.msra.mxu0 0.0
    %3009 = vmatprep.subr.mxu0 0.0
    %3010 = vmatpush1.msra.mxu0 0.0
    %3011 = vmatprep.subr.mxu0 0.0
    %3012 = vmatpush1.msra.mxu0 0.0
    %3013 = vmatprep.subr.mxu0 0.0
    %3014 = vmatpush1.msra.mxu0 0.0
    %3015 = vmatprep.subr.mxu0 0.0
    %3016 = vmatpush1.msra.mxu0 0.0
    %3017 = vmatprep.subr.mxu0 0.0
    %3018 = vmatpush1.msra.mxu0 0.0
    %3019 = vmatprep.subr.mxu0 0.0
    %3020 = vmatpush1.msra.mxu0 0.0
    %3021 = vmatprep.subr.mxu0 0.0
    %3022 = vmatpush1.msra.mxu0 0.0
    %3023 = vmatprep.mubr.f32.mxu0 0.0
    %3024 = vmatmul.mubr.f32.gmra.mrb[0].mxu0 %v2957
    %v3025 = vpop.f32.mrb[0].mxu0
    %v3026 = vadd.f32 0.0, %v3025
    %v3027 = vpop.f32.mrb[0].mxu0
    %3028 = vdwg.mxu0
    %3029 = vrot.lane.b32.xlu0 %v2188, 120
    %v3030 = vpop.permute.xlu0 %3029
    %3031 = vrot.lane.b32.xlu0 %v2184, 88
    %v3032 = vpop.permute.xlu0 %3031
    %v3033 = vsel %vm348, %v3030, 0
    %v3035 = vsel %vm348, %v3032, 0
    %3037 = vmatprep.subr.mxu0 0.0
    %3038 = vmatpush1.xpose.msra.mxu0 %v3035
    %3039 = vmatprep.subr.mxu0 0.0
    %3040 = vmatpush1.xpose.msra.mxu0 0.0
    %3041 = vmatprep.subr.mxu0 0.0
    %3042 = vmatpush1.xpose.msra.mxu0 0.0
    %3043 = vmatprep.subr.mxu0 0.0
    %3044 = vmatpush1.xpose.msra.mxu0 0.0
    %3045 = vmatprep.subr.mxu0 0.0
    %3046 = vmatpush1.xpose.msra.mxu0 0.0
    %3047 = vmatprep.subr.mxu0 0.0
    %3048 = vmatpush1.xpose.msra.mxu0 0.0
    %3049 = vmatprep.subr.mxu0 0.0
    %3050 = vmatpush1.xpose.msra.mxu0 0.0
    %3051 = vmatprep.subr.mxu0 0.0
    %3052 = vmatpush1.xpose.msra.mxu0 0.0
    %3053 = vmatprep.subr.mxu0 0.0
    %3054 = vmatpush1.xpose.msra.mxu0 0.0
    %3055 = vmatprep.subr.mxu0 0.0
    %3056 = vmatpush1.xpose.msra.mxu0 0.0
    %3057 = vmatprep.subr.mxu0 0.0
    %3058 = vmatpush1.xpose.msra.mxu0 0.0
    %3059 = vmatprep.subr.mxu0 0.0
    %3060 = vmatpush1.xpose.msra.mxu0 0.0
    %3061 = vmatprep.subr.mxu0 0.0
    %3062 = vmatpush1.xpose.msra.mxu0 0.0
    %3063 = vmatprep.subr.mxu0 0.0
    %3064 = vmatpush1.xpose.msra.mxu0 0.0
    %3065 = vmatprep.subr.mxu0 0.0
    %3066 = vmatpush1.xpose.msra.mxu0 0.0
    %3067 = vmatprep.subr.mxu0 0.0
    %3068 = vmatpush1.xpose.msra.mxu0 0.0
    %3069 = vmatprep.subr.mxu0 0.0
    %3070 = vmatpush1.xpose.msra.mxu0 0.0
    %3071 = vmatprep.subr.mxu0 0.0
    %3072 = vmatpush1.xpose.msra.mxu0 0.0
    %3073 = vmatprep.subr.mxu0 0.0
    %3074 = vmatpush1.xpose.msra.mxu0 0.0
    %3075 = vmatprep.subr.mxu0 0.0
    %3076 = vmatpush1.xpose.msra.mxu0 0.0
    %3077 = vmatprep.subr.mxu0 0.0
    %3078 = vmatpush1.xpose.msra.mxu0 0.0
    %3079 = vmatprep.subr.mxu0 0.0
    %3080 = vmatpush1.xpose.msra.mxu0 0.0
    %3081 = vmatprep.subr.mxu0 0.0
    %3082 = vmatpush1.xpose.msra.mxu0 0.0
    %3083 = vmatprep.subr.mxu0 0.0
    %3084 = vmatpush1.xpose.msra.mxu0 0.0
    %3085 = vmatprep.subr.mxu0 0.0
    %3086 = vmatpush1.xpose.msra.mxu0 0.0
    %3087 = vmatprep.subr.mxu0 0.0
    %3088 = vmatpush1.xpose.msra.mxu0 0.0
    %3089 = vmatprep.subr.mxu0 0.0
    %3090 = vmatpush1.xpose.msra.mxu0 0.0
    %3091 = vmatprep.subr.mxu0 0.0
    %3092 = vmatpush1.xpose.msra.mxu0 0.0
    %3093 = vmatprep.subr.mxu0 0.0
    %3094 = vmatpush1.xpose.msra.mxu0 0.0
    %3095 = vmatprep.subr.mxu0 0.0
    %3096 = vmatpush1.xpose.msra.mxu0 0.0
    %3097 = vmatprep.subr.mxu0 0.0
    %3098 = vmatpush1.xpose.msra.mxu0 0.0
    %3099 = vmatprep.subr.mxu0 0.0
    %3100 = vmatpush1.xpose.msra.mxu0 0.0
    %3101 = vmatprep.mubr.f32.mxu0 0.0
    %3102 = vmatmul.mubr.f32.gmra.mrb[0].mxu0 %v3033
    %v3103 = vpop.f32.mrb[0].mxu0
    %v3104 = vadd.f32 %v1026, %v3103
    %v3105 = vpop.f32.mrb[0].mxu0
    %3106 = vdwg.mxu0
    %v3107 = vsel %vm348, %v3104, -inf
    %3108 = vmax.xlane.f32.xlu0 %v3107
    %v3109 = vpop.xlane.xlu0 %3108
    %v3110 = vsub.f32 %v3104, %v3109
    %v3111 = vmul.f32 %v3110, 1.442695
    %v3112 = vpow.pop %v3111
    %v3113 = vsel %vm348, %v3112, 0.0
    %3114 = vadd.xlane.f32.xlu0 %v3113
    %v3115 = vpop.xlane.xlu0 %3114
    %v3116 = vrcp.pop %v3115
    %v3117 = vmul.f32 %v3112, %v3116
    %3118 = vrot.lane.b32.xlu0 %v2184, 56
    %v3119 = vpop.permute.xlu0 %3118
    %v3122 = vsel %vm348, %v3117, 0
    %3124 = vmatprep.subr.mxu0 0.0
    %3125 = vmatpush1.msra.mxu0 %v3119
    %3126 = vmatprep.subr.mxu0 0.0
    %3127 = vmatpush1.msra.mxu0 0.0
    %3128 = vmatprep.subr.mxu0 0.0
    %3129 = vmatpush1.msra.mxu0 0.0
    %3130 = vmatprep.subr.mxu0 0.0
    %3131 = vmatpush1.msra.mxu0 0.0
    %3132 = vmatprep.subr.mxu0 0.0
    %3133 = vmatpush1.msra.mxu0 0.0
    %3134 = vmatprep.subr.mxu0 0.0
    %3135 = vmatpush1.msra.mxu0 0.0
    %3136 = vmatprep.subr.mxu0 0.0
    %3137 = vmatpush1.msra.mxu0 0.0
    %3138 = vmatprep.subr.mxu0 0.0
    %3139 = vmatpush1.msra.mxu0 0.0
    %3140 = vmatprep.subr.mxu0 0.0
    %3141 = vmatpush1.msra.mxu0 0.0
    %3142 = vmatprep.subr.mxu0 0.0
    %3143 = vmatpush1.msra.mxu0 0.0
    %3144 = vmatprep.subr.mxu0 0.0
    %3145 = vmatpush1.msra.mxu0 0.0
    %3146 = vmatprep.subr.mxu0 0.0
    %3147 = vmatpush1.msra.mxu0 0.0
    %3148 = vmatprep.subr.mxu0 0.0
    %3149 = vmatpush1.msra.mxu0 0.0
    %3150 = vmatprep.subr.mxu0 0.0
    %3151 = vmatpush1.msra.mxu0 0.0
    %3152 = vmatprep.subr.mxu0 0.0
    %3153 = vmatpush1.msra.mxu0 0.0
    %3154 = vmatprep.subr.mxu0 0.0
    %3155 = vmatpush1.msra.mxu0 0.0
    %3156 = vmatprep.subr.mxu0 0.0
    %3157 = vmatpush1.msra.mxu0 0.0
    %3158 = vmatprep.subr.mxu0 0.0
    %3159 = vmatpush1.msra.mxu0 0.0
    %3160 = vmatprep.subr.mxu0 0.0
    %3161 = vmatpush1.msra.mxu0 0.0
    %3162 = vmatprep.subr.mxu0 0.0
    %3163 = vmatpush1.msra.mxu0 0.0
    %3164 = vmatprep.subr.mxu0 0.0
    %3165 = vmatpush1.msra.mxu0 0.0
    %3166 = vmatprep.subr.mxu0 0.0
    %3167 = vmatpush1.msra.mxu0 0.0
    %3168 = vmatprep.subr.mxu0 0.0
    %3169 = vmatpush1.msra.mxu0 0.0
    %3170 = vmatprep.subr.mxu0 0.0
    %3171 = vmatpush1.msra.mxu0 0.0
    %3172 = vmatprep.subr.mxu0 0.0
    %3173 = vmatpush1.msra.mxu0 0.0
    %3174 = vmatprep.subr.mxu0 0.0
    %3175 = vmatpush1.msra.mxu0 0.0
    %3176 = vmatprep.subr.mxu0 0.0
    %3177 = vmatpush1.msra.mxu0 0.0
    %3178 = vmatprep.subr.mxu0 0.0
    %3179 = vmatpush1.msra.mxu0 0.0
    %3180 = vmatprep.subr.mxu0 0.0
    %3181 = vmatpush1.msra.mxu0 0.0
    %3182 = vmatprep.subr.mxu0 0.0
    %3183 = vmatpush1.msra.mxu0 0.0
    %3184 = vmatprep.subr.mxu0 0.0
    %3185 = vmatpush1.msra.mxu0 0.0
    %3186 = vmatprep.subr.mxu0 0.0
    %3187 = vmatpush1.msra.mxu0 0.0
    %3188 = vmatprep.mubr.f32.mxu0 0.0
    %3189 = vmatmul.mubr.f32.gmra.mrb[0].mxu0 %v3122
    %v3190 = vpop.f32.mrb[0].mxu0
    %v3191 = vadd.f32 0.0, %v3190
    %v3192 = vpop.f32.mrb[0].mxu0
    %3193 = vdwg.mxu0
    %3194 = vrot.lane.b32.xlu0 %v2188, 112
    %v3195 = vpop.permute.xlu0 %3194
    %3196 = vrot.lane.b32.xlu0 %v2184, 80
    %v3197 = vpop.permute.xlu0 %3196
    %v3198 = vsel %vm348, %v3195, 0
    %v3200 = vsel %vm348, %v3197, 0
    %3202 = vmatprep.subr.mxu0 0.0
    %3203 = vmatpush1.xpose.msra.mxu0 %v3200
    %3204 = vmatprep.subr.mxu0 0.0
    %3205 = vmatpush1.xpose.msra.mxu0 0.0
    %3206 = vmatprep.subr.mxu0 0.0
    %3207 = vmatpush1.xpose.msra.mxu0 0.0
    %3208 = vmatprep.subr.mxu0 0.0
    %3209 = vmatpush1.xpose.msra.mxu0 0.0
    %3210 = vmatprep.subr.mxu0 0.0
    %3211 = vmatpush1.xpose.msra.mxu0 0.0
    %3212 = vmatprep.subr.mxu0 0.0
    %3213 = vmatpush1.xpose.msra.mxu0 0.0
    %3214 = vmatprep.subr.mxu0 0.0
    %3215 = vmatpush1.xpose.msra.mxu0 0.0
    %3216 = vmatprep.subr.mxu0 0.0
    %3217 = vmatpush1.xpose.msra.mxu0 0.0
    %3218 = vmatprep.subr.mxu0 0.0
    %3219 = vmatpush1.xpose.msra.mxu0 0.0
    %3220 = vmatprep.subr.mxu0 0.0
    %3221 = vmatpush1.xpose.msra.mxu0 0.0
    %3222 = vmatprep.subr.mxu0 0.0
    %3223 = vmatpush1.xpose.msra.mxu0 0.0
    %3224 = vmatprep.subr.mxu0 0.0
    %3225 = vmatpush1.xpose.msra.mxu0 0.0
    %3226 = vmatprep.subr.mxu0 0.0
    %3227 = vmatpush1.xpose.msra.mxu0 0.0
    %3228 = vmatprep.subr.mxu0 0.0
    %3229 = vmatpush1.xpose.msra.mxu0 0.0
    %3230 = vmatprep.subr.mxu0 0.0
    %3231 = vmatpush1.xpose.msra.mxu0 0.0
    %3232 = vmatprep.subr.mxu0 0.0
    %3233 = vmatpush1.xpose.msra.mxu0 0.0
    %3234 = vmatprep.subr.mxu0 0.0
    %3235 = vmatpush1.xpose.msra.mxu0 0.0
    %3236 = vmatprep.subr.mxu0 0.0
    %3237 = vmatpush1.xpose.msra.mxu0 0.0
    %3238 = vmatprep.subr.mxu0 0.0
    %3239 = vmatpush1.xpose.msra.mxu0 0.0
    %3240 = vmatprep.subr.mxu0 0.0
    %3241 = vmatpush1.xpose.msra.mxu0 0.0
    %3242 = vmatprep.subr.mxu0 0.0
    %3243 = vmatpush1.xpose.msra.mxu0 0.0
    %3244 = vmatprep.subr.mxu0 0.0
    %3245 = vmatpush1.xpose.msra.mxu0 0.0
    %3246 = vmatprep.subr.mxu0 0.0
    %3247 = vmatpush1.xpose.msra.mxu0 0.0
    %3248 = vmatprep.subr.mxu0 0.0
    %3249 = vmatpush1.xpose.msra.mxu0 0.0
    %3250 = vmatprep.subr.mxu0 0.0
    %3251 = vmatpush1.xpose.msra.mxu0 0.0
    %3252 = vmatprep.subr.mxu0 0.0
    %3253 = vmatpush1.xpose.msra.mxu0 0.0
    %3254 = vmatprep.subr.mxu0 0.0
    %3255 = vmatpush1.xpose.msra.mxu0 0.0
    %3256 = vmatprep.subr.mxu0 0.0
    %3257 = vmatpush1.xpose.msra.mxu0 0.0
    %3258 = vmatprep.subr.mxu0 0.0
    %3259 = vmatpush1.xpose.msra.mxu0 0.0
    %3260 = vmatprep.subr.mxu0 0.0
    %3261 = vmatpush1.xpose.msra.mxu0 0.0
    %3262 = vmatprep.subr.mxu0 0.0
    %3263 = vmatpush1.xpose.msra.mxu0 0.0
    %3264 = vmatprep.subr.mxu0 0.0
    %3265 = vmatpush1.xpose.msra.mxu0 0.0
    %3266 = vmatprep.mubr.f32.mxu0 0.0
    %3267 = vmatmul.mubr.f32.gmra.mrb[0].mxu0 %v3198
    %v3268 = vpop.f32.mrb[0].mxu0
    %v3269 = vadd.f32 %v1026, %v3268
    %v3270 = vpop.f32.mrb[0].mxu0
    %3271 = vdwg.mxu0
    %v3272 = vsel %vm348, %v3269, -inf
    %3273 = vmax.xlane.f32.xlu0 %v3272
    %v3274 = vpop.xlane.xlu0 %3273
    %v3275 = vsub.f32 %v3269, %v3274
    %v3276 = vmul.f32 %v3275, 1.442695
    %v3277 = vpow.pop %v3276
    %v3278 = vsel %vm348, %v3277, 0.0
    %3279 = vadd.xlane.f32.xlu0 %v3278
    %v3280 = vpop.xlane.xlu0 %3279
    %v3281 = vrcp.pop %v3280
    %v3282 = vmul.f32 %v3277, %v3281
    %3283 = vrot.lane.b32.xlu0 %v2184, 48
    %v3284 = vpop.permute.xlu0 %3283
    %v3287 = vsel %vm348, %v3282, 0
    %3289 = vmatprep.subr.mxu0 0.0
    %3290 = vmatpush1.msra.mxu0 %v3284
    %3291 = vmatprep.subr.mxu0 0.0
    %3292 = vmatpush1.msra.mxu0 0.0
    %3293 = vmatprep.subr.mxu0 0.0
    %3294 = vmatpush1.msra.mxu0 0.0
    %3295 = vmatprep.subr.mxu0 0.0
    %3296 = vmatpush1.msra.mxu0 0.0
    %3297 = vmatprep.subr.mxu0 0.0
    %3298 = vmatpush1.msra.mxu0 0.0
    %3299 = vmatprep.subr.mxu0 0.0
    %3300 = vmatpush1.msra.mxu0 0.0
    %3301 = vmatprep.subr.mxu0 0.0
    %3302 = vmatpush1.msra.mxu0 0.0
    %3303 = vmatprep.subr.mxu0 0.0
    %3304 = vmatpush1.msra.mxu0 0.0
    %3305 = vmatprep.subr.mxu0 0.0
    %3306 = vmatpush1.msra.mxu0 0.0
    %3307 = vmatprep.subr.mxu0 0.0
    %3308 = vmatpush1.msra.mxu0 0.0
    %3309 = vmatprep.subr.mxu0 0.0
    %3310 = vmatpush1.msra.mxu0 0.0
    %3311 = vmatprep.subr.mxu0 0.0
    %3312 = vmatpush1.msra.mxu0 0.0
    %3313 = vmatprep.subr.mxu0 0.0
    %3314 = vmatpush1.msra.mxu0 0.0
    %3315 = vmatprep.subr.mxu0 0.0
    %3316 = vmatpush1.msra.mxu0 0.0
    %3317 = vmatprep.subr.mxu0 0.0
    %3318 = vmatpush1.msra.mxu0 0.0
    %3319 = vmatprep.subr.mxu0 0.0
    %3320 = vmatpush1.msra.mxu0 0.0
    %3321 = vmatprep.subr.mxu0 0.0
    %3322 = vmatpush1.msra.mxu0 0.0
    %3323 = vmatprep.subr.mxu0 0.0
    %3324 = vmatpush1.msra.mxu0 0.0
    %3325 = vmatprep.subr.mxu0 0.0
    %3326 = vmatpush1.msra.mxu0 0.0
    %3327 = vmatprep.subr.mxu0 0.0
    %3328 = vmatpush1.msra.mxu0 0.0
    %3329 = vmatprep.subr.mxu0 0.0
    %3330 = vmatpush1.msra.mxu0 0.0
    %3331 = vmatprep.subr.mxu0 0.0
    %3332 = vmatpush1.msra.mxu0 0.0
    %3333 = vmatprep.subr.mxu0 0.0
    %3334 = vmatpush1.msra.mxu0 0.0
    %3335 = vmatprep.subr.mxu0 0.0
    %3336 = vmatpush1.msra.mxu0 0.0
    %3337 = vmatprep.subr.mxu0 0.0
    %3338 = vmatpush1.msra.mxu0 0.0
    %3339 = vmatprep.subr.mxu0 0.0
    %3340 = vmatpush1.msra.mxu0 0.0
    %3341 = vmatprep.subr.mxu0 0.0
    %3342 = vmatpush1.msra.mxu0 0.0
    %3343 = vmatprep.subr.mxu0 0.0
    %3344 = vmatpush1.msra.mxu0 0.0
    %3345 = vmatprep.subr.mxu0 0.0
    %3346 = vmatpush1.msra.mxu0 0.0
    %3347 = vmatprep.subr.mxu0 0.0
    %3348 = vmatpush1.msra.mxu0 0.0
    %3349 = vmatprep.subr.mxu0 0.0
    %3350 = vmatpush1.msra.mxu0 0.0
    %3351 = vmatprep.subr.mxu0 0.0
    %3352 = vmatpush1.msra.mxu0 0.0
    %3353 = vmatprep.mubr.f32.mxu0 0.0
    %3354 = vmatmul.mubr.f32.gmra.mrb[0].mxu0 %v3287
    %v3355 = vpop.f32.mrb[0].mxu0
    %v3356 = vadd.f32 0.0, %v3355
    %v3357 = vpop.f32.mrb[0].mxu0
    %3358 = vdwg.mxu0
    %3359 = vrot.lane.b32.xlu0 %v2188, 104
    %v3360 = vpop.permute.xlu0 %3359
    %3361 = vrot.lane.b32.xlu0 %v2184, 72
    %v3362 = vpop.permute.xlu0 %3361
    %v3363 = vsel %vm348, %v3360, 0
    %v3365 = vsel %vm348, %v3362, 0
    %3367 = vmatprep.subr.mxu0 0.0
    %3368 = vmatpush1.xpose.msra.mxu0 %v3365
    %3369 = vmatprep.subr.mxu0 0.0
    %3370 = vmatpush1.xpose.msra.mxu0 0.0
    %3371 = vmatprep.subr.mxu0 0.0
    %3372 = vmatpush1.xpose.msra.mxu0 0.0
    %3373 = vmatprep.subr.mxu0 0.0
    %3374 = vmatpush1.xpose.msra.mxu0 0.0
    %3375 = vmatprep.subr.mxu0 0.0
    %3376 = vmatpush1.xpose.msra.mxu0 0.0
    %3377 = vmatprep.subr.mxu0 0.0
    %3378 = vmatpush1.xpose.msra.mxu0 0.0
    %3379 = vmatprep.subr.mxu0 0.0
    %3380 = vmatpush1.xpose.msra.mxu0 0.0
    %3381 = vmatprep.subr.mxu0 0.0
    %3382 = vmatpush1.xpose.msra.mxu0 0.0
    %3383 = vmatprep.subr.mxu0 0.0
    %3384 = vmatpush1.xpose.msra.mxu0 0.0
    %3385 = vmatprep.subr.mxu0 0.0
    %3386 = vmatpush1.xpose.msra.mxu0 0.0
    %3387 = vmatprep.subr.mxu0 0.0
    %3388 = vmatpush1.xpose.msra.mxu0 0.0
    %3389 = vmatprep.subr.mxu0 0.0
    %3390 = vmatpush1.xpose.msra.mxu0 0.0
    %3391 = vmatprep.subr.mxu0 0.0
    %3392 = vmatpush1.xpose.msra.mxu0 0.0
    %3393 = vmatprep.subr.mxu0 0.0
    %3394 = vmatpush1.xpose.msra.mxu0 0.0
    %3395 = vmatprep.subr.mxu0 0.0
    %3396 = vmatpush1.xpose.msra.mxu0 0.0
    %3397 = vmatprep.subr.mxu0 0.0
    %3398 = vmatpush1.xpose.msra.mxu0 0.0
    %3399 = vmatprep.subr.mxu0 0.0
    %3400 = vmatpush1.xpose.msra.mxu0 0.0
    %3401 = vmatprep.subr.mxu0 0.0
    %3402 = vmatpush1.xpose.msra.mxu0 0.0
    %3403 = vmatprep.subr.mxu0 0.0
    %3404 = vmatpush1.xpose.msra.mxu0 0.0
    %3405 = vmatprep.subr.mxu0 0.0
    %3406 = vmatpush1.xpose.msra.mxu0 0.0
    %3407 = vmatprep.subr.mxu0 0.0
    %3408 = vmatpush1.xpose.msra.mxu0 0.0
    %3409 = vmatprep.subr.mxu0 0.0
    %3410 = vmatpush1.xpose.msra.mxu0 0.0
    %3411 = vmatprep.subr.mxu0 0.0
    %3412 = vmatpush1.xpose.msra.mxu0 0.0
    %3413 = vmatprep.subr.mxu0 0.0
    %3414 = vmatpush1.xpose.msra.mxu0 0.0
    %3415 = vmatprep.subr.mxu0 0.0
    %3416 = vmatpush1.xpose.msra.mxu0 0.0
    %3417 = vmatprep.subr.mxu0 0.0
    %3418 = vmatpush1.xpose.msra.mxu0 0.0
    %3419 = vmatprep.subr.mxu0 0.0
    %3420 = vmatpush1.xpose.msra.mxu0 0.0
    %3421 = vmatprep.subr.mxu0 0.0
    %3422 = vmatpush1.xpose.msra.mxu0 0.0
    %3423 = vmatprep.subr.mxu0 0.0
    %3424 = vmatpush1.xpose.msra.mxu0 0.0
    %3425 = vmatprep.subr.mxu0 0.0
    %3426 = vmatpush1.xpose.msra.mxu0 0.0
    %3427 = vmatprep.subr.mxu0 0.0
    %3428 = vmatpush1.xpose.msra.mxu0 0.0
    %3429 = vmatprep.subr.mxu0 0.0
    %3430 = vmatpush1.xpose.msra.mxu0 0.0
    %3431 = vmatprep.mubr.f32.mxu0 0.0
    %3432 = vmatmul.mubr.f32.gmra.mrb[0].mxu0 %v3363
    %v3433 = vpop.f32.mrb[0].mxu0
    %v3434 = vadd.f32 %v1026, %v3433
    %v3435 = vpop.f32.mrb[0].mxu0
    %3436 = vdwg.mxu0
    %v3437 = vsel %vm348, %v3434, -inf
    %3438 = vmax.xlane.f32.xlu0 %v3437
    %v3439 = vpop.xlane.xlu0 %3438
    %v3440 = vsub.f32 %v3434, %v3439
    %v3441 = vmul.f32 %v3440, 1.442695
    %v3442 = vpow.pop %v3441
    %v3443 = vsel %vm348, %v3442, 0.0
    %3444 = vadd.xlane.f32.xlu0 %v3443
    %v3445 = vpop.xlane.xlu0 %3444
    %v3446 = vrcp.pop %v3445
    %v3447 = vmul.f32 %v3442, %v3446
    %3448 = vrot.lane.b32.xlu0 %v2184, 40
    %v3449 = vpop.permute.xlu0 %3448
    %v3452 = vsel %vm348, %v3447, 0
    %3454 = vmatprep.subr.mxu0 0.0
    %3455 = vmatpush1.msra.mxu0 %v3449
    %3456 = vmatprep.subr.mxu0 0.0
    %3457 = vmatpush1.msra.mxu0 0.0
    %3458 = vmatprep.subr.mxu0 0.0
    %3459 = vmatpush1.msra.mxu0 0.0
    %3460 = vmatprep.subr.mxu0 0.0
    %3461 = vmatpush1.msra.mxu0 0.0
    %3462 = vmatprep.subr.mxu0 0.0
    %3463 = vmatpush1.msra.mxu0 0.0
    %3464 = vmatprep.subr.mxu0 0.0
    %3465 = vmatpush1.msra.mxu0 0.0
    %3466 = vmatprep.subr.mxu0 0.0
    %3467 = vmatpush1.msra.mxu0 0.0
    %3468 = vmatprep.subr.mxu0 0.0
    %3469 = vmatpush1.msra.mxu0 0.0
    %3470 = vmatprep.subr.mxu0 0.0
    %3471 = vmatpush1.msra.mxu0 0.0
    %3472 = vmatprep.subr.mxu0 0.0
    %3473 = vmatpush1.msra.mxu0 0.0
    %3474 = vmatprep.subr.mxu0 0.0
    %3475 = vmatpush1.msra.mxu0 0.0
    %3476 = vmatprep.subr.mxu0 0.0
    %3477 = vmatpush1.msra.mxu0 0.0
    %3478 = vmatprep.subr.mxu0 0.0
    %3479 = vmatpush1.msra.mxu0 0.0
    %3480 = vmatprep.subr.mxu0 0.0
    %3481 = vmatpush1.msra.mxu0 0.0
    %3482 = vmatprep.subr.mxu0 0.0
    %3483 = vmatpush1.msra.mxu0 0.0
    %3484 = vmatprep.subr.mxu0 0.0
    %3485 = vmatpush1.msra.mxu0 0.0
    %3486 = vmatprep.subr.mxu0 0.0
    %3487 = vmatpush1.msra.mxu0 0.0
    %3488 = vmatprep.subr.mxu0 0.0
    %3489 = vmatpush1.msra.mxu0 0.0
    %3490 = vmatprep.subr.mxu0 0.0
    %3491 = vmatpush1.msra.mxu0 0.0
    %3492 = vmatprep.subr.mxu0 0.0
    %3493 = vmatpush1.msra.mxu0 0.0
    %3494 = vmatprep.subr.mxu0 0.0
    %3495 = vmatpush1.msra.mxu0 0.0
    %3496 = vmatprep.subr.mxu0 0.0
    %3497 = vmatpush1.msra.mxu0 0.0
    %3498 = vmatprep.subr.mxu0 0.0
    %3499 = vmatpush1.msra.mxu0 0.0
    %3500 = vmatprep.subr.mxu0 0.0
    %3501 = vmatpush1.msra.mxu0 0.0
    %3502 = vmatprep.subr.mxu0 0.0
    %3503 = vmatpush1.msra.mxu0 0.0
    %3504 = vmatprep.subr.mxu0 0.0
    %3505 = vmatpush1.msra.mxu0 0.0
    %3506 = vmatprep.subr.mxu0 0.0
    %3507 = vmatpush1.msra.mxu0 0.0
    %3508 = vmatprep.subr.mxu0 0.0
    %3509 = vmatpush1.msra.mxu0 0.0
    %3510 = vmatprep.subr.mxu0 0.0
    %3511 = vmatpush1.msra.mxu0 0.0
    %3512 = vmatprep.subr.mxu0 0.0
    %3513 = vmatpush1.msra.mxu0 0.0
    %3514 = vmatprep.subr.mxu0 0.0
    %3515 = vmatpush1.msra.mxu0 0.0
    %3516 = vmatprep.subr.mxu0 0.0
    %3517 = vmatpush1.msra.mxu0 0.0
    %3518 = vmatprep.mubr.f32.mxu0 0.0
    %3519 = vmatmul.mubr.f32.gmra.mrb[0].mxu0 %v3452
    %v3520 = vpop.f32.mrb[0].mxu0
    %v3521 = vadd.f32 0.0, %v3520
    %v3522 = vpop.f32.mrb[0].mxu0
    %3523 = vdwg.mxu0
    %3525 = vrot.lane.b32.xlu0 %v3191, 8
    %v3526 = vpop.permute.xlu0 %3525
    %3529 = vrot.lane.b32.xlu0 %v3356, 16
    %v3530 = vpop.permute.xlu0 %3529
    %3533 = vrot.lane.b32.xlu0 %v3521, 24
    %v3534 = vpop.permute.xlu0 %3533
    %v3536 = vsel %vm348, %v3026, %v3526
    %v3537 = vsel %vm1019, %v3536, %v3530
    %v3538 = vsel %vm1021, %v3537, %v3534
    %s3539 = scalar_lea.vmem %s9, 32
    %v3540 = vld [vmem:[%s3539] sm:$0xff]
    %v3541 = vld [vmem:[%s3539 + $0x8] sm:$0xff]
    %v3542 = vld [vmem:[%s3539 + $0x10] sm:$0xff]
    %v3543 = vld [vmem:[%s3539 + $0x18] sm:$0xff]
    %s3544 = scalar_lea.vmem %s10, 1
    %v3545 = vld [vmem:[%s3544] sm:$0x1]
    %v3547 = vlaneseq
    %v3548 = vshrl.u32 %v3547, 7
    %v3549 = vsub.s32 0, %v3548
    %v3550 = vrot.slane %v3545, %v3549
    %v3553 = vsel %vm200, %v2863, 0
    %v3556 = vsel %vm200, %v3538, 0
    %3558 = vmatprep.subr.mxu0 0.0
    %3559 = vmatpush1.msra.mxu0 %v3540
    %3560 = vmatprep.subr.mxu0 0.0
    %3561 = vmatpush1.msra.mxu0 %v3541
    %3562 = vmatprep.subr.mxu0 0.0
    %3563 = vmatpush1.msra.mxu0 %v3542
    %3564 = vmatprep.subr.mxu0 0.0
    %3565 = vmatpush1.msra.mxu0 %v3543
    %3566 = vmatprep.subr.mxu0 0.0
    %3567 = vmatpush1.msra.mxu0 0.0
    %3568 = vmatprep.subr.mxu0 0.0
    %3569 = vmatpush1.msra.mxu0 0.0
    %3570 = vmatprep.subr.mxu0 0.0
    %3571 = vmatpush1.msra.mxu0 0.0
    %3572 = vmatprep.subr.mxu0 0.0
    %3573 = vmatpush1.msra.mxu0 0.0
    %3574 = vmatprep.subr.mxu0 0.0
    %3575 = vmatpush1.msra.mxu0 0.0
    %3576 = vmatprep.subr.mxu0 0.0
    %3577 = vmatpush1.msra.mxu0 0.0
    %3578 = vmatprep.subr.mxu0 0.0
    %3579 = vmatpush1.msra.mxu0 0.0
    %3580 = vmatprep.subr.mxu0 0.0
    %3581 = vmatpush1.msra.mxu0 0.0
    %3582 = vmatprep.subr.mxu0 0.0
    %3583 = vmatpush1.msra.mxu0 0.0
    %3584 = vmatprep.subr.mxu0 0.0
    %3585 = vmatpush1.msra.mxu0 0.0
    %3586 = vmatprep.subr.mxu0 0.0
    %3587 = vmatpush1.msra.mxu0 0.0
    %3588 = vmatprep.subr.mxu0 0.0
    %3589 = vmatpush1.msra.mxu0 0.0
    %3590 = vmatprep.subr.mxu0 0.0
    %3591 = vmatpush1.msra.mxu0 0.0
    %3592 = vmatprep.subr.mxu0 0.0
    %3593 = vmatpush1.msra.mxu0 0.0
    %3594 = vmatprep.subr.mxu0 0.0
    %3595 = vmatpush1.msra.mxu0 0.0
    %3596 = vmatprep.subr.mxu0 0.0
    %3597 = vmatpush1.msra.mxu0 0.0
    %3598 = vmatprep.subr.mxu0 0.0
    %3599 = vmatpush1.msra.mxu0 0.0
    %3600 = vmatprep.subr.mxu0 0.0
    %3601 = vmatpush1.msra.mxu0 0.0
    %3602 = vmatprep.subr.mxu0 0.0
    %3603 = vmatpush1.msra.mxu0 0.0
    %3604 = vmatprep.subr.mxu0 0.0
    %3605 = vmatpush1.msra.mxu0 0.0
    %3606 = vmatprep.subr.mxu0 0.0
    %3607 = vmatpush1.msra.mxu0 0.0
    %3608 = vmatprep.subr.mxu0 0.0
    %3609 = vmatpush1.msra.mxu0 0.0
    %3610 = vmatprep.subr.mxu0 0.0
    %3611 = vmatpush1.msra.mxu0 0.0
    %3612 = vmatprep.subr.mxu0 0.0
    %3613 = vmatpush1.msra.mxu0 0.0
    %3614 = vmatprep.subr.mxu0 0.0
    %3615 = vmatpush1.msra.mxu0 0.0
    %3616 = vmatprep.subr.mxu0 0.0
    %3617 = vmatpush1.msra.mxu0 0.0
    %3618 = vmatprep.subr.mxu0 0.0
    %3619 = vmatpush1.msra.mxu0 0.0
    %3620 = vmatprep.subr.mxu0 0.0
    %3621 = vmatpush1.msra.mxu0 0.0
    %3622 = vmatprep.mubr.f32.mxu0 0.0
    %3623 = vmatmul.mubr.f32.gmra.mrb[0].mxu0 %v3553
    %v3624 = vpop.f32.mrb[0].mxu0
    %v3625 = vadd.f32 %v3550, %v3624
    %v3626 = vpop.f32.mrb[0].mxu0
    %3627 = vmatprep.mubr.f32.mxu0 0.0
    %3628 = vmatmul.mubr.f32.gmra.mrb[0].mxu0 %v3556
    %v3629 = vpop.f32.mrb[0].mxu0
    %v3630 = vadd.f32 %v3550, %v3629
    %v3631 = vpop.f32.mrb[0].mxu0
    %3632 = vdwg.mxu0
    %v3633 = vadd.f32 %v3625, %v2091
    %v3634 = vadd.f32 %v3630, %v2092
    %s3635 = scalar_lea.vmem %s11, 1
    %v3636 = vld [vmem:[%s3635] sm:$0x1]
    %s3637 = scalar_lea.vmem %s12, 1
    %v3638 = vld [vmem:[%s3637] sm:$0x1]
    %v3639 = vsel %vm200, %v3633, 0.0
    %3640 = vadd.xlane.f32.xlu0 %v3639
    %v3641 = vpop.xlane.xlu0 %3640
    %v3642 = vsel %vm200, %v3634, 0.0
    %3643 = vadd.xlane.f32.xlu0 %v3642
    %v3644 = vpop.xlane.xlu0 %3643
    %v3645 = vmul.f32 %v3641, %v207
    %v3646 = vmul.f32 %v3644, %v207
    %v3647 = vsub.f32 %v3633, %v3645
    %v3648 = vsub.f32 %v3634, %v3646
    %v3649 = vmul.f32 %v3647, %v3647
    %v3650 = vmul.f32 %v3648, %v3648
    %v3651 = vsel %vm200, %v3649, 0.0
    %3652 = vadd.xlane.f32.xlu0 %v3651
    %v3653 = vpop.xlane.xlu0 %3652
    %v3654 = vsel %vm200, %v3650, 0.0
    %3655 = vadd.xlane.f32.xlu0 %v3654
    %v3656 = vpop.xlane.xlu0 %3655
    %v3657 = vmul.f32 %v3653, %v207
    %v3658 = vmul.f32 %v3656, %v207
    %v3659 = vadd.f32 %v3657, 1e-12
    %v3660 = vadd.f32 %v3658, 1e-12
    %v3661 = vrsqrt.pop %v3659
    %v3662 = vrsqrt.pop %v3660
    %v3663 = vmul.f32 %v3647, %v3661
    %v3664 = vmul.f32 %v3648, %v3662
    %v3666 = vlaneseq
    %v3667 = vshrl.u32 %v3666, 7
    %v3668 = vsub.s32 0, %v3667
    %v3669 = vrot.slane %v3636, %v3668
    %v3671 = vmul.f32 %v3663, %v3669
    %v3672 = vmul.f32 %v3664, %v3669
    %v3674 = vlaneseq
    %v3675 = vshrl.u32 %v3674, 7
    %v3676 = vsub.s32 0, %v3675
    %v3677 = vrot.slane %v3638, %v3676
    %v3679 = vadd.f32 %v3671, %v3677
    %v3680 = vadd.f32 %v3672, %v3677
    %s3681 = scalar_lea.vmem %s13, 32
    %v3682 = vld [vmem:[%s3681] sm:$0xff]
    %v3683 = vld [vmem:[%s3681 + $0x8] sm:$0xff]
    %v3684 = vld [vmem:[%s3681 + $0x10] sm:$0xff]
    %v3685 = vld [vmem:[%s3681 + $0x18] sm:$0xff]
    %s3686 = scalar_lea.vmem %s14, 1
    %v3687 = vld [vmem:[%s3686] sm:$0x1]
    %v3689 = vlaneseq
    %v3690 = vshrl.u32 %v3689, 7
    %v3691 = vsub.s32 0, %v3690
    %v3692 = vrot.slane %v3687, %v3691
    %v3695 = vsel %vm200, %v3679, 0
    %v3698 = vsel %vm200, %v3680, 0
    %3700 = vmatprep.subr.mxu0 0.0
    %3701 = vmatpush1.msra.mxu0 %v3682
    %3702 = vmatprep.subr.mxu0 0.0
    %3703 = vmatpush1.msra.mxu0 %v3683
    %3704 = vmatprep.subr.mxu0 0.0
    %3705 = vmatpush1.msra.mxu0 %v3684
    %3706 = vmatprep.subr.mxu0 0.0
    %3707 = vmatpush1.msra.mxu0 %v3685
    %3708 = vmatprep.subr.mxu0 0.0
    %3709 = vmatpush1.msra.mxu0 0.0
    %3710 = vmatprep.subr.mxu0 0.0
    %3711 = vmatpush1.msra.mxu0 0.0
    %3712 = vmatprep.subr.mxu0 0.0
    %3713 = vmatpush1.msra.mxu0 0.0
    %3714 = vmatprep.subr.mxu0 0.0
    %3715 = vmatpush1.msra.mxu0 0.0
    %3716 = vmatprep.subr.mxu0 0.0
    %3717 = vmatpush1.msra.mxu0 0.0
    %3718 = vmatprep.subr.mxu0 0.0
    %3719 = vmatpush1.msra.mxu0 0.0
    %3720 = vmatprep.subr.mxu0 0.0
    %3721 = vmatpush1.msra.mxu0 0.0
    %3722 = vmatprep.subr.mxu0 0.0
    %3723 = vmatpush1.msra.mxu0 0.0
    %3724 = vmatprep.subr.mxu0 0.0
    %3725 = vmatpush1.msra.mxu0 0.0
    %3726 = vmatprep.subr.mxu0 0.0
    %3727 = vmatpush1.msra.mxu0 0.0
    %3728 = vmatprep.subr.mxu0 0.0
    %3729 = vmatpush1.msra.mxu0 0.0
    %3730 = vmatprep.subr.mxu0 0.0
    %3731 = vmatpush1.msra.mxu0 0.0
    %3732 = vmatprep.subr.mxu0 0.0
    %3733 = vmatpush1.msra.mxu0 0.0
    %3734 = vmatprep.subr.mxu0 0.0
    %3735 = vmatpush1.msra.mxu0 0.0
    %3736 = vmatprep.subr.mxu0 0.0
    %3737 = vmatpush1.msra.mxu0 0.0
    %3738 = vmatprep.subr.mxu0 0.0
    %3739 = vmatpush1.msra.mxu0 0.0
    %3740 = vmatprep.subr.mxu0 0.0
    %3741 = vmatpush1.msra.mxu0 0.0
    %3742 = vmatprep.subr.mxu0 0.0
    %3743 = vmatpush1.msra.mxu0 0.0
    %3744 = vmatprep.subr.mxu0 0.0
    %3745 = vmatpush1.msra.mxu0 0.0
    %3746 = vmatprep.subr.mxu0 0.0
    %3747 = vmatpush1.msra.mxu0 0.0
    %3748 = vmatprep.subr.mxu0 0.0
    %3749 = vmatpush1.msra.mxu0 0.0
    %3750 = vmatprep.subr.mxu0 0.0
    %3751 = vmatpush1.msra.mxu0 0.0
    %3752 = vmatprep.subr.mxu0 0.0
    %3753 = vmatpush1.msra.mxu0 0.0
    %3754 = vmatprep.subr.mxu0 0.0
    %3755 = vmatpush1.msra.mxu0 0.0
    %3756 = vmatprep.subr.mxu0 0.0
    %3757 = vmatpush1.msra.mxu0 0.0
    %3758 = vmatprep.subr.mxu0 0.0
    %3759 = vmatpush1.msra.mxu0 0.0
    %3760 = vmatprep.subr.mxu0 0.0
    %3761 = vmatpush1.msra.mxu0 0.0
    %3762 = vmatprep.subr.mxu0 0.0
    %3763 = vmatpush1.msra.mxu0 0.0
    %3764 = vmatprep.mubr.f32.mxu0 0.0
    %3765 = vmatmul.mubr.f32.gmra.mrb[0].mxu0 %v3695
    %v3766 = vpop.f32.mrb[0].mxu0
    %v3767 = vadd.f32 %v3692, %v3766
    %v3768 = vpop.f32.mrb[0].mxu0
    %3769 = vmatprep.mubr.f32.mxu0 0.0
    %3770 = vmatmul.mubr.f32.gmra.mrb[0].mxu0 %v3698
    %v3771 = vpop.f32.mrb[0].mxu0
    %v3772 = vadd.f32 %v3692, %v3771
    %v3773 = vpop.f32.mrb[0].mxu0
    %3774 = vdwg.mxu0
    %v3775 = vmul.f32 %v3767, 0.5
    %v3776 = vmul.f32 %v3772, 0.5
    %v3777 = vmul.f32 %v3767, 0.044715
    %v3778 = vmul.f32 %v3772, 0.044715
    %v3779 = vmul.f32 %v3777, %v3767
    %v3780 = vmul.f32 %v3778, %v3772
    %v3781 = vmul.f32 %v3779, %v3767
    %v3782 = vmul.f32 %v3780, %v3772
    %v3783 = vadd.f32 %v3767, %v3781
    %v3784 = vadd.f32 %v3772, %v3782
    %v3785 = vmul.f32 %v3783, 0.7978846
    %v3786 = vmul.f32 %v3784, 0.7978846
    %v3787 = vtanh.pop %v3785
    %v3788 = vtanh.pop %v3786
    %v3789 = vadd.f32 %v3787, 1.0
    %v3790 = vadd.f32 %v3788, 1.0
    %v3791 = vmul.f32 %v3775, %v3789
    %v3792 = vmul.f32 %v3776, %v3790
    %s3793 = scalar_lea.vmem %s15, 64
    %v3794 = vld [vmem:[%s3793] sm:$0xff]
    %v3795 = vld [vmem:[%s3793 + $0x8] sm:$0xff]
    %v3796 = vld [vmem:[%s3793 + $0x10] sm:$0xff]
    %v3797 = vld [vmem:[%s3793 + $0x18] sm:$0xff]
    %v3798 = vld [vmem:[%s3793 + $0x20] sm:$0xff]
    %v3799 = vld [vmem:[%s3793 + $0x28] sm:$0xff]
    %v3800 = vld [vmem:[%s3793 + $0x30] sm:$0xff]
    %v3801 = vld [vmem:[%s3793 + $0x38] sm:$0xff]
    %s3802 = scalar_lea.vmem %s16, 1
    %v3803 = vld [vmem:[%s3802] sm:$0x1]
    %v3805 = vlaneseq
    %v3806 = vshrl.u32 %v3805, 7
    %v3807 = vsub.s32 0, %v3806
    %v3808 = vrot.slane %v3803, %v3807
    %v3811 = vsel %vm1965, %v3791, 0
    %v3814 = vsel %vm1965, %v3792, 0
    %3816 = vmatprep.subr.mxu0 0.0
    %3817 = vmatpush1.msra.mxu0 %v3794
    %3818 = vmatprep.subr.mxu0 0.0
    %3819 = vmatpush1.msra.mxu0 %v3795
    %3820 = vmatprep.subr.mxu0 0.0
    %3821 = vmatpush1.msra.mxu0 %v3796
    %3822 = vmatprep.subr.mxu0 0.0
    %3823 = vmatpush1.msra.mxu0 %v3797
    %3824 = vmatprep.subr.mxu0 0.0
    %3825 = vmatpush1.msra.mxu0 %v3798
    %3826 = vmatprep.subr.mxu0 0.0
    %3827 = vmatpush1.msra.mxu0 %v3799
    %3828 = vmatprep.subr.mxu0 0.0
    %3829 = vmatpush1.msra.mxu0 %v3800
    %3830 = vmatprep.subr.mxu0 0.0
    %3831 = vmatpush1.msra.mxu0 %v3801
    %3832 = vmatprep.subr.mxu0 0.0
    %3833 = vmatpush1.msra.mxu0 0.0
    %3834 = vmatprep.subr.mxu0 0.0
    %3835 = vmatpush1.msra.mxu0 0.0
    %3836 = vmatprep.subr.mxu0 0.0
    %3837 = vmatpush1.msra.mxu0 0.0
    %3838 = vmatprep.subr.mxu0 0.0
    %3839 = vmatpush1.msra.mxu0 0.0
    %3840 = vmatprep.subr.mxu0 0.0
    %3841 = vmatpush1.msra.mxu0 0.0
    %3842 = vmatprep.subr.mxu0 0.0
    %3843 = vmatpush1.msra.mxu0 0.0
    %3844 = vmatprep.subr.mxu0 0.0
    %3845 = vmatpush1.msra.mxu0 0.0
    %3846 = vmatprep.subr.mxu0 0.0
    %3847 = vmatpush1.msra.mxu0 0.0
    %3848 = vmatprep.subr.mxu0 0.0
    %3849 = vmatpush1.msra.mxu0 0.0
    %3850 = vmatprep.subr.mxu0 0.0
    %3851 = vmatpush1.msra.mxu0 0.0
    %3852 = vmatprep.subr.mxu0 0.0
    %3853 = vmatpush1.msra.mxu0 0.0
    %3854 = vmatprep.subr.mxu0 0.0
    %3855 = vmatpush1.msra.mxu0 0.0
    %3856 = vmatprep.subr.mxu0 0.0
    %3857 = vmatpush1.msra.mxu0 0.0
    %3858 = vmatprep.subr.mxu0 0.0
    %3859 = vmatpush1.msra.mxu0 0.0
    %3860 = vmatprep.subr.mxu0 0.0
    %3861 = vmatpush1.msra.mxu0 0.0
    %3862 = vmatprep.subr.mxu0 0.0
    %3863 = vmatpush1.msra.mxu0 0.0
    %3864 = vmatprep.subr.mxu0 0.0
    %3865 = vmatpush1.msra.mxu0 0.0
    %3866 = vmatprep.subr.mxu0 0.0
    %3867 = vmatpush1.msra.mxu0 0.0
    %3868 = vmatprep.subr.mxu0 0.0
    %3869 = vmatpush1.msra.mxu0 0.0
    %3870 = vmatprep.subr.mxu0 0.0
    %3871 = vmatpush1.msra.mxu0 0.0
    %3872 = vmatprep.subr.mxu0 0.0
    %3873 = vmatpush1.msra.mxu0 0.0
    %3874 = vmatprep.subr.mxu0 0.0
    %3875 = vmatpush1.msra.mxu0 0.0
    %3876 = vmatprep.subr.mxu0 0.0
    %3877 = vmatpush1.msra.mxu0 0.0
    %3878 = vmatprep.subr.mxu0 0.0
    %3879 = vmatpush1.msra.mxu0 0.0
    %3880 = vmatprep.mubr.f32.mxu0 0.0
    %3881 = vmatmul.mubr.f32.gmra.mrb[0].mxu0 %v3811
    %v3882 = vpop.f32.mrb[0].mxu0
    %v3883 = vadd.f32 %v3808, %v3882
    %v3884 = vpop.f32.mrb[0].mxu0
    %3885 = vmatprep.mubr.f32.mxu0 0.0
    %3886 = vmatmul.mubr.f32.gmra.mrb[0].mxu0 %v3814
    %v3887 = vpop.f32.mrb[0].mxu0
    %v3888 = vadd.f32 %v3808, %v3887
    %v3889 = vpop.f32.mrb[0].mxu0
    %3890 = vdwg.mxu0
    %v3891 = vadd.f32 %v3883, %v3679
    %v3892 = vadd.f32 %v3888, %v3680
    %s3893 = scalar_lea.vmem %s17, 1
    %v3894 = vld [vmem:[%s3893] sm:$0x1]
    %s3895 = scalar_lea.vmem %s18, 1
    %v3896 = vld [vmem:[%s3895] sm:$0x1]
    %v3897 = vsel %vm200, %v3891, 0.0
    %3898 = vadd.xlane.f32.xlu0 %v3897
    %v3899 = vpop.xlane.xlu0 %3898
    %v3900 = vsel %vm200, %v3892, 0.0
    %3901 = vadd.xlane.f32.xlu0 %v3900
    %v3902 = vpop.xlane.xlu0 %3901
    %v3903 = vmul.f32 %v3899, %v207
    %v3904 = vmul.f32 %v3902, %v207
    %v3905 = vsub.f32 %v3891, %v3903
    %v3906 = vsub.f32 %v3892, %v3904
    %v3907 = vmul.f32 %v3905, %v3905
    %v3908 = vmul.f32 %v3906, %v3906
    %v3909 = vsel %vm200, %v3907, 0.0
    %3910 = vadd.xlane.f32.xlu0 %v3909
    %v3911 = vpop.xlane.xlu0 %3910
    %v3912 = vsel %vm200, %v3908, 0.0
    %3913 = vadd.xlane.f32.xlu0 %v3912
    %v3914 = vpop.xlane.xlu0 %3913
    %v3915 = vmul.f32 %v3911, %v207
    %v3916 = vmul.f32 %v3914, %v207
    %v3917 = vadd.f32 %v3915, 1e-12
    %v3918 = vadd.f32 %v3916, 1e-12
    %v3919 = vrsqrt.pop %v3917
    %v3920 = vrsqrt.pop %v3918
    %v3921 = vmul.f32 %v3905, %v3919
    %v3922 = vmul.f32 %v3906, %v3920
    %v3924 = vlaneseq
    %v3925 = vshrl.u32 %v3924, 7
    %v3926 = vsub.s32 0, %v3925
    %v3927 = vrot.slane %v3894, %v3926
    %v3929 = vmul.f32 %v3921, %v3927
    %v3930 = vmul.f32 %v3922, %v3927
    %v3932 = vlaneseq
    %v3933 = vshrl.u32 %v3932, 7
    %v3934 = vsub.s32 0, %v3933
    %v3935 = vrot.slane %v3896, %v3934
    %v3937 = vadd.f32 %v3929, %v3935
    %v3938 = vadd.f32 %v3930, %v3935
    %v3940 = vrot.slane %v3938, 7
    %vm3942 = vcmask 1040384
    %v3943 = vsel %vm3942, %v3937, %v3940
    %v3944 = vld [vmem:[%s19] sm:$0xff]
    %v3945 = vld [vmem:[%s19 + $0x8] sm:$0xff]
    %v3946 = vld [vmem:[%s19 + $0x10] sm:$0xff]
    %v3947 = vld [vmem:[%s19 + $0x18] sm:$0xff]
    %v3948 = vld [vmem:[%s20] sm:$0x1]
    %v3950 = vlaneseq
    %v3951 = vshrl.u32 %v3950, 7
    %v3952 = vsub.s32 0, %v3951
    %v3953 = vrot.slane %v3948, %v3952
    %v3956 = vsel %vm200, %v3943, 0
    %3958 = vmatprep.subr.mxu0 0.0
    %3959 = vmatpush1.msra.mxu0 %v3944
    %3960 = vmatprep.subr.mxu0 0.0
    %3961 = vmatpush1.msra.mxu0 %v3945
    %3962 = vmatprep.subr.mxu0 0.0
    %3963 = vmatpush1.msra.mxu0 %v3946
    %3964 = vmatprep.subr.mxu0 0.0
    %3965 = vmatpush1.msra.mxu0 %v3947
    %3966 = vmatprep.subr.mxu0 0.0
    %3967 = vmatpush1.msra.mxu0 0.0
    %3968 = vmatprep.subr.mxu0 0.0
    %3969 = vmatpush1.msra.mxu0 0.0
    %3970 = vmatprep.subr.mxu0 0.0
    %3971 = vmatpush1.msra.mxu0 0.0
    %3972 = vmatprep.subr.mxu0 0.0
    %3973 = vmatpush1.msra.mxu0 0.0
    %3974 = vmatprep.subr.mxu0 0.0
    %3975 = vmatpush1.msra.mxu0 0.0
    %3976 = vmatprep.subr.mxu0 0.0
    %3977 = vmatpush1.msra.mxu0 0.0
    %3978 = vmatprep.subr.mxu0 0.0
    %3979 = vmatpush1.msra.mxu0 0.0
    %3980 = vmatprep.subr.mxu0 0.0
    %3981 = vmatpush1.msra.mxu0 0.0
    %3982 = vmatprep.subr.mxu0 0.0
    %3983 = vmatpush1.msra.mxu0 0.0
    %3984 = vmatprep.subr.mxu0 0.0
    %3985 = vmatpush1.msra.mxu0 0.0
    %3986 = vmatprep.subr.mxu0 0.0
    %3987 = vmatpush1.msra.mxu0 0.0
    %3988 = vmatprep.subr.mxu0 0.0
    %3989 = vmatpush1.msra.mxu0 0.0
    %3990 = vmatprep.subr.mxu0 0.0
    %3991 = vmatpush1.msra.mxu0 0.0
    %3992 = vmatprep.subr.mxu0 0.0
    %3993 = vmatpush1.msra.mxu0 0.0
    %3994 = vmatprep.subr.mxu0 0.0
    %3995 = vmatpush1.msra.mxu0 0.0
    %3996 = vmatprep.subr.mxu0 0.0
    %3997 = vmatpush1.msra.mxu0 0.0
    %3998 = vmatprep.subr.mxu0 0.0
    %3999 = vmatpush1.msra.mxu0 0.0
    %4000 = vmatprep.subr.mxu0 0.0
    %4001 = vmatpush1.msra.mxu0 0.0
    %4002 = vmatprep.subr.mxu0 0.0
    %4003 = vmatpush1.msra.mxu0 0.0
    %4004 = vmatprep.subr.mxu0 0.0
    %4005 = vmatpush1.msra.mxu0 0.0
    %4006 = vmatprep.subr.mxu0 0.0
    %4007 = vmatpush1.msra.mxu0 0.0
    %4008 = vmatprep.subr.mxu0 0.0
    %4009 = vmatpush1.msra.mxu0 0.0
    %4010 = vmatprep.subr.mxu0 0.0
    %4011 = vmatpush1.msra.mxu0 0.0
    %4012 = vmatprep.subr.mxu0 0.0
    %4013 = vmatpush1.msra.mxu0 0.0
    %4014 = vmatprep.subr.mxu0 0.0
    %4015 = vmatpush1.msra.mxu0 0.0
    %4016 = vmatprep.subr.mxu0 0.0
    %4017 = vmatpush1.msra.mxu0 0.0
    %4018 = vmatprep.subr.mxu0 0.0
    %4019 = vmatpush1.msra.mxu0 0.0
    %4020 = vmatprep.subr.mxu0 0.0
    %4021 = vmatpush1.msra.mxu0 0.0
    %4022 = vmatprep.mubr.f32.mxu0 0.0
    %4023 = vmatmul.mubr.f32.gmra.mrb[0].mxu0 %v3956
    %v4024 = vpop.f32.mrb[0].mxu0
    %v4025 = vadd.f32 %v3953, %v4024
    %v4026 = vpop.f32.mrb[0].mxu0
    %4027 = vdwg.mxu0
    %v4028 = vtanh.pop %v4025
    %v4029 = vld [vmem:[%s21] sm:$0xff]
    %v4030 = vld [vmem:[%s21 + $0x8] sm:$0xff]
    %v4031 = vld [vmem:[%s21 + $0x10] sm:$0xff]
    %v4032 = vld [vmem:[%s21 + $0x18] sm:$0xff]
    %v4033 = vld [vmem:[%s22] sm:$0x1]
    %v4035 = vlaneseq
    %v4036 = vshrl.u32 %v4035, 7
    %v4037 = vsub.s32 0, %v4036
    %v4038 = vrot.slane %v4033, %v4037
    %v4041 = vsel %vm200, %v4028, 0
    %4043 = vmatprep.subr.mxu0 0.0
    %4044 = vmatpush1.msra.mxu0 %v4029
    %4045 = vmatprep.subr.mxu0 0.0
    %4046 = vmatpush1.msra.mxu0 %v4030
    %4047 = vmatprep.subr.mxu0 0.0
    %4048 = vmatpush1.msra.mxu0 %v4031
    %4049 = vmatprep.subr.mxu0 0.0
    %4050 = vmatpush1.msra.mxu0 %v4032
    %4051 = vmatprep.subr.mxu0 0.0
    %4052 = vmatpush1.msra.mxu0 0.0
    %4053 = vmatprep.subr.mxu0 0.0
    %4054 = vmatpush1.msra.mxu0 0.0
    %4055 = vmatprep.subr.mxu0 0.0
    %4056 = vmatpush1.msra.mxu0 0.0
    %4057 = vmatprep.subr.mxu0 0.0
    %4058 = vmatpush1.msra.mxu0 0.0
    %4059 = vmatprep.subr.mxu0 0.0
    %4060 = vmatpush1.msra.mxu0 0.0
    %4061 = vmatprep.subr.mxu0 0.0
    %4062 = vmatpush1.msra.mxu0 0.0
    %4063 = vmatprep.subr.mxu0 0.0
    %4064 = vmatpush1.msra.mxu0 0.0
    %4065 = vmatprep.subr.mxu0 0.0
    %4066 = vmatpush1.msra.mxu0 0.0
    %4067 = vmatprep.subr.mxu0 0.0
    %4068 = vmatpush1.msra.mxu0 0.0
    %4069 = vmatprep.subr.mxu0 0.0
    %4070 = vmatpush1.msra.mxu0 0.0
    %4071 = vmatprep.subr.mxu0 0.0
    %4072 = vmatpush1.msra.mxu0 0.0
    %4073 = vmatprep.subr.mxu0 0.0
    %4074 = vmatpush1.msra.mxu0 0.0
    %4075 = vmatprep.subr.mxu0 0.0
    %4076 = vmatpush1.msra.mxu0 0.0
    %4077 = vmatprep.subr.mxu0 0.0
    %4078 = vmatpush1.msra.mxu0 0.0
    %4079 = vmatprep.subr.mxu0 0.0
    %4080 = vmatpush1.msra.mxu0 0.0
    %4081 = vmatprep.subr.mxu0 0.0
    %4082 = vmatpush1.msra.mxu0 0.0
    %4083 = vmatprep.subr.mxu0 0.0
    %4084 = vmatpush1.msra.mxu0 0.0
    %4085 = vmatprep.subr.mxu0 0.0
    %4086 = vmatpush1.msra.mxu0 0.0
    %4087 = vmatprep.subr.mxu0 0.0
    %4088 = vmatpush1.msra.mxu0 0.0
    %4089 = vmatprep.subr.mxu0 0.0
    %4090 = vmatpush1.msra.mxu0 0.0
    %4091 = vmatprep.subr.mxu0 0.0
    %4092 = vmatpush1.msra.mxu0 0.0
    %4093 = vmatprep.subr.mxu0 0.0
    %4094 = vmatpush1.msra.mxu0 0.0
    %4095 = vmatprep.subr.mxu0 0.0
    %4096 = vmatpush1.msra.mxu0 0.0
    %4097 = vmatprep.subr.mxu0 0.0
    %4098 = vmatpush1.msra.mxu0 0.0
    %4099 = vmatprep.subr.mxu0 0.0
    %4100 = vmatpush1.msra.mxu0 0.0
    %4101 = vmatprep.subr.mxu0 0.0
    %4102 = vmatpush1.msra.mxu0 0.0
    %4103 = vmatprep.subr.mxu0 0.0
    %4104 = vmatpush1.msra.mxu0 0.0
    %4105 = vmatprep.subr.mxu0 0.0
    %4106 = vmatpush1.msra.mxu0 0.0
    %4107 = vmatprep.mubr.f32.mxu0 0.0
    %4108 = vmatmul.mubr.f32.gmra.mrb[0].mxu0 %v4041
    %v4109 = vpop.f32.mrb[0].mxu0
    %v4110 = vadd.f32 %v4038, %v4109
    %v4111 = vpop.f32.mrb[0].mxu0
    %4112 = vdwg.mxu0
    %vm4113 = vcmask 25600
    %4114 = vst.msk [vmem:[#allocation2] sm:$0x3] %vm4113, %v4110
    // Predicated region
    $region94: #{bert_classifier_forward.1} parent=1 // pred_check
      _
    $region95: #{bert_classifier_forward.1} parent=1 // pred_check_branch
      %4116 = sbr.rel (0) target = $region97
    $region96: #{bert_classifier_forward.1} parent=1 // pred_region
      %s4118 = ssub.s32 32, 32
      %4119 = vsyncadd [#allocation3], %s4118
      %s4121 = sshll.u32 [#allocation2], 4
      %s4122 = int_to_ptr.vmem [resolvable:$true] %s4121
      %4124 = dma.vmem_to_hbm [thread:$0]  %s4122, 32, %s23, [#allocation3]
    $region97: #{bert_classifier_forward.1} parent=1 // pred_fallthru
      _
    // Predicated region
    $region98: #{bert_classifier_forward.1} parent=1 // pred_check
      _
    $region99: #{bert_classifier_forward.1} parent=1 // pred_check_branch
      %4126 = sbr.rel (0) target = $region101
    $region100: #{bert_classifier_forward.1} parent=1 // pred_region
      %4127 = dma.done [#allocation3], 32
    $region101: #{bert_classifier_forward.1} parent=1 // pred_fallthru
      _
    %4128 = vsyncpa [#allocation3], 1

</llo_original>
